<compile_context>
chip_gen: v7x
topology: tpu7x:2x2x1
jax: 0.10.0
libtpu: 0.0.40
codegen_flags: <defaults>
</compile_context>

<pallas_src>
import functools

import jax
import jax.numpy as jnp
from jax.experimental import pallas as pl
from jax.experimental.pallas import tpu as pltpu

EPS = 1e-5
LANE = 128


def _round_up(x, m):
    return (x + m - 1) // m * m


def _row_tile(m, cap=1024):
    """Largest row tile <= cap that divides m (multiple of 8), else full m."""
    if m <= cap:
        return m
    for tm in range(cap - cap % 8, 7, -8):
        if m % tm == 0:
            return tm
    return m  # TODO(synk): pad row count if a huge M has no 8-aligned divisor.


def _vmem_limit(block_bytes, floor=16 << 20, cap=48 << 20):
    # Blocks are double-buffered by the pipeline; add headroom, stay v7x-safe.
    return int(min(max(2 * block_bytes + (2 << 20), floor), cap))


# ---------------------------------------------------------------------------
# Phase 1: conv as a static tap loop (MXU) + per-channel sum / sum-of-squares.
# ---------------------------------------------------------------------------
def conv_stats_kernel(xflat_ref, w_ref, y_ref, stats_ref, *, W, Wp, KH, KW, rows):
    n = pl.program_id(0)

    @pl.when(n == 0)
    def _init():
        stats_ref[...] = jnp.zeros_like(stats_ref)

    cpad = y_ref.shape[-1]

    # Accumulate the conv result locally; store the (rows, Cpad) block once.
    acc = jnp.zeros((rows, cpad), jnp.float32)
    for t in range(KH * KW):                      # static, fully unrolled taps
        dh, dw = divmod(t, KW)
        off = dh * Wp + dw                        # static sublane offset
        tap = xflat_ref[off:off + rows, :]        # (rows, Cin) bf16
        acc = acc + jnp.dot(tap, w_ref[t], preferred_element_type=jnp.float32)
    y_ref[...] = acc

    # Batch statistics over the *valid* output columns only (w < W); the extra
    # padded-width columns (w in [W, Wp)) are scratch and sliced away later.
    col = jax.lax.broadcasted_iota(jnp.int32, (rows, cpad), 0) % Wp
    acc_v = jnp.where(col < W, acc, 0.0)
    stats_ref[0:1, :] = stats_ref[0:1, :] + jnp.sum(acc_v, axis=0, keepdims=True)
    stats_ref[1:2, :] = stats_ref[1:2, :] + jnp.sum(acc_v * acc_v, axis=0,
                                                    keepdims=True)


# ---------------------------------------------------------------------------
# Phase 2: BatchNorm epilogue folded into a single per-channel FMA.
# ---------------------------------------------------------------------------
def bn_apply_kernel(y_ref, scale_ref, shift_ref, o_ref):
    o_ref[...] = y_ref[...] * scale_ref[...] + shift_ref[...]


def reset_layer_forward(x_nchw, conv_w, conv_b, bn_gamma, bn_beta):
    """
    x_nchw : (N, Cin, H, W) f32        conv_w : (Cout, Cin, KH, KW) f32
    conv_b : (Cout,) f32 (mathematically cancelled by training-mode BN)
    bn_gamma, bn_beta : (Cout,) f32
    Returns (N, Cout, H, W): Conv2d(stride=1, padding=K//2) + BatchNorm2d(train).
    """
    del conv_b  # training-mode BN subtracts the batch mean -> bias cancels.

    N, Cin, H, W = x_nchw.shape
    Cout, _, KH, KW = conv_w.shape
    ph, pw = KH // 2, KW // 2
    Hp, Wp = H + 2 * ph, W + 2 * pw
    Cpad = _round_up(max(Cout, LANE), LANE)       # lane-dense output channels
    rows = H * Wp                                 # per-image conv rows (padded W)
    Rflat = Hp * Wp + (KW - 1)                    # flat rows + tap-shift slack
    M = N * rows

    # ---- layout glue (plain JAX, pure data movement) -----------------------
    x_nhwc = jnp.transpose(x_nchw, (0, 2, 3, 1))
    x_pad = jnp.pad(x_nhwc, ((0, 0), (ph, ph), (pw, pw), (0, 0)))
    x_flat = jnp.pad(x_pad.reshape(N, Hp * Wp, Cin),
                     ((0, 0), (0, KW - 1), (0, 0))).astype(jnp.bfloat16)

    # Conv weight -> tap-major (KH*KW, Cin, Cpad), bf16, resident across grid.
    w_taps = jnp.transpose(conv_w, (2, 3, 1, 0)).reshape(KH * KW, Cin, Cout)
    w_taps = jnp.pad(w_taps, ((0, 0), (0, 0), (0, Cpad - Cout))).astype(jnp.bfloat16)

    # ---- phase 1: conv + batch statistics ----------------------------------
    kern = functools.partial(conv_stats_kernel, W=W, Wp=Wp, KH=KH, KW=KW, rows=rows)
    p1_block_bytes = (Rflat * Cin * 2 + KH * KW * Cin * Cpad * 2
                      + rows * Cpad * 4 + 8 * Cpad * 4)
    y, stats = pl.pallas_call(
        kern,
        out_shape=(jax.ShapeDtypeStruct((N, rows, Cpad), jnp.float32),
                   jax.ShapeDtypeStruct((8, Cpad), jnp.float32)),
        grid=(N,),
        in_specs=[
            pl.BlockSpec((None, Rflat, Cin), lambda n: (n, 0, 0)),
            pl.BlockSpec((KH * KW, Cin, Cpad), lambda n: (0, 0, 0)),
        ],
        out_specs=(
            pl.BlockSpec((None, rows, Cpad), lambda n: (n, 0, 0)),
            pl.BlockSpec((8, Cpad), lambda n: (0, 0)),
        ),
        compiler_params=pltpu.CompilerParams(
            dimension_semantics=("arbitrary",),       # stats accumulate over N
            vmem_limit_bytes=_vmem_limit(p1_block_bytes)),
        cost_estimate=pl.CostEstimate(
            flops=2 * N * rows * KH * KW * Cin * Cpad,
            transcendentals=0,
            bytes_accessed=(x_flat.size * 2 + w_taps.size * 2
                            + N * rows * Cpad * 4 + 8 * Cpad * 4)),
    )(x_flat, w_taps)

    # ---- per-channel scale / shift (tiny, plain JAX) ------------------------
    m = jnp.float32(N * H * W)
    mean = stats[0] / m
    var = jnp.maximum(stats[1] / m - mean * mean, 0.0)   # biased var (PyTorch train)
    gamma_p = jnp.pad(bn_gamma.astype(jnp.float32), (0, Cpad - Cout))
    beta_p = jnp.pad(bn_beta.astype(jnp.float32), (0, Cpad - Cout))
    g_inv = gamma_p * jax.lax.rsqrt(var + EPS)
    scale = g_inv.reshape(1, Cpad)
    shift = (beta_p - mean * g_inv).reshape(1, Cpad)

    # ---- phase 2: normalize + affine (one FMA), row-tiled, parallel ---------
    TM = _row_tile(M)
    p2_block_bytes = 2 * TM * Cpad * 4 + 2 * Cpad * 4
    out_flat = pl.pallas_call(
        bn_apply_kernel,
        out_shape=jax.ShapeDtypeStruct((M, Cpad), jnp.float32),
        grid=(M // TM,),
        in_specs=[
            pl.BlockSpec((TM, Cpad), lambda i: (i, 0)),
            pl.BlockSpec((1, Cpad), lambda i: (0, 0)),
            pl.BlockSpec((1, Cpad), lambda i: (0, 0)),
        ],
        out_specs=pl.BlockSpec((TM, Cpad), lambda i: (i, 0)),
        compiler_params=pltpu.CompilerParams(
            dimension_semantics=("parallel",),        # shards across TCs
            vmem_limit_bytes=_vmem_limit(p2_block_bytes)),
    )(y.reshape(M, Cpad), scale, shift)

    # Drop the padded-width columns and padded channels, back to NCHW.
    out = out_flat.reshape(N, H, Wp, Cpad)[:, :, :W, :Cout]
    return jnp.transpose(out, (0, 3, 1, 2))


def _reference(x, conv_w, conv_b, gamma, beta):
    ph, pw = conv_w.shape[2] // 2, conv_w.shape[3] // 2
    y = jax.lax.conv_general_dilated(
        x, conv_w, window_strides=(1, 1), padding=((ph, ph), (pw, pw)),
        dimension_numbers=("NCHW", "OIHW", "NCHW"))
    y = y + conv_b[None, :, None, None]
    mean = jnp.mean(y, axis=(0, 2, 3), keepdims=True)
    var = jnp.mean((y - mean) ** 2, axis=(0, 2, 3), keepdims=True)
    y_hat = (y - mean) * jax.lax.rsqrt(var + EPS)
    return y_hat * gamma[None, :, None, None] + beta[None, :, None, None]


if __name__ == "__main__":
    key = jax.random.PRNGKey(0)
    k1, k2, k3, k4, k5 = jax.random.split(key, 5)

    # Conv2d(4 -> 8, 3x3, pad=1) + BatchNorm2d(8), matching the module.
    N, Cin, H, W = 2, 4, 16, 16
    Cout, KH, KW = 8, 3, 3

    x = jax.random.normal(k1, (N, Cin, H, W), dtype=jnp.float32)
    conv_w = 0.1 * jax.random.normal(k2, (Cout, Cin, KH, KW), dtype=jnp.float32)
    conv_b = 0.05 * jax.random.normal(k3, (Cout,), dtype=jnp.float32)
    bn_gamma = 1.0 + 0.1 * jax.random.normal(k4, (Cout,), dtype=jnp.float32)  # goal_std
    bn_beta = 0.1 * jax.random.normal(k5, (Cout,), dtype=jnp.float32)         # goal_mean

    out = reset_layer_forward(x, conv_w, conv_b, bn_gamma, bn_beta)
    out = jax.block_until_ready(out)

    assert out.shape == (N, Cout, H, W)
    assert bool(jnp.all(jnp.isfinite(out)))

    ref = _reference(x, conv_w, conv_b, bn_gamma, bn_beta)
    max_err = float(jnp.max(jnp.abs(out - ref)))
    assert max_err < 5e-2, f"max abs err vs reference = {max_err}"

    print("KERNEL_OK")
</pallas_src>

<mosaic_0001>
module attributes {stable_mosaic.version = 11 : i64} {
  func.func @conv_stats_kernel(%arg0: i32, %arg1: memref<1x326x4xbf16, #tpu.memory_space<vmem>>, %arg2: memref<9x4x128xbf16, #tpu.memory_space<vmem>>, %arg3: memref<1x288x128xf32, #tpu.memory_space<vmem>>, %arg4: memref<8x128xf32, #tpu.memory_space<vmem>>) attributes {dimension_semantics = [#tpu.dimension_semantics<arbitrary>], iteration_bounds = array<i64: 2>, scalar_prefetch = 0 : i64, scratch_operands = 0 : i64, tpu.core_type = #tpu.core_type<tc>, window_params = [{transform_indices = @transform_0, window_bounds = array<i64: 1, 326, 4>}, {pipeline_mode = #tpu.pipeline_mode<synchronous>, transform_indices = @transform_1, window_bounds = array<i64: 9, 4, 128>}, {transform_indices = @transform_2, window_bounds = array<i64: 1, 288, 128>}, {pipeline_mode = #tpu.pipeline_mode<synchronous>, transform_indices = @transform_3, window_bounds = array<i64: 8, 128>}]} {
    %c0_i32 = arith.constant 0 : i32
    %0 = arith.cmpi eq, %arg0, %c0_i32 : i32
    %1 = arith.extui %0 : i1 to i32
    %c0_i32_0 = arith.constant 0 : i32
    %2 = arith.cmpi ne, %1, %c0_i32_0 : i32
    scf.if %2 {
      %cst_67 = arith.constant 0.000000e+00 : f32
      %93 = vector.broadcast %cst_67 : f32 to vector<8x128xf32>
      %c0_68 = arith.constant 0 : index
      %c0_69 = arith.constant 0 : index
      %94 = vector.load %arg4[%c0_68, %c0_69] : memref<8x128xf32, #tpu.memory_space<vmem>>, vector<8x128xf32>
      tpu.vector_store %arg4[%c0_68, %c0_69], %93 {strides = array<i32>} : memref<8x128xf32, #tpu.memory_space<vmem>>, vector<8x128xf32>,
    } else {
    }
    %cst = arith.constant 0.000000e+00 : f32
    %3 = vector.broadcast %cst : f32 to vector<288x128xf32>
    %c0 = arith.constant 0 : index
    %c0_1 = arith.constant 0 : index
    %c0_2 = arith.constant 0 : index
    %4 = vector.load %arg1[%c0, %c0_1, %c0_2] : memref<1x326x4xbf16, #tpu.memory_space<vmem>>, vector<1x288x4xbf16>
    %5 = vector.shape_cast %4 : vector<1x288x4xbf16> to vector<288x4xbf16>
    %c0_3 = arith.constant 0 : index
    %c0_4 = arith.constant 0 : index
    %c0_5 = arith.constant 0 : index
    %6 = vector.load %arg2[%c0_3, %c0_4, %c0_5] : memref<9x4x128xbf16, #tpu.memory_space<vmem>>, vector<1x4x128xbf16>
    %7 = vector.shape_cast %6 : vector<1x4x128xbf16> to vector<4x128xbf16>
    %cst_6 = arith.constant dense<0.000000e+00> : vector<288x128xf32>
    %8 = tpu.matmul %5, %7, %cst_6 {dimension_numbers = #tpu.dot_dimension_numbers<[1], [0], [0], [1], [0, 0, 1, 1], [], []>} : vector<288x4xbf16>, vector<4x128xbf16>, vector<288x128xf32> -> vector<288x128xf32>
    %9 = arith.addf %3, %8 : vector<288x128xf32>
    %c0_7 = arith.constant 0 : index
    %c1 = arith.constant 1 : index
    %c0_8 = arith.constant 0 : index
    %10 = vector.load %arg1[%c0_7, %c1, %c0_8] : memref<1x326x4xbf16, #tpu.memory_space<vmem>>, vector<1x288x4xbf16>
    %11 = vector.shape_cast %10 : vector<1x288x4xbf16> to vector<288x4xbf16>
    %c1_9 = arith.constant 1 : index
    %c0_10 = arith.constant 0 : index
    %c0_11 = arith.constant 0 : index
    %12 = vector.load %arg2[%c1_9, %c0_10, %c0_11] : memref<9x4x128xbf16, #tpu.memory_space<vmem>>, vector<1x4x128xbf16>
    %13 = vector.shape_cast %12 : vector<1x4x128xbf16> to vector<4x128xbf16>
    %cst_12 = arith.constant dense<0.000000e+00> : vector<288x128xf32>
    %14 = tpu.matmul %11, %13, %cst_12 {dimension_numbers = #tpu.dot_dimension_numbers<[1], [0], [0], [1], [0, 0, 1, 1], [], []>} : vector<288x4xbf16>, vector<4x128xbf16>, vector<288x128xf32> -> vector<288x128xf32>
    %15 = arith.addf %9, %14 : vector<288x128xf32>
    %c0_13 = arith.constant 0 : index
    %c2 = arith.constant 2 : index
    %c0_14 = arith.constant 0 : index
    %16 = vector.load %arg1[%c0_13, %c2, %c0_14] : memref<1x326x4xbf16, #tpu.memory_space<vmem>>, vector<1x288x4xbf16>
    %17 = vector.shape_cast %16 : vector<1x288x4xbf16> to vector<288x4xbf16>
    %c2_15 = arith.constant 2 : index
    %c0_16 = arith.constant 0 : index
    %c0_17 = arith.constant 0 : index
    %18 = vector.load %arg2[%c2_15, %c0_16, %c0_17] : memref<9x4x128xbf16, #tpu.memory_space<vmem>>, vector<1x4x128xbf16>
    %19 = vector.shape_cast %18 : vector<1x4x128xbf16> to vector<4x128xbf16>
    %cst_18 = arith.constant dense<0.000000e+00> : vector<288x128xf32>
    %20 = tpu.matmul %17, %19, %cst_18 {dimension_numbers = #tpu.dot_dimension_numbers<[1], [0], [0], [1], [0, 0, 1, 1], [], []>} : vector<288x4xbf16>, vector<4x128xbf16>, vector<288x128xf32> -> vector<288x128xf32>
    %21 = arith.addf %15, %20 : vector<288x128xf32>
    %c0_19 = arith.constant 0 : index
    %c18 = arith.constant 18 : index
    %c0_20 = arith.constant 0 : index
    %22 = vector.load %arg1[%c0_19, %c18, %c0_20] : memref<1x326x4xbf16, #tpu.memory_space<vmem>>, vector<1x288x4xbf16>
    %23 = vector.shape_cast %22 : vector<1x288x4xbf16> to vector<288x4xbf16>
    %c3 = arith.constant 3 : index
    %c0_21 = arith.constant 0 : index
    %c0_22 = arith.constant 0 : index
    %24 = vector.load %arg2[%c3, %c0_21, %c0_22] : memref<9x4x128xbf16, #tpu.memory_space<vmem>>, vector<1x4x128xbf16>
    %25 = vector.shape_cast %24 : vector<1x4x128xbf16> to vector<4x128xbf16>
    %cst_23 = arith.constant dense<0.000000e+00> : vector<288x128xf32>
    %26 = tpu.matmul %23, %25, %cst_23 {dimension_numbers = #tpu.dot_dimension_numbers<[1], [0], [0], [1], [0, 0, 1, 1], [], []>} : vector<288x4xbf16>, vector<4x128xbf16>, vector<288x128xf32> -> vector<288x128xf32>
    %27 = arith.addf %21, %26 : vector<288x128xf32>
    %c0_24 = arith.constant 0 : index
    %c19 = arith.constant 19 : index
    %c0_25 = arith.constant 0 : index
    %28 = vector.load %arg1[%c0_24, %c19, %c0_25] : memref<1x326x4xbf16, #tpu.memory_space<vmem>>, vector<1x288x4xbf16>
    %29 = vector.shape_cast %28 : vector<1x288x4xbf16> to vector<288x4xbf16>
    %c4 = arith.constant 4 : index
    %c0_26 = arith.constant 0 : index
    %c0_27 = arith.constant 0 : index
    %30 = vector.load %arg2[%c4, %c0_26, %c0_27] : memref<9x4x128xbf16, #tpu.memory_space<vmem>>, vector<1x4x128xbf16>
    %31 = vector.shape_cast %30 : vector<1x4x128xbf16> to vector<4x128xbf16>
    %cst_28 = arith.constant dense<0.000000e+00> : vector<288x128xf32>
    %32 = tpu.matmul %29, %31, %cst_28 {dimension_numbers = #tpu.dot_dimension_numbers<[1], [0], [0], [1], [0, 0, 1, 1], [], []>} : vector<288x4xbf16>, vector<4x128xbf16>, vector<288x128xf32> -> vector<288x128xf32>
    %33 = arith.addf %27, %32 : vector<288x128xf32>
    %c0_29 = arith.constant 0 : index
    %c20 = arith.constant 20 : index
    %c0_30 = arith.constant 0 : index
    %34 = vector.load %arg1[%c0_29, %c20, %c0_30] : memref<1x326x4xbf16, #tpu.memory_space<vmem>>, vector<1x288x4xbf16>
    %35 = vector.shape_cast %34 : vector<1x288x4xbf16> to vector<288x4xbf16>
    %c5 = arith.constant 5 : index
    %c0_31 = arith.constant 0 : index
    %c0_32 = arith.constant 0 : index
    %36 = vector.load %arg2[%c5, %c0_31, %c0_32] : memref<9x4x128xbf16, #tpu.memory_space<vmem>>, vector<1x4x128xbf16>
    %37 = vector.shape_cast %36 : vector<1x4x128xbf16> to vector<4x128xbf16>
    %cst_33 = arith.constant dense<0.000000e+00> : vector<288x128xf32>
    %38 = tpu.matmul %35, %37, %cst_33 {dimension_numbers = #tpu.dot_dimension_numbers<[1], [0], [0], [1], [0, 0, 1, 1], [], []>} : vector<288x4xbf16>, vector<4x128xbf16>, vector<288x128xf32> -> vector<288x128xf32>
    %39 = arith.addf %33, %38 : vector<288x128xf32>
    %c0_34 = arith.constant 0 : index
    %c36 = arith.constant 36 : index
    %c0_35 = arith.constant 0 : index
    %40 = vector.load %arg1[%c0_34, %c36, %c0_35] : memref<1x326x4xbf16, #tpu.memory_space<vmem>>, vector<1x288x4xbf16>
    %41 = vector.shape_cast %40 : vector<1x288x4xbf16> to vector<288x4xbf16>
    %c6 = arith.constant 6 : index
    %c0_36 = arith.constant 0 : index
    %c0_37 = arith.constant 0 : index
    %42 = vector.load %arg2[%c6, %c0_36, %c0_37] : memref<9x4x128xbf16, #tpu.memory_space<vmem>>, vector<1x4x128xbf16>
    %43 = vector.shape_cast %42 : vector<1x4x128xbf16> to vector<4x128xbf16>
    %cst_38 = arith.constant dense<0.000000e+00> : vector<288x128xf32>
    %44 = tpu.matmul %41, %43, %cst_38 {dimension_numbers = #tpu.dot_dimension_numbers<[1], [0], [0], [1], [0, 0, 1, 1], [], []>} : vector<288x4xbf16>, vector<4x128xbf16>, vector<288x128xf32> -> vector<288x128xf32>
    %45 = arith.addf %39, %44 : vector<288x128xf32>
    %c0_39 = arith.constant 0 : index
    %c37 = arith.constant 37 : index
    %c0_40 = arith.constant 0 : index
    %46 = vector.load %arg1[%c0_39, %c37, %c0_40] : memref<1x326x4xbf16, #tpu.memory_space<vmem>>, vector<1x288x4xbf16>
    %47 = vector.shape_cast %46 : vector<1x288x4xbf16> to vector<288x4xbf16>
    %c7 = arith.constant 7 : index
    %c0_41 = arith.constant 0 : index
    %c0_42 = arith.constant 0 : index
    %48 = vector.load %arg2[%c7, %c0_41, %c0_42] : memref<9x4x128xbf16, #tpu.memory_space<vmem>>, vector<1x4x128xbf16>
    %49 = vector.shape_cast %48 : vector<1x4x128xbf16> to vector<4x128xbf16>
    %cst_43 = arith.constant dense<0.000000e+00> : vector<288x128xf32>
    %50 = tpu.matmul %47, %49, %cst_43 {dimension_numbers = #tpu.dot_dimension_numbers<[1], [0], [0], [1], [0, 0, 1, 1], [], []>} : vector<288x4xbf16>, vector<4x128xbf16>, vector<288x128xf32> -> vector<288x128xf32>
    %51 = arith.addf %45, %50 : vector<288x128xf32>
    %c0_44 = arith.constant 0 : index
    %c38 = arith.constant 38 : index
    %c0_45 = arith.constant 0 : index
    %52 = vector.load %arg1[%c0_44, %c38, %c0_45] : memref<1x326x4xbf16, #tpu.memory_space<vmem>>, vector<1x288x4xbf16>
    %53 = vector.shape_cast %52 : vector<1x288x4xbf16> to vector<288x4xbf16>
    %c8 = arith.constant 8 : index
    %c0_46 = arith.constant 0 : index
    %c0_47 = arith.constant 0 : index
    %54 = vector.load %arg2[%c8, %c0_46, %c0_47] : memref<9x4x128xbf16, #tpu.memory_space<vmem>>, vector<1x4x128xbf16>
    %55 = vector.shape_cast %54 : vector<1x4x128xbf16> to vector<4x128xbf16>
    %cst_48 = arith.constant dense<0.000000e+00> : vector<288x128xf32>
    %56 = tpu.matmul %53, %55, %cst_48 {dimension_numbers = #tpu.dot_dimension_numbers<[1], [0], [0], [1], [0, 0, 1, 1], [], []>} : vector<288x4xbf16>, vector<4x128xbf16>, vector<288x128xf32> -> vector<288x128xf32>
    %57 = arith.addf %51, %56 : vector<288x128xf32>
    %c0_49 = arith.constant 0 : index
    %c0_50 = arith.constant 0 : index
    %c0_51 = arith.constant 0 : index
    %58 = vector.load %arg3[%c0_49, %c0_50, %c0_51] : memref<1x288x128xf32, #tpu.memory_space<vmem>>, vector<1x288x128xf32>
    %59 = vector.shape_cast %58 : vector<1x288x128xf32> to vector<288x128xf32>
    %60 = vector.shape_cast %57 : vector<288x128xf32> to vector<1x288x128xf32>
    tpu.vector_store %arg3[%c0_49, %c0_50, %c0_51], %60 {strides = array<i32>} : memref<1x288x128xf32, #tpu.memory_space<vmem>>, vector<1x288x128xf32>,
    %61 = tpu.iota {dimensions = array<i32: 0>} : vector<288x128xi32>
    %c18_i32 = arith.constant 18 : i32
    %c0_i32_52 = arith.constant 0 : i32
    %62 = arith.cmpi eq, %c18_i32, %c0_i32_52 : i32
    %c1_i32 = arith.constant 1 : i32
    %63 = arith.select %62, %c1_i32, %c18_i32 : i32
    %64 = vector.broadcast %63 : i32 to vector<288x128xi32>
    %65 = arith.remsi %61, %64 : vector<288x128xi32>
    %c0_i32_53 = arith.constant 0 : i32
    %66 = vector.broadcast %c0_i32_53 : i32 to vector<288x128xi32>
    %67 = arith.cmpi ne, %65, %66 : vector<288x128xi32>
    %c0_i32_54 = arith.constant 0 : i32
    %68 = vector.broadcast %c0_i32_54 : i32 to vector<288x128xi32>
    %69 = arith.cmpi slt, %65, %68 : vector<288x128xi32>
    %c0_i32_55 = arith.constant 0 : i32
    %70 = arith.cmpi slt, %63, %c0_i32_55 : i32
    %71 = vector.broadcast %70 : i1 to vector<288x128xi1>
    %72 = vector.broadcast %71 : vector<288x128xi1> to vector<288x128xi1>
    %73 = arith.xori %69, %72 : vector<288x128xi1>
    %74 = arith.andi %73, %67 : vector<288x128xi1>
    %75 = vector.broadcast %63 : i32 to vector<288x128xi32>
    %76 = arith.addi %65, %75 : vector<288x128xi32>
    %77 = arith.select %74, %76, %65 : vector<288x128xi1>, vector<288x128xi32>
    %c16_i32 = arith.constant 16 : i32
    %78 = vector.broadcast %c16_i32 : i32 to vector<288x128xi32>
    %79 = arith.cmpi slt, %77, %78 : vector<288x128xi32>
    %cst_56 = arith.constant 0.000000e+00 : f32
    %80 = vector.broadcast %cst_56 : f32 to vector<288x128xf32>
    %81 = arith.select %79, %57, %80 : vector<288x128xi1>, vector<288x128xf32>
    %c0_57 = arith.constant 0 : index
    %c0_58 = arith.constant 0 : index
    %82 = vector.load %arg4[%c0_57, %c0_58] : memref<8x128xf32, #tpu.memory_space<vmem>>, vector<1x128xf32>
    %cst_59 = arith.constant dense<0.000000e+00> : vector<128xf32>
    %83 = vector.multi_reduction <add>, %81, %cst_59 [0] : vector<288x128xf32> to vector<128xf32>
    %84 = vector.shape_cast %83 : vector<128xf32> to vector<1x128xf32>
    %85 = arith.addf %82, %84 : vector<1x128xf32>
    %c0_60 = arith.constant 0 : index
    %c0_61 = arith.constant 0 : index
    %86 = vector.load %arg4[%c0_60, %c0_61] : memref<8x128xf32, #tpu.memory_space<vmem>>, vector<1x128xf32>
    tpu.vector_store %arg4[%c0_60, %c0_61], %85 {strides = array<i32>} : memref<8x128xf32, #tpu.memory_space<vmem>>, vector<1x128xf32>,
    %c1_62 = arith.constant 1 : index
    %c0_63 = arith.constant 0 : index
    %87 = vector.load %arg4[%c1_62, %c0_63] : memref<8x128xf32, #tpu.memory_space<vmem>>, vector<1x128xf32>
    %88 = arith.mulf %81, %81 : vector<288x128xf32>
    %cst_64 = arith.constant dense<0.000000e+00> : vector<128xf32>
    %89 = vector.multi_reduction <add>, %88, %cst_64 [0] : vector<288x128xf32> to vector<128xf32>
    %90 = vector.shape_cast %89 : vector<128xf32> to vector<1x128xf32>
    %91 = arith.addf %87, %90 : vector<1x128xf32>
    %c1_65 = arith.constant 1 : index
    %c0_66 = arith.constant 0 : index
    %92 = vector.load %arg4[%c1_65, %c0_66] : memref<8x128xf32, #tpu.memory_space<vmem>>, vector<1x128xf32>
    tpu.vector_store %arg4[%c1_65, %c0_66], %91 {strides = array<i32>} : memref<8x128xf32, #tpu.memory_space<vmem>>, vector<1x128xf32>,
    return
  }
  func.func @transform_0(%arg0: i32) -> (i32, i32, i32) {
    %c0_i32 = arith.constant 0 : i32
    %c0_i32_0 = arith.constant 0 : i32
    %c0_i32_1 = arith.constant 0 : i32
    return %arg0, %c0_i32, %c0_i32_0 : i32, i32, i32
  }
  func.func @transform_1(%arg0: i32) -> (i32, i32, i32) {
    %c0_i32 = arith.constant 0 : i32
    %c0_i32_0 = arith.constant 0 : i32
    %c0_i32_1 = arith.constant 0 : i32
    %c0_i32_2 = arith.constant 0 : i32
    return %c0_i32, %c0_i32_0, %c0_i32_1 : i32, i32, i32
  }
  func.func @transform_2(%arg0: i32) -> (i32, i32, i32) {
    %c0_i32 = arith.constant 0 : i32
    %c0_i32_0 = arith.constant 0 : i32
    %c0_i32_1 = arith.constant 0 : i32
    return %arg0, %c0_i32, %c0_i32_0 : i32, i32, i32
  }
  func.func @transform_3(%arg0: i32) -> (i32, i32) {
    %c0_i32 = arith.constant 0 : i32
    %c0_i32_0 = arith.constant 0 : i32
    %c0_i32_1 = arith.constant 0 : i32
    return %c0_i32, %c0_i32_0 : i32, i32
  }
}

</mosaic_0001>

<llo_original>
// kernel: tpu_custom_call.1
$region0: #{tpu_custom_call.1}
  #allocation0 [shape = 'u32[]', space=smem, size = 0x4, offset = 0x4, fixed_abs, tag = 'smem constant byte address 0x4 - core index']
  #allocation1 [shape = 'u32[144,128]{1,0:T(1,128)}', space=vmem, size = 0x12000, scoped, tag = 'internal scratch']
  %s0 = inlined_call_operand.vmem [shape: bf16[2,326,4], index: 0, kind: input, shape index: {}]
  %s1 = inlined_call_operand.vmem [shape: bf16[9,4,128], index: 1, kind: input, shape index: {}]
  %s2 = inlined_call_operand.hbm [shape: f32[2,288,128], index: 2, kind: output, shape index: {0}]
  %s3 = inlined_call_operand.hbm [shape: f32[8,128], index: 3, kind: output, shape index: {1}]
  %4 = xla_tuple %s2, %s3
  %s5 = sld [smem:[#allocation0]]
  $region53: #{tpu_custom_call.1} parent=0
    _
  %s7 = ssub.s32 1, %s5
  %s8 = scalar_select 0, %s7, %s5
  $region1: #{tpu_custom_call.1} parent=0
    #allocation2 [shape = 'u8[294912]{0}', space=vmem, size = 0x48000, scoped, tag = 'output window, operand 0']
    #allocation3 [shape = 's32[2]{0}', space=sflag, size = 0x8, scoped, tag = 'scoped memory for tpu_custom_call.1']
    #allocation4 [shape = 'u8[4096]{0}', space=vmem, size = 0x1000, scoped, tag = 'output window, operand 1, single buffered']
    #allocation5 [shape = 's32[1]{0}', space=sflag, size = 0x4, scoped, tag = 'scoped memory for tpu_custom_call.1']
    %9 = vsyncpa [#allocation3], 0
    %s10 = scalar_lea.sflag [#allocation3], 1
    %11 = vsyncpa %s10, 0
    %12 = vsyncpa [#allocation5], 0
    loop: start=0, step=1, limit=4
    $region2: #{tpu_custom_call.1} parent=1 // loop_pre_header
      _
    $region3: #{tpu_custom_call.1} parent=1 // loop_header
      %s14 = sphi 0, %s18
      %p15 = scmp.ge.s32.totalorder %s14, 4
      %s24 = sphi 0, %s26
      %s27 = sphi 0, %s24
      %s28 = sphi 0, %s27
      %s44 = sphi 0, %s28
      %s48 = sphi 0, %s48
      %s50 = sphi 0, %s48
      %s51 = sphi 0, %s50
      %s65 = sphi 0, %s51
      %s71 = sphi 0, %s73
      %s74 = sphi 0, %s71
      %s75 = sphi 0, %s74
      %s91 = sphi 0, %s75
      %s95 = sphi 0, %s95
      %s97 = sphi 0, %s95
      %s98 = sphi 0, %s97
      %s112 = sphi 0, %s98
    $region4: #{tpu_custom_call.1} parent=1 // loop_header_branch
      %17 = sbr.rel (%p15) target = $region8
    $region5: #{tpu_custom_call.1} parent=1 // loop_body
      %s19 = ssub.s32 %s14, 1
      %s20 = ssub.s32 %s14, 2
      %s21 = sadd.s32 %s14, 1
      %s22 = ssub.s32 %s14, %s21
      %p23 = scmp.eq.s32.totalorder %s22, 0
      %s25 = sadd.s32 %s24, 1
      %s26 = scalar_select %p23, %s24, %s25
      %p29 = pneg %p23
      %p30 = scmp.eq.s32.totalorder %s14, 1
      %p31 = por %p29, %p30
      %p32 = scmp.ne.s32.totalorder %s24, %s27
      %p33 = scmp.eq.s32.totalorder %s14, 0
      %p34 = por %p32, %p33
      %p35 = scmp.ne.s32.totalorder %s24, %s27
      %p36 = scmp.eq.s32.totalorder %s19, 1
      %p37 = por %p35, %p36
      %p38 = scmp.ne.s32.totalorder %s27, %s28
      %p39 = scmp.eq.s32.totalorder %s19, 0
      %p40 = por %p38, %p39
      %p41 = scmp.ne.s32.totalorder %s27, %s28
      %p42 = scmp.eq.s32.totalorder %s20, 1
      %p43 = por %p41, %p42
      %p45 = scmp.ne.s32.totalorder %s28, %s44
      %p46 = scmp.eq.s32.totalorder %s20, 0
      %p47 = por %p45, %p46
      %s49 = sadd.s32 %s48, 1
      %p52 = scmp.eq.s32.totalorder %s14, 1
      %p53 = scmp.ne.s32.totalorder %s48, %s50
      %p54 = scmp.eq.s32.totalorder %s14, 0
      %p55 = por %p53, %p54
      %p56 = scmp.ne.s32.totalorder %s48, %s50
      %p57 = scmp.eq.s32.totalorder %s19, 1
      %p58 = por %p56, %p57
      %p59 = scmp.ne.s32.totalorder %s50, %s51
      %p60 = scmp.eq.s32.totalorder %s19, 0
      %p61 = por %p59, %p60
      %p62 = scmp.ne.s32.totalorder %s50, %s51
      %p63 = scmp.eq.s32.totalorder %s20, 1
      %p64 = por %p62, %p63
      %p66 = scmp.ne.s32.totalorder %s51, %s65
      %p67 = scmp.eq.s32.totalorder %s20, 0
      %p68 = por %p66, %p67
      %s69 = ssub.s32 %s14, %s21
      %p70 = scmp.eq.s32.totalorder %s69, 0
      %s72 = sadd.s32 %s71, 1
      %s73 = scalar_select %p70, %s71, %s72
      %p76 = pneg %p70
      %p77 = scmp.eq.s32.totalorder %s14, 1
      %p78 = por %p76, %p77
      %p79 = scmp.ne.s32.totalorder %s71, %s74
      %p80 = scmp.eq.s32.totalorder %s14, 0
      %p81 = por %p79, %p80
      %p82 = scmp.ne.s32.totalorder %s71, %s74
      %p83 = scmp.eq.s32.totalorder %s19, 1
      %p84 = por %p82, %p83
      %p85 = scmp.ne.s32.totalorder %s74, %s75
      %p86 = scmp.eq.s32.totalorder %s19, 0
      %p87 = por %p85, %p86
      %p88 = scmp.ne.s32.totalorder %s74, %s75
      %p89 = scmp.eq.s32.totalorder %s20, 1
      %p90 = por %p88, %p89
      %p92 = scmp.ne.s32.totalorder %s75, %s91
      %p93 = scmp.eq.s32.totalorder %s20, 0
      %p94 = por %p92, %p93
      %s96 = sadd.s32 %s95, 1
      %p99 = scmp.eq.s32.totalorder %s14, 1
      %p100 = scmp.ne.s32.totalorder %s95, %s97
      %p101 = scmp.eq.s32.totalorder %s14, 0
      %p102 = por %p100, %p101
      %p103 = scmp.ne.s32.totalorder %s95, %s97
      %p104 = scmp.eq.s32.totalorder %s19, 1
      %p105 = por %p103, %p104
      %p106 = scmp.ne.s32.totalorder %s97, %s98
      %p107 = scmp.eq.s32.totalorder %s19, 0
      %p108 = por %p106, %p107
      %p109 = scmp.ne.s32.totalorder %s97, %s98
      %p110 = scmp.eq.s32.totalorder %s20, 1
      %p111 = por %p109, %p110
      %p113 = scmp.ne.s32.totalorder %s98, %s112
      %p114 = scmp.eq.s32.totalorder %s20, 0
      %p115 = por %p113, %p114
      %p116 = scmp.le.s32.totalorder 1, %s14
      %p117 = scmp.lt.s32.totalorder %s14, 3
      %p118 = pnand %p116, %p117
      %p119 = pneg %p118
      // Predicated region
      $region9: #{tpu_custom_call.1} parent=5 // pred_check
        _
      $region10: #{tpu_custom_call.1} parent=5 // pred_check_branch
        %121 = sbr.rel (%p118) target = $region12
      $region11: #{tpu_custom_call.1} parent=5 // pred_region
        %s122 = ssub.s32 %s14, 1
        // Predicated region
        $region13: #{tpu_custom_call.1} parent=11 // pred_check
          %p123 = pneg %p61
        $region14: #{tpu_custom_call.1} parent=11 // pred_check_branch
          %125 = sbr.rel (%p123) target = $region16
        $region15: #{tpu_custom_call.1} parent=11 // pred_region
          _
        $region16: #{tpu_custom_call.1} parent=11 // pred_fallthru
          _
      $region12: #{tpu_custom_call.1} parent=5 // pred_fallthru
        _
      %p126 = scmp.lt.s32.totalorder %s14, 2
      // Predicated region
      $region17: #{tpu_custom_call.1} parent=5 // pred_check
        %p127 = pneg %p126
      $region18: #{tpu_custom_call.1} parent=5 // pred_check_branch
        %129 = sbr.rel (%p127) target = $region20
      $region19: #{tpu_custom_call.1} parent=5 // pred_region
        // Predicated region
        $region21: #{tpu_custom_call.1} parent=19 // pred_check
          %p130 = pneg %p34
        $region22: #{tpu_custom_call.1} parent=19 // pred_check_branch
          %132 = sbr.rel (%p130) target = $region24
        $region23: #{tpu_custom_call.1} parent=19 // pred_region
          %p133 = scmp.lt.s32.totalorder %s14, 1
          %s134 = scalar_select %p133, %s14, 1
          %s135 = smul.addr %s134, 41
          %s136 = smul.addr %s135, 4
          %s137 = scalar_lea.vmem %s0, %s136
        $region24: #{tpu_custom_call.1} parent=19 // pred_fallthru
          _
      $region20: #{tpu_custom_call.1} parent=5 // pred_fallthru
        _
      %p138 = scmp.le.s32.totalorder 1, %s14
      %p139 = scmp.lt.s32.totalorder %s14, 3
      %p140 = pnand %p138, %p139
      %p141 = pneg %p140
      // Predicated region
      $region25: #{tpu_custom_call.1} parent=5 // pred_check
        _
      $region26: #{tpu_custom_call.1} parent=5 // pred_check_branch
        %143 = sbr.rel (%p140) target = $region28
      $region27: #{tpu_custom_call.1} parent=5 // pred_region
        %s144 = ssub.s32 %s14, 1
        %p145 = scmp.lt.s32.totalorder %s19, 1
        %s146 = scalar_select %p145, %s19, 1
        %s147 = smul.addr %s146, 41
        %s148 = smul.addr %s147, 4
        %s149 = scalar_lea.vmem %s0, %s148
        %p150 = pneg %p40
        %p151 = pneg %p37
        %p152 = pneg %p61
        %p153 = pneg %p58
        %p154 = pneg %p87
        %p155 = pneg %p84
        %s156 = sand.u32 %s74, 1
        %s157 = scalar_lea.sflag [#allocation3], %s156
        %s158 = sand.u32 %s74, 1
        %s159 = smul.addr %s158, 288
        %s160 = scalar_lea.vmem [#allocation2], %s159
        %p161 = pneg %p108
        %p162 = pneg %p105
        %p163 = scmp.lt.s32.totalorder %s19, 1
        %s164 = scalar_select %p163, %s19, 1
        %s165 = smul.addr %s164, 41
        %s166 = smul.addr %s165, 4
        %s167 = scalar_lea.vmem %s0, %s166
        %p169 = scmp.eq.s32.totalorder %s19, 0
        // Predicated region
        $region29: #{tpu_custom_call.1} parent=27 // pred_check
          %p170 = pneg %p169
        $region30: #{tpu_custom_call.1} parent=27 // pred_check_branch
          %172 = sbr.rel (%p170) target = $region32
        $region31: #{tpu_custom_call.1} parent=27 // pred_region
          %173 = vst [vmem:[#allocation4] sm:$0xff] 0.0
        $region32: #{tpu_custom_call.1} parent=27 // pred_fallthru
          _
        %v174 = vld [vmem:[%s167] sm:$0xf]
        %v175 = vld [vmem:[%s167 + $0x4] sm:$0xf]
        %v176 = vld [vmem:[%s167 + $0x8] sm:$0xf]
        %v177 = vld [vmem:[%s167 + $0xc] sm:$0xf]
        %v178 = vld [vmem:[%s167 + $0x10] sm:$0xf]
        %v179 = vld [vmem:[%s167 + $0x14] sm:$0xf]
        %v180 = vld [vmem:[%s167 + $0x18] sm:$0xf]
        %v181 = vld [vmem:[%s167 + $0x1c] sm:$0xf]
        %v182 = vld [vmem:[%s167 + $0x20] sm:$0xf]
        %v183 = vld [vmem:[%s167 + $0x24] sm:$0xf]
        %v184 = vld [vmem:[%s167 + $0x28] sm:$0xf]
        %v185 = vld [vmem:[%s167 + $0x2c] sm:$0xf]
        %v186 = vld [vmem:[%s167 + $0x30] sm:$0xf]
        %v187 = vld [vmem:[%s167 + $0x34] sm:$0xf]
        %v188 = vld [vmem:[%s167 + $0x38] sm:$0xf]
        %v189 = vld [vmem:[%s167 + $0x3c] sm:$0xf]
        %v190 = vld [vmem:[%s167 + $0x40] sm:$0xf]
        %v191 = vld [vmem:[%s167 + $0x44] sm:$0xf]
        %v192 = vld [vmem:[%s167 + $0x48] sm:$0xf]
        %v193 = vld [vmem:[%s167 + $0x4c] sm:$0xf]
        %v194 = vld [vmem:[%s167 + $0x50] sm:$0xf]
        %v195 = vld [vmem:[%s167 + $0x54] sm:$0xf]
        %v196 = vld [vmem:[%s167 + $0x58] sm:$0xf]
        %v197 = vld [vmem:[%s167 + $0x5c] sm:$0xf]
        %v198 = vld [vmem:[%s167 + $0x60] sm:$0xf]
        %v199 = vld [vmem:[%s167 + $0x64] sm:$0xf]
        %v200 = vld [vmem:[%s167 + $0x68] sm:$0xf]
        %v201 = vld [vmem:[%s167 + $0x6c] sm:$0xf]
        %v202 = vld [vmem:[%s167 + $0x70] sm:$0xf]
        %v203 = vld [vmem:[%s167 + $0x74] sm:$0xf]
        %v204 = vld [vmem:[%s167 + $0x78] sm:$0xf]
        %v205 = vld [vmem:[%s167 + $0x7c] sm:$0xf]
        %v206 = vld [vmem:[%s167 + $0x80] sm:$0xf]
        %v207 = vld [vmem:[%s167 + $0x84] sm:$0xf]
        %v208 = vld [vmem:[%s167 + $0x88] sm:$0xf]
        %v209 = vld [vmem:[%s167 + $0x8c] sm:$0xf]
        %v210 = vld [vmem:[%s1] sm:$0x3]
        %v211 = vld [vmem:[%s167 + $0x90] sm:$0x1]
        %s212 = scalar_lea.vmem %s1, 2
        %v213 = vld [vmem:[%s212] sm:$0x3]
        %v251 = vunpack.c.l.b16 %v174
        %v252 = vunpack.c.l.b16 %v175
        %v253 = vunpack.c.l.b16 %v176
        %v254 = vunpack.c.l.b16 %v177
        %v255 = vunpack.c.l.b16 %v178
        %v256 = vunpack.c.l.b16 %v179
        %v257 = vunpack.c.l.b16 %v180
        %v258 = vunpack.c.l.b16 %v181
        %v259 = vunpack.c.l.b16 %v182
        %v260 = vunpack.c.l.b16 %v183
        %v261 = vunpack.c.l.b16 %v184
        %v262 = vunpack.c.l.b16 %v185
        %v263 = vunpack.c.l.b16 %v186
        %v264 = vunpack.c.l.b16 %v187
        %v265 = vunpack.c.l.b16 %v188
        %v266 = vunpack.c.l.b16 %v189
        %v267 = vunpack.c.l.b16 %v190
        %v268 = vunpack.c.l.b16 %v191
        %v269 = vunpack.c.l.b16 %v192
        %v270 = vunpack.c.l.b16 %v193
        %v271 = vunpack.c.l.b16 %v194
        %v272 = vunpack.c.l.b16 %v195
        %v273 = vunpack.c.l.b16 %v196
        %v274 = vunpack.c.l.b16 %v197
        %v275 = vunpack.c.l.b16 %v198
        %v276 = vunpack.c.l.b16 %v199
        %v277 = vunpack.c.l.b16 %v200
        %v278 = vunpack.c.l.b16 %v201
        %v279 = vunpack.c.l.b16 %v202
        %v280 = vunpack.c.l.b16 %v203
        %v281 = vunpack.c.l.b16 %v204
        %v282 = vunpack.c.l.b16 %v205
        %v283 = vunpack.c.l.b16 %v206
        %v284 = vunpack.c.l.b16 %v207
        %v285 = vunpack.c.l.b16 %v208
        %v286 = vunpack.c.l.b16 %v209
        %v287 = vunpack.c.l.b16 %v211
        %v288 = vpack.c.b16 %v252, %v251
        %v289 = vpack.c.b16 %v254, %v253
        %v290 = vpack.c.b16 %v256, %v255
        %v291 = vpack.c.b16 %v258, %v257
        %v292 = vpack.c.b16 %v260, %v259
        %v293 = vpack.c.b16 %v262, %v261
        %v294 = vpack.c.b16 %v264, %v263
        %v295 = vpack.c.b16 %v266, %v265
        %v296 = vpack.c.b16 %v268, %v267
        %v297 = vpack.c.b16 %v270, %v269
        %v298 = vpack.c.b16 %v272, %v271
        %v299 = vpack.c.b16 %v274, %v273
        %v300 = vpack.c.b16 %v276, %v275
        %v301 = vpack.c.b16 %v278, %v277
        %v302 = vpack.c.b16 %v280, %v279
        %v303 = vpack.c.b16 %v282, %v281
        %v304 = vpack.c.b16 %v284, %v283
        %v305 = vpack.c.b16 %v286, %v285
        %v306 = vpack.c.b16 %v287, %v287
        %vm307 = vsmask.f32 7424
        %v309 = vshrl.u32 %v288, 16
        %v311 = vshll.u32 %v288, 16
        %v313 = vrot.slane %v311, 1
        %v314 = vor.u32 %v309, %v313
        %v316 = vshll.u32 %v289, 16
        %v318 = vrot.slane %v316, 1
        %v319 = vsel %vm307, %v314, %v318
        %v320 = vshrl.u32 %v289, 16
        %v322 = vor.u32 %v320, %v318
        %v324 = vshll.u32 %v290, 16
        %v326 = vrot.slane %v324, 1
        %v327 = vsel %vm307, %v322, %v326
        %v328 = vshrl.u32 %v290, 16
        %v330 = vor.u32 %v328, %v326
        %v332 = vshll.u32 %v291, 16
        %v334 = vrot.slane %v332, 1
        %v335 = vsel %vm307, %v330, %v334
        %v336 = vshrl.u32 %v291, 16
        %v338 = vor.u32 %v336, %v334
        %v340 = vshll.u32 %v292, 16
        %v342 = vrot.slane %v340, 1
        %v343 = vsel %vm307, %v338, %v342
        %v344 = vshrl.u32 %v292, 16
        %v346 = vor.u32 %v344, %v342
        %v348 = vshll.u32 %v293, 16
        %v350 = vrot.slane %v348, 1
        %v351 = vsel %vm307, %v346, %v350
        %v352 = vshrl.u32 %v293, 16
        %v354 = vor.u32 %v352, %v350
        %v356 = vshll.u32 %v294, 16
        %v358 = vrot.slane %v356, 1
        %v359 = vsel %vm307, %v354, %v358
        %v360 = vshrl.u32 %v294, 16
        %v362 = vor.u32 %v360, %v358
        %v364 = vshll.u32 %v295, 16
        %v366 = vrot.slane %v364, 1
        %v367 = vsel %vm307, %v362, %v366
        %v368 = vshrl.u32 %v295, 16
        %v370 = vor.u32 %v368, %v366
        %v372 = vshll.u32 %v296, 16
        %v374 = vrot.slane %v372, 1
        %v375 = vsel %vm307, %v370, %v374
        %v376 = vshrl.u32 %v296, 16
        %v378 = vor.u32 %v376, %v374
        %v380 = vshll.u32 %v297, 16
        %v382 = vrot.slane %v380, 1
        %v383 = vsel %vm307, %v378, %v382
        %v384 = vshrl.u32 %v297, 16
        %v386 = vor.u32 %v384, %v382
        %v388 = vshll.u32 %v298, 16
        %v390 = vrot.slane %v388, 1
        %v391 = vsel %vm307, %v386, %v390
        %v392 = vshrl.u32 %v298, 16
        %v394 = vor.u32 %v392, %v390
        %v396 = vshll.u32 %v299, 16
        %v398 = vrot.slane %v396, 1
        %v399 = vsel %vm307, %v394, %v398
        %v400 = vshrl.u32 %v299, 16
        %v402 = vor.u32 %v400, %v398
        %v404 = vshll.u32 %v300, 16
        %v406 = vrot.slane %v404, 1
        %v407 = vsel %vm307, %v402, %v406
        %v408 = vshrl.u32 %v300, 16
        %v410 = vor.u32 %v408, %v406
        %v412 = vshll.u32 %v301, 16
        %v414 = vrot.slane %v412, 1
        %v415 = vsel %vm307, %v410, %v414
        %v416 = vshrl.u32 %v301, 16
        %v418 = vor.u32 %v416, %v414
        %v420 = vshll.u32 %v302, 16
        %v422 = vrot.slane %v420, 1
        %v423 = vsel %vm307, %v418, %v422
        %v424 = vshrl.u32 %v302, 16
        %v426 = vor.u32 %v424, %v422
        %v428 = vshll.u32 %v303, 16
        %v430 = vrot.slane %v428, 1
        %v431 = vsel %vm307, %v426, %v430
        %v432 = vshrl.u32 %v303, 16
        %v434 = vor.u32 %v432, %v430
        %v436 = vshll.u32 %v304, 16
        %v438 = vrot.slane %v436, 1
        %v439 = vsel %vm307, %v434, %v438
        %v440 = vshrl.u32 %v304, 16
        %v442 = vor.u32 %v440, %v438
        %v444 = vshll.u32 %v305, 16
        %v446 = vrot.slane %v444, 1
        %v447 = vsel %vm307, %v442, %v446
        %v448 = vshrl.u32 %v305, 16
        %v450 = vor.u32 %v448, %v446
        %v452 = vshll.u32 %v306, 16
        %v454 = vrot.slane %v452, 1
        %v455 = vsel %vm307, %v450, %v454
        %vm456 = vcmask 31744
        %v458 = vsel %vm456, %v319, 0
        %v461 = vsel %vm456, %v327, 0
        %v464 = vsel %vm456, %v335, 0
        %v467 = vsel %vm456, %v343, 0
        %v470 = vsel %vm456, %v351, 0
        %v473 = vsel %vm456, %v359, 0
        %v476 = vsel %vm456, %v367, 0
        %v479 = vsel %vm456, %v375, 0
        %v482 = vsel %vm456, %v383, 0
        %v485 = vsel %vm456, %v391, 0
        %v488 = vsel %vm456, %v399, 0
        %v491 = vsel %vm456, %v407, 0
        %v494 = vsel %vm456, %v415, 0
        %v497 = vsel %vm456, %v423, 0
        %v500 = vsel %vm456, %v431, 0
        %v503 = vsel %vm456, %v439, 0
        %v506 = vsel %vm456, %v447, 0
        %v509 = vsel %vm456, %v455, 0
        %vm511 = vcmask 1041408
        %v513 = vsel %vm511, %v213, 0
        %515 = vmatprep.subr.bf16.mxu0 0
        %516 = vmatpush1.bf16.msra.mxu0 %v513
        %517 = vmatprep.subr.bf16.mxu0 0
        %518 = vmatpush1.bf16.msra.mxu0 0
        %519 = vmatprep.subr.bf16.mxu0 0
        %520 = vmatpush1.bf16.msra.mxu0 0
        %521 = vmatprep.subr.bf16.mxu0 0
        %522 = vmatpush1.bf16.msra.mxu0 0
        %523 = vmatprep.subr.bf16.mxu0 0
        %524 = vmatpush1.bf16.msra.mxu0 0
        %525 = vmatprep.subr.bf16.mxu0 0
        %526 = vmatpush1.bf16.msra.mxu0 0
        %527 = vmatprep.subr.bf16.mxu0 0
        %528 = vmatpush1.bf16.msra.mxu0 0
        %529 = vmatprep.subr.bf16.mxu0 0
        %530 = vmatpush1.bf16.msra.mxu0 0
        %531 = vmatprep.subr.bf16.mxu0 0
        %532 = vmatpush1.bf16.msra.mxu0 0
        %533 = vmatprep.subr.bf16.mxu0 0
        %534 = vmatpush1.bf16.msra.mxu0 0
        %535 = vmatprep.subr.bf16.mxu0 0
        %536 = vmatpush1.bf16.msra.mxu0 0
        %537 = vmatprep.subr.bf16.mxu0 0
        %538 = vmatpush1.bf16.msra.mxu0 0
        %539 = vmatprep.subr.bf16.mxu0 0
        %540 = vmatpush1.bf16.msra.mxu0 0
        %541 = vmatprep.subr.bf16.mxu0 0
        %542 = vmatpush1.bf16.msra.mxu0 0
        %543 = vmatprep.subr.bf16.mxu0 0
        %544 = vmatpush1.bf16.msra.mxu0 0
        %545 = vmatprep.subr.bf16.mxu0 0
        %546 = vmatpush1.bf16.msra.mxu0 0
        %547 = vmatprep.mubr.bf16.mxu0 0
        %548 = vmatmul.mubr.bf16.gmra.mrb[0].mxu0 %v458
        %v549 = vpop.f32.mrb[0].mxu0
        %v550 = vadd.f32 0.0, %v549
        %v551 = vpop.f32.mrb[0].mxu0
        %v552 = vpop.f32.mrb[0].mxu0
        %v553 = vadd.f32 0.0, %v552
        %v554 = vpop.f32.mrb[0].mxu0
        %555 = vmatprep.mubr.bf16.mxu0 0
        %556 = vmatmul.mubr.bf16.gmra.mrb[0].mxu0 %v461
        %v557 = vpop.f32.mrb[0].mxu0
        %v558 = vadd.f32 0.0, %v557
        %v559 = vpop.f32.mrb[0].mxu0
        %v560 = vpop.f32.mrb[0].mxu0
        %v561 = vadd.f32 0.0, %v560
        %v562 = vpop.f32.mrb[0].mxu0
        %563 = vmatprep.mubr.bf16.mxu0 0
        %564 = vmatmul.mubr.bf16.gmra.mrb[0].mxu0 %v464
        %v565 = vpop.f32.mrb[0].mxu0
        %v566 = vadd.f32 0.0, %v565
        %v567 = vpop.f32.mrb[0].mxu0
        %v568 = vpop.f32.mrb[0].mxu0
        %v569 = vadd.f32 0.0, %v568
        %v570 = vpop.f32.mrb[0].mxu0
        %571 = vmatprep.mubr.bf16.mxu0 0
        %572 = vmatmul.mubr.bf16.gmra.mrb[0].mxu0 %v467
        %v573 = vpop.f32.mrb[0].mxu0
        %v574 = vadd.f32 0.0, %v573
        %v575 = vpop.f32.mrb[0].mxu0
        %v576 = vpop.f32.mrb[0].mxu0
        %v577 = vadd.f32 0.0, %v576
        %v578 = vpop.f32.mrb[0].mxu0
        %579 = vmatprep.mubr.bf16.mxu0 0
        %580 = vmatmul.mubr.bf16.gmra.mrb[0].mxu0 %v470
        %v581 = vpop.f32.mrb[0].mxu0
        %v582 = vadd.f32 0.0, %v581
        %v583 = vpop.f32.mrb[0].mxu0
        %v584 = vpop.f32.mrb[0].mxu0
        %v585 = vadd.f32 0.0, %v584
        %v586 = vpop.f32.mrb[0].mxu0
        %587 = vmatprep.mubr.bf16.mxu0 0
        %588 = vmatmul.mubr.bf16.gmra.mrb[0].mxu0 %v473
        %v589 = vpop.f32.mrb[0].mxu0
        %v590 = vadd.f32 0.0, %v589
        %v591 = vpop.f32.mrb[0].mxu0
        %v592 = vpop.f32.mrb[0].mxu0
        %v593 = vadd.f32 0.0, %v592
        %v594 = vpop.f32.mrb[0].mxu0
        %595 = vmatprep.mubr.bf16.mxu0 0
        %596 = vmatmul.mubr.bf16.gmra.mrb[0].mxu0 %v476
        %v597 = vpop.f32.mrb[0].mxu0
        %v598 = vadd.f32 0.0, %v597
        %v599 = vpop.f32.mrb[0].mxu0
        %v600 = vpop.f32.mrb[0].mxu0
        %v601 = vadd.f32 0.0, %v600
        %v602 = vpop.f32.mrb[0].mxu0
        %603 = vmatprep.mubr.bf16.mxu0 0
        %604 = vmatmul.mubr.bf16.gmra.mrb[0].mxu0 %v479
        %v605 = vpop.f32.mrb[0].mxu0
        %v606 = vadd.f32 0.0, %v605
        %v607 = vpop.f32.mrb[0].mxu0
        %v608 = vpop.f32.mrb[0].mxu0
        %v609 = vadd.f32 0.0, %v608
        %v610 = vpop.f32.mrb[0].mxu0
        %611 = vmatprep.mubr.bf16.mxu0 0
        %612 = vmatmul.mubr.bf16.gmra.mrb[0].mxu0 %v482
        %v613 = vpop.f32.mrb[0].mxu0
        %v614 = vadd.f32 0.0, %v613
        %v615 = vpop.f32.mrb[0].mxu0
        %v616 = vpop.f32.mrb[0].mxu0
        %v617 = vadd.f32 0.0, %v616
        %v618 = vpop.f32.mrb[0].mxu0
        %619 = vmatprep.mubr.bf16.mxu0 0
        %620 = vmatmul.mubr.bf16.gmra.mrb[0].mxu0 %v485
        %v621 = vpop.f32.mrb[0].mxu0
        %v622 = vadd.f32 0.0, %v621
        %v623 = vpop.f32.mrb[0].mxu0
        %v624 = vpop.f32.mrb[0].mxu0
        %v625 = vadd.f32 0.0, %v624
        %v626 = vpop.f32.mrb[0].mxu0
        %627 = vmatprep.mubr.bf16.mxu0 0
        %628 = vmatmul.mubr.bf16.gmra.mrb[0].mxu0 %v488
        %v629 = vpop.f32.mrb[0].mxu0
        %v630 = vadd.f32 0.0, %v629
        %v631 = vpop.f32.mrb[0].mxu0
        %v632 = vpop.f32.mrb[0].mxu0
        %v633 = vadd.f32 0.0, %v632
        %v634 = vpop.f32.mrb[0].mxu0
        %635 = vmatprep.mubr.bf16.mxu0 0
        %636 = vmatmul.mubr.bf16.gmra.mrb[0].mxu0 %v491
        %v637 = vpop.f32.mrb[0].mxu0
        %v638 = vadd.f32 0.0, %v637
        %v639 = vpop.f32.mrb[0].mxu0
        %v640 = vpop.f32.mrb[0].mxu0
        %v641 = vadd.f32 0.0, %v640
        %v642 = vpop.f32.mrb[0].mxu0
        %643 = vmatprep.mubr.bf16.mxu0 0
        %644 = vmatmul.mubr.bf16.gmra.mrb[0].mxu0 %v494
        %v645 = vpop.f32.mrb[0].mxu0
        %v646 = vadd.f32 0.0, %v645
        %v647 = vpop.f32.mrb[0].mxu0
        %v648 = vpop.f32.mrb[0].mxu0
        %v649 = vadd.f32 0.0, %v648
        %v650 = vpop.f32.mrb[0].mxu0
        %651 = vmatprep.mubr.bf16.mxu0 0
        %652 = vmatmul.mubr.bf16.gmra.mrb[0].mxu0 %v497
        %v653 = vpop.f32.mrb[0].mxu0
        %v654 = vadd.f32 0.0, %v653
        %v655 = vpop.f32.mrb[0].mxu0
        %v656 = vpop.f32.mrb[0].mxu0
        %v657 = vadd.f32 0.0, %v656
        %v658 = vpop.f32.mrb[0].mxu0
        %659 = vmatprep.mubr.bf16.mxu0 0
        %660 = vmatmul.mubr.bf16.gmra.mrb[0].mxu0 %v500
        %v661 = vpop.f32.mrb[0].mxu0
        %v662 = vadd.f32 0.0, %v661
        %v663 = vpop.f32.mrb[0].mxu0
        %v664 = vpop.f32.mrb[0].mxu0
        %v665 = vadd.f32 0.0, %v664
        %v666 = vpop.f32.mrb[0].mxu0
        %667 = vmatprep.mubr.bf16.mxu0 0
        %668 = vmatmul.mubr.bf16.gmra.mrb[0].mxu0 %v503
        %v669 = vpop.f32.mrb[0].mxu0
        %v670 = vadd.f32 0.0, %v669
        %v671 = vpop.f32.mrb[0].mxu0
        %v672 = vpop.f32.mrb[0].mxu0
        %v673 = vadd.f32 0.0, %v672
        %v674 = vpop.f32.mrb[0].mxu0
        %675 = vmatprep.mubr.bf16.mxu0 0
        %676 = vmatmul.mubr.bf16.gmra.mrb[0].mxu0 %v506
        %v677 = vpop.f32.mrb[0].mxu0
        %v678 = vadd.f32 0.0, %v677
        %v679 = vpop.f32.mrb[0].mxu0
        %v680 = vpop.f32.mrb[0].mxu0
        %v681 = vadd.f32 0.0, %v680
        %v682 = vpop.f32.mrb[0].mxu0
        %683 = vmatprep.mubr.bf16.mxu0 0
        %684 = vmatmul.mubr.bf16.gmra.mrb[0].mxu0 %v509
        %v685 = vpop.f32.mrb[0].mxu0
        %v686 = vadd.f32 0.0, %v685
        %v687 = vpop.f32.mrb[0].mxu0
        %v688 = vpop.f32.mrb[0].mxu0
        %v689 = vadd.f32 0.0, %v688
        %v690 = vpop.f32.mrb[0].mxu0
        %691 = vdwg.mxu0
        %v692 = vsel %vm456, %v288, 0
        %v694 = vsel %vm456, %v289, 0
        %v696 = vsel %vm456, %v290, 0
        %v698 = vsel %vm456, %v291, 0
        %v700 = vsel %vm456, %v292, 0
        %v702 = vsel %vm456, %v293, 0
        %v704 = vsel %vm456, %v294, 0
        %v706 = vsel %vm456, %v295, 0
        %v708 = vsel %vm456, %v296, 0
        %v710 = vsel %vm456, %v297, 0
        %v712 = vsel %vm456, %v298, 0
        %v714 = vsel %vm456, %v299, 0
        %v716 = vsel %vm456, %v300, 0
        %v718 = vsel %vm456, %v301, 0
        %v720 = vsel %vm456, %v302, 0
        %v722 = vsel %vm456, %v303, 0
        %v724 = vsel %vm456, %v304, 0
        %v726 = vsel %vm456, %v305, 0
        %v729 = vsel %vm511, %v210, 0
        %731 = vmatprep.subr.bf16.mxu0 0
        %732 = vmatpush1.bf16.msra.mxu0 %v729
        %733 = vmatprep.subr.bf16.mxu0 0
        %734 = vmatpush1.bf16.msra.mxu0 0
        %735 = vmatprep.subr.bf16.mxu0 0
        %736 = vmatpush1.bf16.msra.mxu0 0
        %737 = vmatprep.subr.bf16.mxu0 0
        %738 = vmatpush1.bf16.msra.mxu0 0
        %739 = vmatprep.subr.bf16.mxu0 0
        %740 = vmatpush1.bf16.msra.mxu0 0
        %741 = vmatprep.subr.bf16.mxu0 0
        %742 = vmatpush1.bf16.msra.mxu0 0
        %743 = vmatprep.subr.bf16.mxu0 0
        %744 = vmatpush1.bf16.msra.mxu0 0
        %745 = vmatprep.subr.bf16.mxu0 0
        %746 = vmatpush1.bf16.msra.mxu0 0
        %747 = vmatprep.subr.bf16.mxu0 0
        %748 = vmatpush1.bf16.msra.mxu0 0
        %749 = vmatprep.subr.bf16.mxu0 0
        %750 = vmatpush1.bf16.msra.mxu0 0
        %751 = vmatprep.subr.bf16.mxu0 0
        %752 = vmatpush1.bf16.msra.mxu0 0
        %753 = vmatprep.subr.bf16.mxu0 0
        %754 = vmatpush1.bf16.msra.mxu0 0
        %755 = vmatprep.subr.bf16.mxu0 0
        %756 = vmatpush1.bf16.msra.mxu0 0
        %757 = vmatprep.subr.bf16.mxu0 0
        %758 = vmatpush1.bf16.msra.mxu0 0
        %759 = vmatprep.subr.bf16.mxu0 0
        %760 = vmatpush1.bf16.msra.mxu0 0
        %761 = vmatprep.subr.bf16.mxu0 0
        %762 = vmatpush1.bf16.msra.mxu0 0
        %763 = vmatprep.mubr.bf16.mxu0 0
        %764 = vmatmul.mubr.bf16.gmra.mrb[0].mxu0 %v692
        %v765 = vpop.f32.mrb[0].mxu0
        %v766 = vadd.f32 %v550, %v765
        %v767 = vpop.f32.mrb[0].mxu0
        %v768 = vpop.f32.mrb[0].mxu0
        %v769 = vadd.f32 %v553, %v768
        %v770 = vpop.f32.mrb[0].mxu0
        %771 = vmatprep.mubr.bf16.mxu0 0
        %772 = vmatmul.mubr.bf16.gmra.mrb[0].mxu0 %v694
        %v773 = vpop.f32.mrb[0].mxu0
        %v774 = vadd.f32 %v558, %v773
        %v775 = vpop.f32.mrb[0].mxu0
        %v776 = vpop.f32.mrb[0].mxu0
        %v777 = vadd.f32 %v561, %v776
        %v778 = vpop.f32.mrb[0].mxu0
        %779 = vmatprep.mubr.bf16.mxu0 0
        %780 = vmatmul.mubr.bf16.gmra.mrb[0].mxu0 %v696
        %v781 = vpop.f32.mrb[0].mxu0
        %v782 = vadd.f32 %v566, %v781
        %v783 = vpop.f32.mrb[0].mxu0
        %v784 = vpop.f32.mrb[0].mxu0
        %v785 = vadd.f32 %v569, %v784
        %v786 = vpop.f32.mrb[0].mxu0
        %787 = vmatprep.mubr.bf16.mxu0 0
        %788 = vmatmul.mubr.bf16.gmra.mrb[0].mxu0 %v698
        %v789 = vpop.f32.mrb[0].mxu0
        %v790 = vadd.f32 %v574, %v789
        %v791 = vpop.f32.mrb[0].mxu0
        %v792 = vpop.f32.mrb[0].mxu0
        %v793 = vadd.f32 %v577, %v792
        %v794 = vpop.f32.mrb[0].mxu0
        %795 = vmatprep.mubr.bf16.mxu0 0
        %796 = vmatmul.mubr.bf16.gmra.mrb[0].mxu0 %v700
        %v797 = vpop.f32.mrb[0].mxu0
        %v798 = vadd.f32 %v582, %v797
        %v799 = vpop.f32.mrb[0].mxu0
        %v800 = vpop.f32.mrb[0].mxu0
        %v801 = vadd.f32 %v585, %v800
        %v802 = vpop.f32.mrb[0].mxu0
        %803 = vmatprep.mubr.bf16.mxu0 0
        %804 = vmatmul.mubr.bf16.gmra.mrb[0].mxu0 %v702
        %v805 = vpop.f32.mrb[0].mxu0
        %v806 = vadd.f32 %v590, %v805
        %v807 = vpop.f32.mrb[0].mxu0
        %v808 = vpop.f32.mrb[0].mxu0
        %v809 = vadd.f32 %v593, %v808
        %v810 = vpop.f32.mrb[0].mxu0
        %811 = vmatprep.mubr.bf16.mxu0 0
        %812 = vmatmul.mubr.bf16.gmra.mrb[0].mxu0 %v704
        %v813 = vpop.f32.mrb[0].mxu0
        %v814 = vadd.f32 %v598, %v813
        %v815 = vpop.f32.mrb[0].mxu0
        %v816 = vpop.f32.mrb[0].mxu0
        %v817 = vadd.f32 %v601, %v816
        %v818 = vpop.f32.mrb[0].mxu0
        %819 = vmatprep.mubr.bf16.mxu0 0
        %820 = vmatmul.mubr.bf16.gmra.mrb[0].mxu0 %v706
        %v821 = vpop.f32.mrb[0].mxu0
        %v822 = vadd.f32 %v606, %v821
        %v823 = vpop.f32.mrb[0].mxu0
        %v824 = vpop.f32.mrb[0].mxu0
        %v825 = vadd.f32 %v609, %v824
        %v826 = vpop.f32.mrb[0].mxu0
        %827 = vmatprep.mubr.bf16.mxu0 0
        %828 = vmatmul.mubr.bf16.gmra.mrb[0].mxu0 %v708
        %v829 = vpop.f32.mrb[0].mxu0
        %v830 = vadd.f32 %v614, %v829
        %v831 = vpop.f32.mrb[0].mxu0
        %v832 = vpop.f32.mrb[0].mxu0
        %v833 = vadd.f32 %v617, %v832
        %v834 = vpop.f32.mrb[0].mxu0
        %835 = vmatprep.mubr.bf16.mxu0 0
        %836 = vmatmul.mubr.bf16.gmra.mrb[0].mxu0 %v710
        %v837 = vpop.f32.mrb[0].mxu0
        %v838 = vadd.f32 %v622, %v837
        %v839 = vpop.f32.mrb[0].mxu0
        %v840 = vpop.f32.mrb[0].mxu0
        %v841 = vadd.f32 %v625, %v840
        %v842 = vpop.f32.mrb[0].mxu0
        %843 = vmatprep.mubr.bf16.mxu0 0
        %844 = vmatmul.mubr.bf16.gmra.mrb[0].mxu0 %v712
        %v845 = vpop.f32.mrb[0].mxu0
        %v846 = vadd.f32 %v630, %v845
        %v847 = vpop.f32.mrb[0].mxu0
        %v848 = vpop.f32.mrb[0].mxu0
        %v849 = vadd.f32 %v633, %v848
        %v850 = vpop.f32.mrb[0].mxu0
        %851 = vmatprep.mubr.bf16.mxu0 0
        %852 = vmatmul.mubr.bf16.gmra.mrb[0].mxu0 %v714
        %v853 = vpop.f32.mrb[0].mxu0
        %v854 = vadd.f32 %v638, %v853
        %v855 = vpop.f32.mrb[0].mxu0
        %v856 = vpop.f32.mrb[0].mxu0
        %v857 = vadd.f32 %v641, %v856
        %v858 = vpop.f32.mrb[0].mxu0
        %859 = vmatprep.mubr.bf16.mxu0 0
        %860 = vmatmul.mubr.bf16.gmra.mrb[0].mxu0 %v716
        %v861 = vpop.f32.mrb[0].mxu0
        %v862 = vadd.f32 %v646, %v861
        %v863 = vpop.f32.mrb[0].mxu0
        %v864 = vpop.f32.mrb[0].mxu0
        %v865 = vadd.f32 %v649, %v864
        %v866 = vpop.f32.mrb[0].mxu0
        %867 = vmatprep.mubr.bf16.mxu0 0
        %868 = vmatmul.mubr.bf16.gmra.mrb[0].mxu0 %v718
        %v869 = vpop.f32.mrb[0].mxu0
        %v870 = vadd.f32 %v654, %v869
        %v871 = vpop.f32.mrb[0].mxu0
        %v872 = vpop.f32.mrb[0].mxu0
        %v873 = vadd.f32 %v657, %v872
        %v874 = vpop.f32.mrb[0].mxu0
        %875 = vmatprep.mubr.bf16.mxu0 0
        %876 = vmatmul.mubr.bf16.gmra.mrb[0].mxu0 %v720
        %v877 = vpop.f32.mrb[0].mxu0
        %v878 = vadd.f32 %v662, %v877
        %v879 = vpop.f32.mrb[0].mxu0
        %v880 = vpop.f32.mrb[0].mxu0
        %v881 = vadd.f32 %v665, %v880
        %v882 = vpop.f32.mrb[0].mxu0
        %883 = vmatprep.mubr.bf16.mxu0 0
        %884 = vmatmul.mubr.bf16.gmra.mrb[0].mxu0 %v722
        %v885 = vpop.f32.mrb[0].mxu0
        %v886 = vadd.f32 %v670, %v885
        %v887 = vpop.f32.mrb[0].mxu0
        %v888 = vpop.f32.mrb[0].mxu0
        %v889 = vadd.f32 %v673, %v888
        %v890 = vpop.f32.mrb[0].mxu0
        %891 = vmatprep.mubr.bf16.mxu0 0
        %892 = vmatmul.mubr.bf16.gmra.mrb[0].mxu0 %v724
        %v893 = vpop.f32.mrb[0].mxu0
        %v894 = vadd.f32 %v678, %v893
        %v895 = vpop.f32.mrb[0].mxu0
        %v896 = vpop.f32.mrb[0].mxu0
        %v897 = vadd.f32 %v681, %v896
        %v898 = vpop.f32.mrb[0].mxu0
        %899 = vmatprep.mubr.bf16.mxu0 0
        %900 = vmatmul.mubr.bf16.gmra.mrb[0].mxu0 %v726
        %v901 = vpop.f32.mrb[0].mxu0
        %v902 = vadd.f32 %v686, %v901
        %v903 = vpop.f32.mrb[0].mxu0
        %v904 = vpop.f32.mrb[0].mxu0
        %v905 = vadd.f32 %v689, %v904
        %v906 = vpop.f32.mrb[0].mxu0
        %907 = vdwg.mxu0
        %v908 = vld [vmem:[%s167] sm:$0xe]
        %s909 = scalar_lea.vmem %s1, 4
        %v910 = vld [vmem:[%s909] sm:$0x3]
        %v912 = vunpack.c.l.b16 %v908
        %v913 = vpack.c.b16 %v252, %v912
        %vm914 = vcmask 1046528
        %v915 = vrot.slane %v913, 1
        %v916 = vrot.slane %v289, 1
        %v917 = vsel %vm914, %v915, %v916
        %v918 = vrot.slane %v290, 1
        %v919 = vsel %vm914, %v916, %v918
        %v920 = vrot.slane %v291, 1
        %v921 = vsel %vm914, %v918, %v920
        %v922 = vrot.slane %v292, 1
        %v923 = vsel %vm914, %v920, %v922
        %v924 = vrot.slane %v293, 1
        %v925 = vsel %vm914, %v922, %v924
        %v926 = vrot.slane %v294, 1
        %v927 = vsel %vm914, %v924, %v926
        %v928 = vrot.slane %v295, 1
        %v929 = vsel %vm914, %v926, %v928
        %v930 = vrot.slane %v296, 1
        %v931 = vsel %vm914, %v928, %v930
        %v932 = vrot.slane %v297, 1
        %v933 = vsel %vm914, %v930, %v932
        %v934 = vrot.slane %v298, 1
        %v935 = vsel %vm914, %v932, %v934
        %v936 = vrot.slane %v299, 1
        %v937 = vsel %vm914, %v934, %v936
        %v938 = vrot.slane %v300, 1
        %v939 = vsel %vm914, %v936, %v938
        %v940 = vrot.slane %v301, 1
        %v941 = vsel %vm914, %v938, %v940
        %v942 = vrot.slane %v302, 1
        %v943 = vsel %vm914, %v940, %v942
        %v944 = vrot.slane %v303, 1
        %v945 = vsel %vm914, %v942, %v944
        %v946 = vrot.slane %v304, 1
        %v947 = vsel %vm914, %v944, %v946
        %v948 = vrot.slane %v305, 1
        %v949 = vsel %vm914, %v946, %v948
        %v950 = vrot.slane %v306, 1
        %v951 = vsel %vm914, %v948, %v950
        %v953 = vsel %vm456, %v917, 0
        %v956 = vsel %vm456, %v919, 0
        %v959 = vsel %vm456, %v921, 0
        %v962 = vsel %vm456, %v923, 0
        %v965 = vsel %vm456, %v925, 0
        %v968 = vsel %vm456, %v927, 0
        %v971 = vsel %vm456, %v929, 0
        %v974 = vsel %vm456, %v931, 0
        %v977 = vsel %vm456, %v933, 0
        %v980 = vsel %vm456, %v935, 0
        %v983 = vsel %vm456, %v937, 0
        %v986 = vsel %vm456, %v939, 0
        %v989 = vsel %vm456, %v941, 0
        %v992 = vsel %vm456, %v943, 0
        %v995 = vsel %vm456, %v945, 0
        %v998 = vsel %vm456, %v947, 0
        %v1001 = vsel %vm456, %v949, 0
        %v1004 = vsel %vm456, %v951, 0
        %v1007 = vsel %vm511, %v910, 0
        %1009 = vmatprep.subr.bf16.mxu0 0
        %1010 = vmatpush1.bf16.msra.mxu0 %v1007
        %1011 = vmatprep.subr.bf16.mxu0 0
        %1012 = vmatpush1.bf16.msra.mxu0 0
        %1013 = vmatprep.subr.bf16.mxu0 0
        %1014 = vmatpush1.bf16.msra.mxu0 0
        %1015 = vmatprep.subr.bf16.mxu0 0
        %1016 = vmatpush1.bf16.msra.mxu0 0
        %1017 = vmatprep.subr.bf16.mxu0 0
        %1018 = vmatpush1.bf16.msra.mxu0 0
        %1019 = vmatprep.subr.bf16.mxu0 0
        %1020 = vmatpush1.bf16.msra.mxu0 0
        %1021 = vmatprep.subr.bf16.mxu0 0
        %1022 = vmatpush1.bf16.msra.mxu0 0
        %1023 = vmatprep.subr.bf16.mxu0 0
        %1024 = vmatpush1.bf16.msra.mxu0 0
        %1025 = vmatprep.subr.bf16.mxu0 0
        %1026 = vmatpush1.bf16.msra.mxu0 0
        %1027 = vmatprep.subr.bf16.mxu0 0
        %1028 = vmatpush1.bf16.msra.mxu0 0
        %1029 = vmatprep.subr.bf16.mxu0 0
        %1030 = vmatpush1.bf16.msra.mxu0 0
        %1031 = vmatprep.subr.bf16.mxu0 0
        %1032 = vmatpush1.bf16.msra.mxu0 0
        %1033 = vmatprep.subr.bf16.mxu0 0
        %1034 = vmatpush1.bf16.msra.mxu0 0
        %1035 = vmatprep.subr.bf16.mxu0 0
        %1036 = vmatpush1.bf16.msra.mxu0 0
        %1037 = vmatprep.subr.bf16.mxu0 0
        %1038 = vmatpush1.bf16.msra.mxu0 0
        %1039 = vmatprep.subr.bf16.mxu0 0
        %1040 = vmatpush1.bf16.msra.mxu0 0
        %1041 = vmatprep.mubr.bf16.mxu0 0
        %1042 = vmatmul.mubr.bf16.gmra.mrb[0].mxu0 %v953
        %v1043 = vpop.f32.mrb[0].mxu0
        %v1044 = vadd.f32 0.0, %v1043
        %v1045 = vpop.f32.mrb[0].mxu0
        %v1046 = vpop.f32.mrb[0].mxu0
        %v1047 = vadd.f32 0.0, %v1046
        %v1048 = vpop.f32.mrb[0].mxu0
        %1049 = vmatprep.mubr.bf16.mxu0 0
        %1050 = vmatmul.mubr.bf16.gmra.mrb[0].mxu0 %v956
        %v1051 = vpop.f32.mrb[0].mxu0
        %v1052 = vadd.f32 0.0, %v1051
        %v1053 = vpop.f32.mrb[0].mxu0
        %v1054 = vpop.f32.mrb[0].mxu0
        %v1055 = vadd.f32 0.0, %v1054
        %v1056 = vpop.f32.mrb[0].mxu0
        %1057 = vmatprep.mubr.bf16.mxu0 0
        %1058 = vmatmul.mubr.bf16.gmra.mrb[0].mxu0 %v959
        %v1059 = vpop.f32.mrb[0].mxu0
        %v1060 = vadd.f32 0.0, %v1059
        %v1061 = vpop.f32.mrb[0].mxu0
        %v1062 = vpop.f32.mrb[0].mxu0
        %v1063 = vadd.f32 0.0, %v1062
        %v1064 = vpop.f32.mrb[0].mxu0
        %1065 = vmatprep.mubr.bf16.mxu0 0
        %1066 = vmatmul.mubr.bf16.gmra.mrb[0].mxu0 %v962
        %v1067 = vpop.f32.mrb[0].mxu0
        %v1068 = vadd.f32 0.0, %v1067
        %v1069 = vpop.f32.mrb[0].mxu0
        %v1070 = vpop.f32.mrb[0].mxu0
        %v1071 = vadd.f32 0.0, %v1070
        %v1072 = vpop.f32.mrb[0].mxu0
        %1073 = vmatprep.mubr.bf16.mxu0 0
        %1074 = vmatmul.mubr.bf16.gmra.mrb[0].mxu0 %v965
        %v1075 = vpop.f32.mrb[0].mxu0
        %v1076 = vadd.f32 0.0, %v1075
        %v1077 = vpop.f32.mrb[0].mxu0
        %v1078 = vpop.f32.mrb[0].mxu0
        %v1079 = vadd.f32 0.0, %v1078
        %v1080 = vpop.f32.mrb[0].mxu0
        %1081 = vmatprep.mubr.bf16.mxu0 0
        %1082 = vmatmul.mubr.bf16.gmra.mrb[0].mxu0 %v968
        %v1083 = vpop.f32.mrb[0].mxu0
        %v1084 = vadd.f32 0.0, %v1083
        %v1085 = vpop.f32.mrb[0].mxu0
        %v1086 = vpop.f32.mrb[0].mxu0
        %v1087 = vadd.f32 0.0, %v1086
        %v1088 = vpop.f32.mrb[0].mxu0
        %1089 = vmatprep.mubr.bf16.mxu0 0
        %1090 = vmatmul.mubr.bf16.gmra.mrb[0].mxu0 %v971
        %v1091 = vpop.f32.mrb[0].mxu0
        %v1092 = vadd.f32 0.0, %v1091
        %v1093 = vpop.f32.mrb[0].mxu0
        %v1094 = vpop.f32.mrb[0].mxu0
        %v1095 = vadd.f32 0.0, %v1094
        %v1096 = vpop.f32.mrb[0].mxu0
        %1097 = vmatprep.mubr.bf16.mxu0 0
        %1098 = vmatmul.mubr.bf16.gmra.mrb[0].mxu0 %v974
        %v1099 = vpop.f32.mrb[0].mxu0
        %v1100 = vadd.f32 0.0, %v1099
        %v1101 = vpop.f32.mrb[0].mxu0
        %v1102 = vpop.f32.mrb[0].mxu0
        %v1103 = vadd.f32 0.0, %v1102
        %v1104 = vpop.f32.mrb[0].mxu0
        %1105 = vmatprep.mubr.bf16.mxu0 0
        %1106 = vmatmul.mubr.bf16.gmra.mrb[0].mxu0 %v977
        %v1107 = vpop.f32.mrb[0].mxu0
        %v1108 = vadd.f32 0.0, %v1107
        %v1109 = vpop.f32.mrb[0].mxu0
        %v1110 = vpop.f32.mrb[0].mxu0
        %v1111 = vadd.f32 0.0, %v1110
        %v1112 = vpop.f32.mrb[0].mxu0
        %1113 = vmatprep.mubr.bf16.mxu0 0
        %1114 = vmatmul.mubr.bf16.gmra.mrb[0].mxu0 %v980
        %v1115 = vpop.f32.mrb[0].mxu0
        %v1116 = vadd.f32 0.0, %v1115
        %v1117 = vpop.f32.mrb[0].mxu0
        %v1118 = vpop.f32.mrb[0].mxu0
        %v1119 = vadd.f32 0.0, %v1118
        %v1120 = vpop.f32.mrb[0].mxu0
        %1121 = vmatprep.mubr.bf16.mxu0 0
        %1122 = vmatmul.mubr.bf16.gmra.mrb[0].mxu0 %v983
        %v1123 = vpop.f32.mrb[0].mxu0
        %v1124 = vadd.f32 0.0, %v1123
        %v1125 = vpop.f32.mrb[0].mxu0
        %v1126 = vpop.f32.mrb[0].mxu0
        %v1127 = vadd.f32 0.0, %v1126
        %v1128 = vpop.f32.mrb[0].mxu0
        %1129 = vmatprep.mubr.bf16.mxu0 0
        %1130 = vmatmul.mubr.bf16.gmra.mrb[0].mxu0 %v986
        %v1131 = vpop.f32.mrb[0].mxu0
        %v1132 = vadd.f32 0.0, %v1131
        %v1133 = vpop.f32.mrb[0].mxu0
        %v1134 = vpop.f32.mrb[0].mxu0
        %v1135 = vadd.f32 0.0, %v1134
        %v1136 = vpop.f32.mrb[0].mxu0
        %1137 = vmatprep.mubr.bf16.mxu0 0
        %1138 = vmatmul.mubr.bf16.gmra.mrb[0].mxu0 %v989
        %v1139 = vpop.f32.mrb[0].mxu0
        %v1140 = vadd.f32 0.0, %v1139
        %v1141 = vpop.f32.mrb[0].mxu0
        %v1142 = vpop.f32.mrb[0].mxu0
        %v1143 = vadd.f32 0.0, %v1142
        %v1144 = vpop.f32.mrb[0].mxu0
        %1145 = vmatprep.mubr.bf16.mxu0 0
        %1146 = vmatmul.mubr.bf16.gmra.mrb[0].mxu0 %v992
        %v1147 = vpop.f32.mrb[0].mxu0
        %v1148 = vadd.f32 0.0, %v1147
        %v1149 = vpop.f32.mrb[0].mxu0
        %v1150 = vpop.f32.mrb[0].mxu0
        %v1151 = vadd.f32 0.0, %v1150
        %v1152 = vpop.f32.mrb[0].mxu0
        %1153 = vmatprep.mubr.bf16.mxu0 0
        %1154 = vmatmul.mubr.bf16.gmra.mrb[0].mxu0 %v995
        %v1155 = vpop.f32.mrb[0].mxu0
        %v1156 = vadd.f32 0.0, %v1155
        %v1157 = vpop.f32.mrb[0].mxu0
        %v1158 = vpop.f32.mrb[0].mxu0
        %v1159 = vadd.f32 0.0, %v1158
        %v1160 = vpop.f32.mrb[0].mxu0
        %1161 = vmatprep.mubr.bf16.mxu0 0
        %1162 = vmatmul.mubr.bf16.gmra.mrb[0].mxu0 %v998
        %v1163 = vpop.f32.mrb[0].mxu0
        %v1164 = vadd.f32 0.0, %v1163
        %v1165 = vpop.f32.mrb[0].mxu0
        %v1166 = vpop.f32.mrb[0].mxu0
        %v1167 = vadd.f32 0.0, %v1166
        %v1168 = vpop.f32.mrb[0].mxu0
        %1169 = vmatprep.mubr.bf16.mxu0 0
        %1170 = vmatmul.mubr.bf16.gmra.mrb[0].mxu0 %v1001
        %v1171 = vpop.f32.mrb[0].mxu0
        %v1172 = vadd.f32 0.0, %v1171
        %v1173 = vpop.f32.mrb[0].mxu0
        %v1174 = vpop.f32.mrb[0].mxu0
        %v1175 = vadd.f32 0.0, %v1174
        %v1176 = vpop.f32.mrb[0].mxu0
        %1177 = vmatprep.mubr.bf16.mxu0 0
        %1178 = vmatmul.mubr.bf16.gmra.mrb[0].mxu0 %v1004
        %v1179 = vpop.f32.mrb[0].mxu0
        %v1180 = vadd.f32 0.0, %v1179
        %v1181 = vpop.f32.mrb[0].mxu0
        %v1182 = vpop.f32.mrb[0].mxu0
        %v1183 = vadd.f32 0.0, %v1182
        %v1184 = vpop.f32.mrb[0].mxu0
        %1185 = vdwg.mxu0
        %v1186 = vadd.f32 %v766, %v1044
        %v1187 = vadd.f32 %v769, %v1047
        %v1188 = vadd.f32 %v774, %v1052
        %v1189 = vadd.f32 %v777, %v1055
        %v1190 = vadd.f32 %v782, %v1060
        %v1191 = vadd.f32 %v785, %v1063
        %v1192 = vadd.f32 %v790, %v1068
        %v1193 = vadd.f32 %v793, %v1071
        %v1194 = vadd.f32 %v798, %v1076
        %v1195 = vadd.f32 %v801, %v1079
        %v1196 = vadd.f32 %v806, %v1084
        %v1197 = vadd.f32 %v809, %v1087
        %v1198 = vadd.f32 %v814, %v1092
        %v1199 = vadd.f32 %v817, %v1095
        %v1200 = vadd.f32 %v822, %v1100
        %v1201 = vadd.f32 %v825, %v1103
        %v1202 = vadd.f32 %v830, %v1108
        %v1203 = vadd.f32 %v833, %v1111
        %v1204 = vadd.f32 %v838, %v1116
        %v1205 = vadd.f32 %v841, %v1119
        %v1206 = vadd.f32 %v846, %v1124
        %v1207 = vadd.f32 %v849, %v1127
        %v1208 = vadd.f32 %v854, %v1132
        %v1209 = vadd.f32 %v857, %v1135
        %v1210 = vadd.f32 %v862, %v1140
        %v1211 = vadd.f32 %v865, %v1143
        %v1212 = vadd.f32 %v870, %v1148
        %v1213 = vadd.f32 %v873, %v1151
        %v1214 = vadd.f32 %v878, %v1156
        %v1215 = vadd.f32 %v881, %v1159
        %v1216 = vadd.f32 %v886, %v1164
        %v1217 = vadd.f32 %v889, %v1167
        %v1218 = vadd.f32 %v894, %v1172
        %v1219 = vadd.f32 %v897, %v1175
        %v1220 = vadd.f32 %v902, %v1180
        %v1221 = vadd.f32 %v905, %v1183
        %v1222 = vld [vmem:[%s167 + $0x8] sm:$0xe]
        %v1223 = vld [vmem:[%s167 + $0xc] sm:$0xf]
        %v1224 = vld [vmem:[%s167 + $0x10] sm:$0xf]
        %v1225 = vld [vmem:[%s167 + $0x14] sm:$0xf]
        %v1226 = vld [vmem:[%s167 + $0x18] sm:$0xf]
        %v1227 = vld [vmem:[%s167 + $0x1c] sm:$0xf]
        %v1228 = vld [vmem:[%s167 + $0x20] sm:$0xf]
        %v1229 = vld [vmem:[%s167 + $0x24] sm:$0xf]
        %v1230 = vld [vmem:[%s167 + $0x28] sm:$0xf]
        %v1231 = vld [vmem:[%s167 + $0x2c] sm:$0xf]
        %v1232 = vld [vmem:[%s167 + $0x30] sm:$0xf]
        %v1233 = vld [vmem:[%s167 + $0x34] sm:$0xf]
        %v1234 = vld [vmem:[%s167 + $0x38] sm:$0xf]
        %v1235 = vld [vmem:[%s167 + $0x3c] sm:$0xf]
        %v1236 = vld [vmem:[%s167 + $0x40] sm:$0xf]
        %v1237 = vld [vmem:[%s167 + $0x44] sm:$0xf]
        %v1238 = vld [vmem:[%s167 + $0x48] sm:$0xf]
        %v1239 = vld [vmem:[%s167 + $0x4c] sm:$0xf]
        %v1240 = vld [vmem:[%s167 + $0x50] sm:$0xf]
        %v1241 = vld [vmem:[%s167 + $0x54] sm:$0xf]
        %v1242 = vld [vmem:[%s167 + $0x58] sm:$0xf]
        %v1243 = vld [vmem:[%s167 + $0x5c] sm:$0xf]
        %v1244 = vld [vmem:[%s167 + $0x60] sm:$0xf]
        %v1245 = vld [vmem:[%s167 + $0x64] sm:$0xf]
        %v1246 = vld [vmem:[%s167 + $0x68] sm:$0xf]
        %v1247 = vld [vmem:[%s167 + $0x6c] sm:$0xf]
        %v1248 = vld [vmem:[%s167 + $0x70] sm:$0xf]
        %v1249 = vld [vmem:[%s167 + $0x74] sm:$0xf]
        %v1250 = vld [vmem:[%s167 + $0x78] sm:$0xf]
        %v1251 = vld [vmem:[%s167 + $0x7c] sm:$0xf]
        %v1252 = vld [vmem:[%s167 + $0x80] sm:$0xf]
        %v1253 = vld [vmem:[%s167 + $0x84] sm:$0xf]
        %v1254 = vld [vmem:[%s167 + $0x88] sm:$0xf]
        %v1255 = vld [vmem:[%s167 + $0x8c] sm:$0xf]
        %v1256 = vld [vmem:[%s167 + $0x90] sm:$0xf]
        %v1257 = vld [vmem:[%s167 + $0x94] sm:$0xf]
        %v1258 = vld [vmem:[%s167 + $0x98] sm:$0x1]
        %s1259 = scalar_lea.vmem %s1, 6
        %v1260 = vld [vmem:[%s1259] sm:$0x3]
        %v1298 = vunpack.c.l.b16 %v1222
        %v1299 = vunpack.c.l.b16 %v1223
        %v1300 = vunpack.c.l.b16 %v1224
        %v1301 = vunpack.c.l.b16 %v1225
        %v1302 = vunpack.c.l.b16 %v1226
        %v1303 = vunpack.c.l.b16 %v1227
        %v1304 = vunpack.c.l.b16 %v1228
        %v1305 = vunpack.c.l.b16 %v1229
        %v1306 = vunpack.c.l.b16 %v1230
        %v1307 = vunpack.c.l.b16 %v1231
        %v1308 = vunpack.c.l.b16 %v1232
        %v1309 = vunpack.c.l.b16 %v1233
        %v1310 = vunpack.c.l.b16 %v1234
        %v1311 = vunpack.c.l.b16 %v1235
        %v1312 = vunpack.c.l.b16 %v1236
        %v1313 = vunpack.c.l.b16 %v1237
        %v1314 = vunpack.c.l.b16 %v1238
        %v1315 = vunpack.c.l.b16 %v1239
        %v1316 = vunpack.c.l.b16 %v1240
        %v1317 = vunpack.c.l.b16 %v1241
        %v1318 = vunpack.c.l.b16 %v1242
        %v1319 = vunpack.c.l.b16 %v1243
        %v1320 = vunpack.c.l.b16 %v1244
        %v1321 = vunpack.c.l.b16 %v1245
        %v1322 = vunpack.c.l.b16 %v1246
        %v1323 = vunpack.c.l.b16 %v1247
        %v1324 = vunpack.c.l.b16 %v1248
        %v1325 = vunpack.c.l.b16 %v1249
        %v1326 = vunpack.c.l.b16 %v1250
        %v1327 = vunpack.c.l.b16 %v1251
        %v1328 = vunpack.c.l.b16 %v1252
        %v1329 = vunpack.c.l.b16 %v1253
        %v1330 = vunpack.c.l.b16 %v1254
        %v1331 = vunpack.c.l.b16 %v1255
        %v1332 = vunpack.c.l.b16 %v1256
        %v1333 = vunpack.c.l.b16 %v1257
        %v1334 = vunpack.c.l.b16 %v1258
        %v1335 = vpack.c.b16 %v1299, %v1298
        %v1336 = vpack.c.b16 %v1301, %v1300
        %v1337 = vpack.c.b16 %v1303, %v1302
        %v1338 = vpack.c.b16 %v1305, %v1304
        %v1339 = vpack.c.b16 %v1307, %v1306
        %v1340 = vpack.c.b16 %v1309, %v1308
        %v1341 = vpack.c.b16 %v1311, %v1310
        %v1342 = vpack.c.b16 %v1313, %v1312
        %v1343 = vpack.c.b16 %v1315, %v1314
        %v1344 = vpack.c.b16 %v1317, %v1316
        %v1345 = vpack.c.b16 %v1319, %v1318
        %v1346 = vpack.c.b16 %v1321, %v1320
        %v1347 = vpack.c.b16 %v1323, %v1322
        %v1348 = vpack.c.b16 %v1325, %v1324
        %v1349 = vpack.c.b16 %v1327, %v1326
        %v1350 = vpack.c.b16 %v1329, %v1328
        %v1351 = vpack.c.b16 %v1331, %v1330
        %v1352 = vpack.c.b16 %v1333, %v1332
        %v1353 = vpack.c.b16 %v1334, %v1334
        %v1354 = vrot.slane %v1335, 1
        %v1355 = vrot.slane %v1336, 1
        %v1356 = vsel %vm914, %v1354, %v1355
        %v1357 = vrot.slane %v1337, 1
        %v1358 = vsel %vm914, %v1355, %v1357
        %v1359 = vrot.slane %v1338, 1
        %v1360 = vsel %vm914, %v1357, %v1359
        %v1361 = vrot.slane %v1339, 1
        %v1362 = vsel %vm914, %v1359, %v1361
        %v1363 = vrot.slane %v1340, 1
        %v1364 = vsel %vm914, %v1361, %v1363
        %v1365 = vrot.slane %v1341, 1
        %v1366 = vsel %vm914, %v1363, %v1365
        %v1367 = vrot.slane %v1342, 1
        %v1368 = vsel %vm914, %v1365, %v1367
        %v1369 = vrot.slane %v1343, 1
        %v1370 = vsel %vm914, %v1367, %v1369
        %v1371 = vrot.slane %v1344, 1
        %v1372 = vsel %vm914, %v1369, %v1371
        %v1373 = vrot.slane %v1345, 1
        %v1374 = vsel %vm914, %v1371, %v1373
        %v1375 = vrot.slane %v1346, 1
        %v1376 = vsel %vm914, %v1373, %v1375
        %v1377 = vrot.slane %v1347, 1
        %v1378 = vsel %vm914, %v1375, %v1377
        %v1379 = vrot.slane %v1348, 1
        %v1380 = vsel %vm914, %v1377, %v1379
        %v1381 = vrot.slane %v1349, 1
        %v1382 = vsel %vm914, %v1379, %v1381
        %v1383 = vrot.slane %v1350, 1
        %v1384 = vsel %vm914, %v1381, %v1383
        %v1385 = vrot.slane %v1351, 1
        %v1386 = vsel %vm914, %v1383, %v1385
        %v1387 = vrot.slane %v1352, 1
        %v1388 = vsel %vm914, %v1385, %v1387
        %v1389 = vrot.slane %v1353, 1
        %v1390 = vsel %vm914, %v1387, %v1389
        %v1392 = vsel %vm456, %v1356, 0
        %v1395 = vsel %vm456, %v1358, 0
        %v1398 = vsel %vm456, %v1360, 0
        %v1401 = vsel %vm456, %v1362, 0
        %v1404 = vsel %vm456, %v1364, 0
        %v1407 = vsel %vm456, %v1366, 0
        %v1410 = vsel %vm456, %v1368, 0
        %v1413 = vsel %vm456, %v1370, 0
        %v1416 = vsel %vm456, %v1372, 0
        %v1419 = vsel %vm456, %v1374, 0
        %v1422 = vsel %vm456, %v1376, 0
        %v1425 = vsel %vm456, %v1378, 0
        %v1428 = vsel %vm456, %v1380, 0
        %v1431 = vsel %vm456, %v1382, 0
        %v1434 = vsel %vm456, %v1384, 0
        %v1437 = vsel %vm456, %v1386, 0
        %v1440 = vsel %vm456, %v1388, 0
        %v1443 = vsel %vm456, %v1390, 0
        %v1446 = vsel %vm511, %v1260, 0
        %1448 = vmatprep.subr.bf16.mxu0 0
        %1449 = vmatpush1.bf16.msra.mxu0 %v1446
        %1450 = vmatprep.subr.bf16.mxu0 0
        %1451 = vmatpush1.bf16.msra.mxu0 0
        %1452 = vmatprep.subr.bf16.mxu0 0
        %1453 = vmatpush1.bf16.msra.mxu0 0
        %1454 = vmatprep.subr.bf16.mxu0 0
        %1455 = vmatpush1.bf16.msra.mxu0 0
        %1456 = vmatprep.subr.bf16.mxu0 0
        %1457 = vmatpush1.bf16.msra.mxu0 0
        %1458 = vmatprep.subr.bf16.mxu0 0
        %1459 = vmatpush1.bf16.msra.mxu0 0
        %1460 = vmatprep.subr.bf16.mxu0 0
        %1461 = vmatpush1.bf16.msra.mxu0 0
        %1462 = vmatprep.subr.bf16.mxu0 0
        %1463 = vmatpush1.bf16.msra.mxu0 0
        %1464 = vmatprep.subr.bf16.mxu0 0
        %1465 = vmatpush1.bf16.msra.mxu0 0
        %1466 = vmatprep.subr.bf16.mxu0 0
        %1467 = vmatpush1.bf16.msra.mxu0 0
        %1468 = vmatprep.subr.bf16.mxu0 0
        %1469 = vmatpush1.bf16.msra.mxu0 0
        %1470 = vmatprep.subr.bf16.mxu0 0
        %1471 = vmatpush1.bf16.msra.mxu0 0
        %1472 = vmatprep.subr.bf16.mxu0 0
        %1473 = vmatpush1.bf16.msra.mxu0 0
        %1474 = vmatprep.subr.bf16.mxu0 0
        %1475 = vmatpush1.bf16.msra.mxu0 0
        %1476 = vmatprep.subr.bf16.mxu0 0
        %1477 = vmatpush1.bf16.msra.mxu0 0
        %1478 = vmatprep.subr.bf16.mxu0 0
        %1479 = vmatpush1.bf16.msra.mxu0 0
        %1480 = vmatprep.mubr.bf16.mxu0 0
        %1481 = vmatmul.mubr.bf16.gmra.mrb[0].mxu0 %v1392
        %v1482 = vpop.f32.mrb[0].mxu0
        %v1483 = vadd.f32 0.0, %v1482
        %v1484 = vpop.f32.mrb[0].mxu0
        %v1485 = vpop.f32.mrb[0].mxu0
        %v1486 = vadd.f32 0.0, %v1485
        %v1487 = vpop.f32.mrb[0].mxu0
        %1488 = vmatprep.mubr.bf16.mxu0 0
        %1489 = vmatmul.mubr.bf16.gmra.mrb[0].mxu0 %v1395
        %v1490 = vpop.f32.mrb[0].mxu0
        %v1491 = vadd.f32 0.0, %v1490
        %v1492 = vpop.f32.mrb[0].mxu0
        %v1493 = vpop.f32.mrb[0].mxu0
        %v1494 = vadd.f32 0.0, %v1493
        %v1495 = vpop.f32.mrb[0].mxu0
        %1496 = vmatprep.mubr.bf16.mxu0 0
        %1497 = vmatmul.mubr.bf16.gmra.mrb[0].mxu0 %v1398
        %v1498 = vpop.f32.mrb[0].mxu0
        %v1499 = vadd.f32 0.0, %v1498
        %v1500 = vpop.f32.mrb[0].mxu0
        %v1501 = vpop.f32.mrb[0].mxu0
        %v1502 = vadd.f32 0.0, %v1501
        %v1503 = vpop.f32.mrb[0].mxu0
        %1504 = vmatprep.mubr.bf16.mxu0 0
        %1505 = vmatmul.mubr.bf16.gmra.mrb[0].mxu0 %v1401
        %v1506 = vpop.f32.mrb[0].mxu0
        %v1507 = vadd.f32 0.0, %v1506
        %v1508 = vpop.f32.mrb[0].mxu0
        %v1509 = vpop.f32.mrb[0].mxu0
        %v1510 = vadd.f32 0.0, %v1509
        %v1511 = vpop.f32.mrb[0].mxu0
        %1512 = vmatprep.mubr.bf16.mxu0 0
        %1513 = vmatmul.mubr.bf16.gmra.mrb[0].mxu0 %v1404
        %v1514 = vpop.f32.mrb[0].mxu0
        %v1515 = vadd.f32 0.0, %v1514
        %v1516 = vpop.f32.mrb[0].mxu0
        %v1517 = vpop.f32.mrb[0].mxu0
        %v1518 = vadd.f32 0.0, %v1517
        %v1519 = vpop.f32.mrb[0].mxu0
        %1520 = vmatprep.mubr.bf16.mxu0 0
        %1521 = vmatmul.mubr.bf16.gmra.mrb[0].mxu0 %v1407
        %v1522 = vpop.f32.mrb[0].mxu0
        %v1523 = vadd.f32 0.0, %v1522
        %v1524 = vpop.f32.mrb[0].mxu0
        %v1525 = vpop.f32.mrb[0].mxu0
        %v1526 = vadd.f32 0.0, %v1525
        %v1527 = vpop.f32.mrb[0].mxu0
        %1528 = vmatprep.mubr.bf16.mxu0 0
        %1529 = vmatmul.mubr.bf16.gmra.mrb[0].mxu0 %v1410
        %v1530 = vpop.f32.mrb[0].mxu0
        %v1531 = vadd.f32 0.0, %v1530
        %v1532 = vpop.f32.mrb[0].mxu0
        %v1533 = vpop.f32.mrb[0].mxu0
        %v1534 = vadd.f32 0.0, %v1533
        %v1535 = vpop.f32.mrb[0].mxu0
        %1536 = vmatprep.mubr.bf16.mxu0 0
        %1537 = vmatmul.mubr.bf16.gmra.mrb[0].mxu0 %v1413
        %v1538 = vpop.f32.mrb[0].mxu0
        %v1539 = vadd.f32 0.0, %v1538
        %v1540 = vpop.f32.mrb[0].mxu0
        %v1541 = vpop.f32.mrb[0].mxu0
        %v1542 = vadd.f32 0.0, %v1541
        %v1543 = vpop.f32.mrb[0].mxu0
        %1544 = vmatprep.mubr.bf16.mxu0 0
        %1545 = vmatmul.mubr.bf16.gmra.mrb[0].mxu0 %v1416
        %v1546 = vpop.f32.mrb[0].mxu0
        %v1547 = vadd.f32 0.0, %v1546
        %v1548 = vpop.f32.mrb[0].mxu0
        %v1549 = vpop.f32.mrb[0].mxu0
        %v1550 = vadd.f32 0.0, %v1549
        %v1551 = vpop.f32.mrb[0].mxu0
        %1552 = vmatprep.mubr.bf16.mxu0 0
        %1553 = vmatmul.mubr.bf16.gmra.mrb[0].mxu0 %v1419
        %v1554 = vpop.f32.mrb[0].mxu0
        %v1555 = vadd.f32 0.0, %v1554
        %v1556 = vpop.f32.mrb[0].mxu0
        %v1557 = vpop.f32.mrb[0].mxu0
        %v1558 = vadd.f32 0.0, %v1557
        %v1559 = vpop.f32.mrb[0].mxu0
        %1560 = vmatprep.mubr.bf16.mxu0 0
        %1561 = vmatmul.mubr.bf16.gmra.mrb[0].mxu0 %v1422
        %v1562 = vpop.f32.mrb[0].mxu0
        %v1563 = vadd.f32 0.0, %v1562
        %v1564 = vpop.f32.mrb[0].mxu0
        %v1565 = vpop.f32.mrb[0].mxu0
        %v1566 = vadd.f32 0.0, %v1565
        %v1567 = vpop.f32.mrb[0].mxu0
        %1568 = vmatprep.mubr.bf16.mxu0 0
        %1569 = vmatmul.mubr.bf16.gmra.mrb[0].mxu0 %v1425
        %v1570 = vpop.f32.mrb[0].mxu0
        %v1571 = vadd.f32 0.0, %v1570
        %v1572 = vpop.f32.mrb[0].mxu0
        %v1573 = vpop.f32.mrb[0].mxu0
        %v1574 = vadd.f32 0.0, %v1573
        %v1575 = vpop.f32.mrb[0].mxu0
        %1576 = vmatprep.mubr.bf16.mxu0 0
        %1577 = vmatmul.mubr.bf16.gmra.mrb[0].mxu0 %v1428
        %v1578 = vpop.f32.mrb[0].mxu0
        %v1579 = vadd.f32 0.0, %v1578
        %v1580 = vpop.f32.mrb[0].mxu0
        %v1581 = vpop.f32.mrb[0].mxu0
        %v1582 = vadd.f32 0.0, %v1581
        %v1583 = vpop.f32.mrb[0].mxu0
        %1584 = vmatprep.mubr.bf16.mxu0 0
        %1585 = vmatmul.mubr.bf16.gmra.mrb[0].mxu0 %v1431
        %v1586 = vpop.f32.mrb[0].mxu0
        %v1587 = vadd.f32 0.0, %v1586
        %v1588 = vpop.f32.mrb[0].mxu0
        %v1589 = vpop.f32.mrb[0].mxu0
        %v1590 = vadd.f32 0.0, %v1589
        %v1591 = vpop.f32.mrb[0].mxu0
        %1592 = vmatprep.mubr.bf16.mxu0 0
        %1593 = vmatmul.mubr.bf16.gmra.mrb[0].mxu0 %v1434
        %v1594 = vpop.f32.mrb[0].mxu0
        %v1595 = vadd.f32 0.0, %v1594
        %v1596 = vpop.f32.mrb[0].mxu0
        %v1597 = vpop.f32.mrb[0].mxu0
        %v1598 = vadd.f32 0.0, %v1597
        %v1599 = vpop.f32.mrb[0].mxu0
        %1600 = vmatprep.mubr.bf16.mxu0 0
        %1601 = vmatmul.mubr.bf16.gmra.mrb[0].mxu0 %v1437
        %v1602 = vpop.f32.mrb[0].mxu0
        %v1603 = vadd.f32 0.0, %v1602
        %v1604 = vpop.f32.mrb[0].mxu0
        %v1605 = vpop.f32.mrb[0].mxu0
        %v1606 = vadd.f32 0.0, %v1605
        %v1607 = vpop.f32.mrb[0].mxu0
        %1608 = vmatprep.mubr.bf16.mxu0 0
        %1609 = vmatmul.mubr.bf16.gmra.mrb[0].mxu0 %v1440
        %v1610 = vpop.f32.mrb[0].mxu0
        %v1611 = vadd.f32 0.0, %v1610
        %v1612 = vpop.f32.mrb[0].mxu0
        %v1613 = vpop.f32.mrb[0].mxu0
        %v1614 = vadd.f32 0.0, %v1613
        %v1615 = vpop.f32.mrb[0].mxu0
        %1616 = vmatprep.mubr.bf16.mxu0 0
        %1617 = vmatmul.mubr.bf16.gmra.mrb[0].mxu0 %v1443
        %v1618 = vpop.f32.mrb[0].mxu0
        %v1619 = vadd.f32 0.0, %v1618
        %v1620 = vpop.f32.mrb[0].mxu0
        %v1621 = vpop.f32.mrb[0].mxu0
        %v1622 = vadd.f32 0.0, %v1621
        %v1623 = vpop.f32.mrb[0].mxu0
        %1624 = vdwg.mxu0
        %v1625 = vadd.f32 %v1186, %v1483
        %v1626 = vadd.f32 %v1187, %v1486
        %v1627 = vadd.f32 %v1188, %v1491
        %v1628 = vadd.f32 %v1189, %v1494
        %v1629 = vadd.f32 %v1190, %v1499
        %v1630 = vadd.f32 %v1191, %v1502
        %v1631 = vadd.f32 %v1192, %v1507
        %v1632 = vadd.f32 %v1193, %v1510
        %v1633 = vadd.f32 %v1194, %v1515
        %v1634 = vadd.f32 %v1195, %v1518
        %v1635 = vadd.f32 %v1196, %v1523
        %v1636 = vadd.f32 %v1197, %v1526
        %v1637 = vadd.f32 %v1198, %v1531
        %v1638 = vadd.f32 %v1199, %v1534
        %v1639 = vadd.f32 %v1200, %v1539
        %v1640 = vadd.f32 %v1201, %v1542
        %v1641 = vadd.f32 %v1202, %v1547
        %v1642 = vadd.f32 %v1203, %v1550
        %v1643 = vadd.f32 %v1204, %v1555
        %v1644 = vadd.f32 %v1205, %v1558
        %v1645 = vadd.f32 %v1206, %v1563
        %v1646 = vadd.f32 %v1207, %v1566
        %v1647 = vadd.f32 %v1208, %v1571
        %v1648 = vadd.f32 %v1209, %v1574
        %v1649 = vadd.f32 %v1210, %v1579
        %v1650 = vadd.f32 %v1211, %v1582
        %v1651 = vadd.f32 %v1212, %v1587
        %v1652 = vadd.f32 %v1213, %v1590
        %v1653 = vadd.f32 %v1214, %v1595
        %v1654 = vadd.f32 %v1215, %v1598
        %v1655 = vadd.f32 %v1216, %v1603
        %v1656 = vadd.f32 %v1217, %v1606
        %v1657 = vadd.f32 %v1218, %v1611
        %v1658 = vadd.f32 %v1219, %v1614
        %v1659 = vadd.f32 %v1220, %v1619
        %v1660 = vadd.f32 %v1221, %v1622
        %v1661 = vld [vmem:[%s167 + $0x98] sm:$0x3]
        %s1662 = scalar_lea.vmem %s1, 8
        %v1663 = vld [vmem:[%s1662] sm:$0x3]
        %v1665 = vunpack.c.l.b16 %v1661
        %v1666 = vpack.c.b16 %v1665, %v1665
        %vm1667 = vsmask.f32 6400
        %v1669 = vshrl.u32 %v1335, 16
        %v1671 = vrot.slane %v1669, 1
        %v1672 = vshll.u32 %v1335, 16
        %v1674 = vrot.slane %v1672, 2
        %v1675 = vor.u32 %v1671, %v1674
        %v1677 = vshrl.u32 %v1336, 16
        %v1679 = vrot.slane %v1677, 1
        %v1680 = vshll.u32 %v1336, 16
        %v1682 = vrot.slane %v1680, 2
        %v1683 = vor.u32 %v1679, %v1682
        %v1684 = vsel %vm1667, %v1675, %v1683
        %v1686 = vshrl.u32 %v1337, 16
        %v1688 = vrot.slane %v1686, 1
        %v1689 = vshll.u32 %v1337, 16
        %v1691 = vrot.slane %v1689, 2
        %v1692 = vor.u32 %v1688, %v1691
        %v1693 = vsel %vm1667, %v1683, %v1692
        %v1695 = vshrl.u32 %v1338, 16
        %v1697 = vrot.slane %v1695, 1
        %v1698 = vshll.u32 %v1338, 16
        %v1700 = vrot.slane %v1698, 2
        %v1701 = vor.u32 %v1697, %v1700
        %v1702 = vsel %vm1667, %v1692, %v1701
        %v1704 = vshrl.u32 %v1339, 16
        %v1706 = vrot.slane %v1704, 1
        %v1707 = vshll.u32 %v1339, 16
        %v1709 = vrot.slane %v1707, 2
        %v1710 = vor.u32 %v1706, %v1709
        %v1711 = vsel %vm1667, %v1701, %v1710
        %v1713 = vshrl.u32 %v1340, 16
        %v1715 = vrot.slane %v1713, 1
        %v1716 = vshll.u32 %v1340, 16
        %v1718 = vrot.slane %v1716, 2
        %v1719 = vor.u32 %v1715, %v1718
        %v1720 = vsel %vm1667, %v1710, %v1719
        %v1722 = vshrl.u32 %v1341, 16
        %v1724 = vrot.slane %v1722, 1
        %v1725 = vshll.u32 %v1341, 16
        %v1727 = vrot.slane %v1725, 2
        %v1728 = vor.u32 %v1724, %v1727
        %v1729 = vsel %vm1667, %v1719, %v1728
        %v1731 = vshrl.u32 %v1342, 16
        %v1733 = vrot.slane %v1731, 1
        %v1734 = vshll.u32 %v1342, 16
        %v1736 = vrot.slane %v1734, 2
        %v1737 = vor.u32 %v1733, %v1736
        %v1738 = vsel %vm1667, %v1728, %v1737
        %v1740 = vshrl.u32 %v1343, 16
        %v1742 = vrot.slane %v1740, 1
        %v1743 = vshll.u32 %v1343, 16
        %v1745 = vrot.slane %v1743, 2
        %v1746 = vor.u32 %v1742, %v1745
        %v1747 = vsel %vm1667, %v1737, %v1746
        %v1749 = vshrl.u32 %v1344, 16
        %v1751 = vrot.slane %v1749, 1
        %v1752 = vshll.u32 %v1344, 16
        %v1754 = vrot.slane %v1752, 2
        %v1755 = vor.u32 %v1751, %v1754
        %v1756 = vsel %vm1667, %v1746, %v1755
        %v1758 = vshrl.u32 %v1345, 16
        %v1760 = vrot.slane %v1758, 1
        %v1761 = vshll.u32 %v1345, 16
        %v1763 = vrot.slane %v1761, 2
        %v1764 = vor.u32 %v1760, %v1763
        %v1765 = vsel %vm1667, %v1755, %v1764
        %v1767 = vshrl.u32 %v1346, 16
        %v1769 = vrot.slane %v1767, 1
        %v1770 = vshll.u32 %v1346, 16
        %v1772 = vrot.slane %v1770, 2
        %v1773 = vor.u32 %v1769, %v1772
        %v1774 = vsel %vm1667, %v1764, %v1773
        %v1776 = vshrl.u32 %v1347, 16
        %v1778 = vrot.slane %v1776, 1
        %v1779 = vshll.u32 %v1347, 16
        %v1781 = vrot.slane %v1779, 2
        %v1782 = vor.u32 %v1778, %v1781
        %v1783 = vsel %vm1667, %v1773, %v1782
        %v1785 = vshrl.u32 %v1348, 16
        %v1787 = vrot.slane %v1785, 1
        %v1788 = vshll.u32 %v1348, 16
        %v1790 = vrot.slane %v1788, 2
        %v1791 = vor.u32 %v1787, %v1790
        %v1792 = vsel %vm1667, %v1782, %v1791
        %v1794 = vshrl.u32 %v1349, 16
        %v1796 = vrot.slane %v1794, 1
        %v1797 = vshll.u32 %v1349, 16
        %v1799 = vrot.slane %v1797, 2
        %v1800 = vor.u32 %v1796, %v1799
        %v1801 = vsel %vm1667, %v1791, %v1800
        %v1803 = vshrl.u32 %v1350, 16
        %v1805 = vrot.slane %v1803, 1
        %v1806 = vshll.u32 %v1350, 16
        %v1808 = vrot.slane %v1806, 2
        %v1809 = vor.u32 %v1805, %v1808
        %v1810 = vsel %vm1667, %v1800, %v1809
        %v1812 = vshrl.u32 %v1351, 16
        %v1814 = vrot.slane %v1812, 1
        %v1815 = vshll.u32 %v1351, 16
        %v1817 = vrot.slane %v1815, 2
        %v1818 = vor.u32 %v1814, %v1817
        %v1819 = vsel %vm1667, %v1809, %v1818
        %v1821 = vshrl.u32 %v1352, 16
        %v1823 = vrot.slane %v1821, 1
        %v1824 = vshll.u32 %v1352, 16
        %v1826 = vrot.slane %v1824, 2
        %v1827 = vor.u32 %v1823, %v1826
        %v1828 = vsel %vm1667, %v1818, %v1827
        %v1830 = vshrl.u32 %v1666, 16
        %v1832 = vrot.slane %v1830, 1
        %v1833 = vshll.u32 %v1666, 16
        %v1835 = vrot.slane %v1833, 2
        %v1836 = vor.u32 %v1832, %v1835
        %v1837 = vsel %vm1667, %v1827, %v1836
        %v1839 = vsel %vm456, %v1684, 0
        %v1842 = vsel %vm456, %v1693, 0
        %v1845 = vsel %vm456, %v1702, 0
        %v1848 = vsel %vm456, %v1711, 0
        %v1851 = vsel %vm456, %v1720, 0
        %v1854 = vsel %vm456, %v1729, 0
        %v1857 = vsel %vm456, %v1738, 0
        %v1860 = vsel %vm456, %v1747, 0
        %v1863 = vsel %vm456, %v1756, 0
        %v1866 = vsel %vm456, %v1765, 0
        %v1869 = vsel %vm456, %v1774, 0
        %v1872 = vsel %vm456, %v1783, 0
        %v1875 = vsel %vm456, %v1792, 0
        %v1878 = vsel %vm456, %v1801, 0
        %v1881 = vsel %vm456, %v1810, 0
        %v1884 = vsel %vm456, %v1819, 0
        %v1887 = vsel %vm456, %v1828, 0
        %v1890 = vsel %vm456, %v1837, 0
        %v1893 = vsel %vm511, %v1663, 0
        %1895 = vmatprep.subr.bf16.mxu0 0
        %1896 = vmatpush1.bf16.msra.mxu0 %v1893
        %1897 = vmatprep.subr.bf16.mxu0 0
        %1898 = vmatpush1.bf16.msra.mxu0 0
        %1899 = vmatprep.subr.bf16.mxu0 0
        %1900 = vmatpush1.bf16.msra.mxu0 0
        %1901 = vmatprep.subr.bf16.mxu0 0
        %1902 = vmatpush1.bf16.msra.mxu0 0
        %1903 = vmatprep.subr.bf16.mxu0 0
        %1904 = vmatpush1.bf16.msra.mxu0 0
        %1905 = vmatprep.subr.bf16.mxu0 0
        %1906 = vmatpush1.bf16.msra.mxu0 0
        %1907 = vmatprep.subr.bf16.mxu0 0
        %1908 = vmatpush1.bf16.msra.mxu0 0
        %1909 = vmatprep.subr.bf16.mxu0 0
        %1910 = vmatpush1.bf16.msra.mxu0 0
        %1911 = vmatprep.subr.bf16.mxu0 0
        %1912 = vmatpush1.bf16.msra.mxu0 0
        %1913 = vmatprep.subr.bf16.mxu0 0
        %1914 = vmatpush1.bf16.msra.mxu0 0
        %1915 = vmatprep.subr.bf16.mxu0 0
        %1916 = vmatpush1.bf16.msra.mxu0 0
        %1917 = vmatprep.subr.bf16.mxu0 0
        %1918 = vmatpush1.bf16.msra.mxu0 0
        %1919 = vmatprep.subr.bf16.mxu0 0
        %1920 = vmatpush1.bf16.msra.mxu0 0
        %1921 = vmatprep.subr.bf16.mxu0 0
        %1922 = vmatpush1.bf16.msra.mxu0 0
        %1923 = vmatprep.subr.bf16.mxu0 0
        %1924 = vmatpush1.bf16.msra.mxu0 0
        %1925 = vmatprep.subr.bf16.mxu0 0
        %1926 = vmatpush1.bf16.msra.mxu0 0
        %1927 = vmatprep.mubr.bf16.mxu0 0
        %1928 = vmatmul.mubr.bf16.gmra.mrb[0].mxu0 %v1839
        %v1929 = vpop.f32.mrb[0].mxu0
        %v1930 = vadd.f32 0.0, %v1929
        %v1931 = vpop.f32.mrb[0].mxu0
        %v1932 = vpop.f32.mrb[0].mxu0
        %v1933 = vadd.f32 0.0, %v1932
        %v1934 = vpop.f32.mrb[0].mxu0
        %1935 = vmatprep.mubr.bf16.mxu0 0
        %1936 = vmatmul.mubr.bf16.gmra.mrb[0].mxu0 %v1842
        %v1937 = vpop.f32.mrb[0].mxu0
        %v1938 = vadd.f32 0.0, %v1937
        %v1939 = vpop.f32.mrb[0].mxu0
        %v1940 = vpop.f32.mrb[0].mxu0
        %v1941 = vadd.f32 0.0, %v1940
        %v1942 = vpop.f32.mrb[0].mxu0
        %1943 = vmatprep.mubr.bf16.mxu0 0
        %1944 = vmatmul.mubr.bf16.gmra.mrb[0].mxu0 %v1845
        %v1945 = vpop.f32.mrb[0].mxu0
        %v1946 = vadd.f32 0.0, %v1945
        %v1947 = vpop.f32.mrb[0].mxu0
        %v1948 = vpop.f32.mrb[0].mxu0
        %v1949 = vadd.f32 0.0, %v1948
        %v1950 = vpop.f32.mrb[0].mxu0
        %1951 = vmatprep.mubr.bf16.mxu0 0
        %1952 = vmatmul.mubr.bf16.gmra.mrb[0].mxu0 %v1848
        %v1953 = vpop.f32.mrb[0].mxu0
        %v1954 = vadd.f32 0.0, %v1953
        %v1955 = vpop.f32.mrb[0].mxu0
        %v1956 = vpop.f32.mrb[0].mxu0
        %v1957 = vadd.f32 0.0, %v1956
        %v1958 = vpop.f32.mrb[0].mxu0
        %1959 = vmatprep.mubr.bf16.mxu0 0
        %1960 = vmatmul.mubr.bf16.gmra.mrb[0].mxu0 %v1851
        %v1961 = vpop.f32.mrb[0].mxu0
        %v1962 = vadd.f32 0.0, %v1961
        %v1963 = vpop.f32.mrb[0].mxu0
        %v1964 = vpop.f32.mrb[0].mxu0
        %v1965 = vadd.f32 0.0, %v1964
        %v1966 = vpop.f32.mrb[0].mxu0
        %1967 = vmatprep.mubr.bf16.mxu0 0
        %1968 = vmatmul.mubr.bf16.gmra.mrb[0].mxu0 %v1854
        %v1969 = vpop.f32.mrb[0].mxu0
        %v1970 = vadd.f32 0.0, %v1969
        %v1971 = vpop.f32.mrb[0].mxu0
        %v1972 = vpop.f32.mrb[0].mxu0
        %v1973 = vadd.f32 0.0, %v1972
        %v1974 = vpop.f32.mrb[0].mxu0
        %1975 = vmatprep.mubr.bf16.mxu0 0
        %1976 = vmatmul.mubr.bf16.gmra.mrb[0].mxu0 %v1857
        %v1977 = vpop.f32.mrb[0].mxu0
        %v1978 = vadd.f32 0.0, %v1977
        %v1979 = vpop.f32.mrb[0].mxu0
        %v1980 = vpop.f32.mrb[0].mxu0
        %v1981 = vadd.f32 0.0, %v1980
        %v1982 = vpop.f32.mrb[0].mxu0
        %1983 = vmatprep.mubr.bf16.mxu0 0
        %1984 = vmatmul.mubr.bf16.gmra.mrb[0].mxu0 %v1860
        %v1985 = vpop.f32.mrb[0].mxu0
        %v1986 = vadd.f32 0.0, %v1985
        %v1987 = vpop.f32.mrb[0].mxu0
        %v1988 = vpop.f32.mrb[0].mxu0
        %v1989 = vadd.f32 0.0, %v1988
        %v1990 = vpop.f32.mrb[0].mxu0
        %1991 = vmatprep.mubr.bf16.mxu0 0
        %1992 = vmatmul.mubr.bf16.gmra.mrb[0].mxu0 %v1863
        %v1993 = vpop.f32.mrb[0].mxu0
        %v1994 = vadd.f32 0.0, %v1993
        %v1995 = vpop.f32.mrb[0].mxu0
        %v1996 = vpop.f32.mrb[0].mxu0
        %v1997 = vadd.f32 0.0, %v1996
        %v1998 = vpop.f32.mrb[0].mxu0
        %1999 = vmatprep.mubr.bf16.mxu0 0
        %2000 = vmatmul.mubr.bf16.gmra.mrb[0].mxu0 %v1866
        %v2001 = vpop.f32.mrb[0].mxu0
        %v2002 = vadd.f32 0.0, %v2001
        %v2003 = vpop.f32.mrb[0].mxu0
        %v2004 = vpop.f32.mrb[0].mxu0
        %v2005 = vadd.f32 0.0, %v2004
        %v2006 = vpop.f32.mrb[0].mxu0
        %2007 = vmatprep.mubr.bf16.mxu0 0
        %2008 = vmatmul.mubr.bf16.gmra.mrb[0].mxu0 %v1869
        %v2009 = vpop.f32.mrb[0].mxu0
        %v2010 = vadd.f32 0.0, %v2009
        %v2011 = vpop.f32.mrb[0].mxu0
        %v2012 = vpop.f32.mrb[0].mxu0
        %v2013 = vadd.f32 0.0, %v2012
        %v2014 = vpop.f32.mrb[0].mxu0
        %2015 = vmatprep.mubr.bf16.mxu0 0
        %2016 = vmatmul.mubr.bf16.gmra.mrb[0].mxu0 %v1872
        %v2017 = vpop.f32.mrb[0].mxu0
        %v2018 = vadd.f32 0.0, %v2017
        %v2019 = vpop.f32.mrb[0].mxu0
        %v2020 = vpop.f32.mrb[0].mxu0
        %v2021 = vadd.f32 0.0, %v2020
        %v2022 = vpop.f32.mrb[0].mxu0
        %2023 = vmatprep.mubr.bf16.mxu0 0
        %2024 = vmatmul.mubr.bf16.gmra.mrb[0].mxu0 %v1875
        %v2025 = vpop.f32.mrb[0].mxu0
        %v2026 = vadd.f32 0.0, %v2025
        %v2027 = vpop.f32.mrb[0].mxu0
        %v2028 = vpop.f32.mrb[0].mxu0
        %v2029 = vadd.f32 0.0, %v2028
        %v2030 = vpop.f32.mrb[0].mxu0
        %2031 = vmatprep.mubr.bf16.mxu0 0
        %2032 = vmatmul.mubr.bf16.gmra.mrb[0].mxu0 %v1878
        %v2033 = vpop.f32.mrb[0].mxu0
        %v2034 = vadd.f32 0.0, %v2033
        %v2035 = vpop.f32.mrb[0].mxu0
        %v2036 = vpop.f32.mrb[0].mxu0
        %v2037 = vadd.f32 0.0, %v2036
        %v2038 = vpop.f32.mrb[0].mxu0
        %2039 = vmatprep.mubr.bf16.mxu0 0
        %2040 = vmatmul.mubr.bf16.gmra.mrb[0].mxu0 %v1881
        %v2041 = vpop.f32.mrb[0].mxu0
        %v2042 = vadd.f32 0.0, %v2041
        %v2043 = vpop.f32.mrb[0].mxu0
        %v2044 = vpop.f32.mrb[0].mxu0
        %v2045 = vadd.f32 0.0, %v2044
        %v2046 = vpop.f32.mrb[0].mxu0
        %2047 = vmatprep.mubr.bf16.mxu0 0
        %2048 = vmatmul.mubr.bf16.gmra.mrb[0].mxu0 %v1884
        %v2049 = vpop.f32.mrb[0].mxu0
        %v2050 = vadd.f32 0.0, %v2049
        %v2051 = vpop.f32.mrb[0].mxu0
        %v2052 = vpop.f32.mrb[0].mxu0
        %v2053 = vadd.f32 0.0, %v2052
        %v2054 = vpop.f32.mrb[0].mxu0
        %2055 = vmatprep.mubr.bf16.mxu0 0
        %2056 = vmatmul.mubr.bf16.gmra.mrb[0].mxu0 %v1887
        %v2057 = vpop.f32.mrb[0].mxu0
        %v2058 = vadd.f32 0.0, %v2057
        %v2059 = vpop.f32.mrb[0].mxu0
        %v2060 = vpop.f32.mrb[0].mxu0
        %v2061 = vadd.f32 0.0, %v2060
        %v2062 = vpop.f32.mrb[0].mxu0
        %2063 = vmatprep.mubr.bf16.mxu0 0
        %2064 = vmatmul.mubr.bf16.gmra.mrb[0].mxu0 %v1890
        %v2065 = vpop.f32.mrb[0].mxu0
        %v2066 = vadd.f32 0.0, %v2065
        %v2067 = vpop.f32.mrb[0].mxu0
        %v2068 = vpop.f32.mrb[0].mxu0
        %v2069 = vadd.f32 0.0, %v2068
        %v2070 = vpop.f32.mrb[0].mxu0
        %2071 = vdwg.mxu0
        %v2072 = vadd.f32 %v1625, %v1930
        %v2073 = vadd.f32 %v1626, %v1933
        %v2074 = vadd.f32 %v1627, %v1938
        %v2075 = vadd.f32 %v1628, %v1941
        %v2076 = vadd.f32 %v1629, %v1946
        %v2077 = vadd.f32 %v1630, %v1949
        %v2078 = vadd.f32 %v1631, %v1954
        %v2079 = vadd.f32 %v1632, %v1957
        %v2080 = vadd.f32 %v1633, %v1962
        %v2081 = vadd.f32 %v1634, %v1965
        %v2082 = vadd.f32 %v1635, %v1970
        %v2083 = vadd.f32 %v1636, %v1973
        %v2084 = vadd.f32 %v1637, %v1978
        %v2085 = vadd.f32 %v1638, %v1981
        %v2086 = vadd.f32 %v1639, %v1986
        %v2087 = vadd.f32 %v1640, %v1989
        %v2088 = vadd.f32 %v1641, %v1994
        %v2089 = vadd.f32 %v1642, %v1997
        %v2090 = vadd.f32 %v1643, %v2002
        %v2091 = vadd.f32 %v1644, %v2005
        %v2092 = vadd.f32 %v1645, %v2010
        %v2093 = vadd.f32 %v1646, %v2013
        %v2094 = vadd.f32 %v1647, %v2018
        %v2095 = vadd.f32 %v1648, %v2021
        %v2096 = vadd.f32 %v1649, %v2026
        %v2097 = vadd.f32 %v1650, %v2029
        %v2098 = vadd.f32 %v1651, %v2034
        %v2099 = vadd.f32 %v1652, %v2037
        %v2100 = vadd.f32 %v1653, %v2042
        %v2101 = vadd.f32 %v1654, %v2045
        %v2102 = vadd.f32 %v1655, %v2050
        %v2103 = vadd.f32 %v1656, %v2053
        %v2104 = vadd.f32 %v1657, %v2058
        %v2105 = vadd.f32 %v1658, %v2061
        %v2106 = vadd.f32 %v1659, %v2066
        %v2107 = vadd.f32 %v1660, %v2069
        %v2108 = vld [vmem:[%s167 + $0x8] sm:$0xc]
        %s2109 = scalar_lea.vmem %s1, 10
        %v2110 = vld [vmem:[%s2109] sm:$0x3]
        %v2112 = vunpack.c.l.b16 %v2108
        %v2113 = vpack.c.b16 %v1299, %v2112
        %vm2114 = vcmask 1045504
        %v2115 = vrot.slane %v2113, 2
        %v2116 = vrot.slane %v1336, 2
        %v2117 = vsel %vm2114, %v2115, %v2116
        %v2118 = vrot.slane %v1337, 2
        %v2119 = vsel %vm2114, %v2116, %v2118
        %v2120 = vrot.slane %v1338, 2
        %v2121 = vsel %vm2114, %v2118, %v2120
        %v2122 = vrot.slane %v1339, 2
        %v2123 = vsel %vm2114, %v2120, %v2122
        %v2124 = vrot.slane %v1340, 2
        %v2125 = vsel %vm2114, %v2122, %v2124
        %v2126 = vrot.slane %v1341, 2
        %v2127 = vsel %vm2114, %v2124, %v2126
        %v2128 = vrot.slane %v1342, 2
        %v2129 = vsel %vm2114, %v2126, %v2128
        %v2130 = vrot.slane %v1343, 2
        %v2131 = vsel %vm2114, %v2128, %v2130
        %v2132 = vrot.slane %v1344, 2
        %v2133 = vsel %vm2114, %v2130, %v2132
        %v2134 = vrot.slane %v1345, 2
        %v2135 = vsel %vm2114, %v2132, %v2134
        %v2136 = vrot.slane %v1346, 2
        %v2137 = vsel %vm2114, %v2134, %v2136
        %v2138 = vrot.slane %v1347, 2
        %v2139 = vsel %vm2114, %v2136, %v2138
        %v2140 = vrot.slane %v1348, 2
        %v2141 = vsel %vm2114, %v2138, %v2140
        %v2142 = vrot.slane %v1349, 2
        %v2143 = vsel %vm2114, %v2140, %v2142
        %v2144 = vrot.slane %v1350, 2
        %v2145 = vsel %vm2114, %v2142, %v2144
        %v2146 = vrot.slane %v1351, 2
        %v2147 = vsel %vm2114, %v2144, %v2146
        %v2148 = vrot.slane %v1352, 2
        %v2149 = vsel %vm2114, %v2146, %v2148
        %v2150 = vrot.slane %v1666, 2
        %v2151 = vsel %vm2114, %v2148, %v2150
        %v2153 = vsel %vm456, %v2117, 0
        %v2156 = vsel %vm456, %v2119, 0
        %v2159 = vsel %vm456, %v2121, 0
        %v2162 = vsel %vm456, %v2123, 0
        %v2165 = vsel %vm456, %v2125, 0
        %v2168 = vsel %vm456, %v2127, 0
        %v2171 = vsel %vm456, %v2129, 0
        %v2174 = vsel %vm456, %v2131, 0
        %v2177 = vsel %vm456, %v2133, 0
        %v2180 = vsel %vm456, %v2135, 0
        %v2183 = vsel %vm456, %v2137, 0
        %v2186 = vsel %vm456, %v2139, 0
        %v2189 = vsel %vm456, %v2141, 0
        %v2192 = vsel %vm456, %v2143, 0
        %v2195 = vsel %vm456, %v2145, 0
        %v2198 = vsel %vm456, %v2147, 0
        %v2201 = vsel %vm456, %v2149, 0
        %v2204 = vsel %vm456, %v2151, 0
        %v2207 = vsel %vm511, %v2110, 0
        %2209 = vmatprep.subr.bf16.mxu0 0
        %2210 = vmatpush1.bf16.msra.mxu0 %v2207
        %2211 = vmatprep.subr.bf16.mxu0 0
        %2212 = vmatpush1.bf16.msra.mxu0 0
        %2213 = vmatprep.subr.bf16.mxu0 0
        %2214 = vmatpush1.bf16.msra.mxu0 0
        %2215 = vmatprep.subr.bf16.mxu0 0
        %2216 = vmatpush1.bf16.msra.mxu0 0
        %2217 = vmatprep.subr.bf16.mxu0 0
        %2218 = vmatpush1.bf16.msra.mxu0 0
        %2219 = vmatprep.subr.bf16.mxu0 0
        %2220 = vmatpush1.bf16.msra.mxu0 0
        %2221 = vmatprep.subr.bf16.mxu0 0
        %2222 = vmatpush1.bf16.msra.mxu0 0
        %2223 = vmatprep.subr.bf16.mxu0 0
        %2224 = vmatpush1.bf16.msra.mxu0 0
        %2225 = vmatprep.subr.bf16.mxu0 0
        %2226 = vmatpush1.bf16.msra.mxu0 0
        %2227 = vmatprep.subr.bf16.mxu0 0
        %2228 = vmatpush1.bf16.msra.mxu0 0
        %2229 = vmatprep.subr.bf16.mxu0 0
        %2230 = vmatpush1.bf16.msra.mxu0 0
        %2231 = vmatprep.subr.bf16.mxu0 0
        %2232 = vmatpush1.bf16.msra.mxu0 0
        %2233 = vmatprep.subr.bf16.mxu0 0
        %2234 = vmatpush1.bf16.msra.mxu0 0
        %2235 = vmatprep.subr.bf16.mxu0 0
        %2236 = vmatpush1.bf16.msra.mxu0 0
        %2237 = vmatprep.subr.bf16.mxu0 0
        %2238 = vmatpush1.bf16.msra.mxu0 0
        %2239 = vmatprep.subr.bf16.mxu0 0
        %2240 = vmatpush1.bf16.msra.mxu0 0
        %2241 = vmatprep.mubr.bf16.mxu0 0
        %2242 = vmatmul.mubr.bf16.gmra.mrb[0].mxu0 %v2153
        %v2243 = vpop.f32.mrb[0].mxu0
        %v2244 = vadd.f32 0.0, %v2243
        %v2245 = vpop.f32.mrb[0].mxu0
        %v2246 = vpop.f32.mrb[0].mxu0
        %v2247 = vadd.f32 0.0, %v2246
        %v2248 = vpop.f32.mrb[0].mxu0
        %2249 = vmatprep.mubr.bf16.mxu0 0
        %2250 = vmatmul.mubr.bf16.gmra.mrb[0].mxu0 %v2156
        %v2251 = vpop.f32.mrb[0].mxu0
        %v2252 = vadd.f32 0.0, %v2251
        %v2253 = vpop.f32.mrb[0].mxu0
        %v2254 = vpop.f32.mrb[0].mxu0
        %v2255 = vadd.f32 0.0, %v2254
        %v2256 = vpop.f32.mrb[0].mxu0
        %2257 = vmatprep.mubr.bf16.mxu0 0
        %2258 = vmatmul.mubr.bf16.gmra.mrb[0].mxu0 %v2159
        %v2259 = vpop.f32.mrb[0].mxu0
        %v2260 = vadd.f32 0.0, %v2259
        %v2261 = vpop.f32.mrb[0].mxu0
        %v2262 = vpop.f32.mrb[0].mxu0
        %v2263 = vadd.f32 0.0, %v2262
        %v2264 = vpop.f32.mrb[0].mxu0
        %2265 = vmatprep.mubr.bf16.mxu0 0
        %2266 = vmatmul.mubr.bf16.gmra.mrb[0].mxu0 %v2162
        %v2267 = vpop.f32.mrb[0].mxu0
        %v2268 = vadd.f32 0.0, %v2267
        %v2269 = vpop.f32.mrb[0].mxu0
        %v2270 = vpop.f32.mrb[0].mxu0
        %v2271 = vadd.f32 0.0, %v2270
        %v2272 = vpop.f32.mrb[0].mxu0
        %2273 = vmatprep.mubr.bf16.mxu0 0
        %2274 = vmatmul.mubr.bf16.gmra.mrb[0].mxu0 %v2165
        %v2275 = vpop.f32.mrb[0].mxu0
        %v2276 = vadd.f32 0.0, %v2275
        %v2277 = vpop.f32.mrb[0].mxu0
        %v2278 = vpop.f32.mrb[0].mxu0
        %v2279 = vadd.f32 0.0, %v2278
        %v2280 = vpop.f32.mrb[0].mxu0
        %2281 = vmatprep.mubr.bf16.mxu0 0
        %2282 = vmatmul.mubr.bf16.gmra.mrb[0].mxu0 %v2168
        %v2283 = vpop.f32.mrb[0].mxu0
        %v2284 = vadd.f32 0.0, %v2283
        %v2285 = vpop.f32.mrb[0].mxu0
        %v2286 = vpop.f32.mrb[0].mxu0
        %v2287 = vadd.f32 0.0, %v2286
        %v2288 = vpop.f32.mrb[0].mxu0
        %2289 = vmatprep.mubr.bf16.mxu0 0
        %2290 = vmatmul.mubr.bf16.gmra.mrb[0].mxu0 %v2171
        %v2291 = vpop.f32.mrb[0].mxu0
        %v2292 = vadd.f32 0.0, %v2291
        %v2293 = vpop.f32.mrb[0].mxu0
        %v2294 = vpop.f32.mrb[0].mxu0
        %v2295 = vadd.f32 0.0, %v2294
        %v2296 = vpop.f32.mrb[0].mxu0
        %2297 = vmatprep.mubr.bf16.mxu0 0
        %2298 = vmatmul.mubr.bf16.gmra.mrb[0].mxu0 %v2174
        %v2299 = vpop.f32.mrb[0].mxu0
        %v2300 = vadd.f32 0.0, %v2299
        %v2301 = vpop.f32.mrb[0].mxu0
        %v2302 = vpop.f32.mrb[0].mxu0
        %v2303 = vadd.f32 0.0, %v2302
        %v2304 = vpop.f32.mrb[0].mxu0
        %2305 = vmatprep.mubr.bf16.mxu0 0
        %2306 = vmatmul.mubr.bf16.gmra.mrb[0].mxu0 %v2177
        %v2307 = vpop.f32.mrb[0].mxu0
        %v2308 = vadd.f32 0.0, %v2307
        %v2309 = vpop.f32.mrb[0].mxu0
        %v2310 = vpop.f32.mrb[0].mxu0
        %v2311 = vadd.f32 0.0, %v2310
        %v2312 = vpop.f32.mrb[0].mxu0
        %2313 = vmatprep.mubr.bf16.mxu0 0
        %2314 = vmatmul.mubr.bf16.gmra.mrb[0].mxu0 %v2180
        %v2315 = vpop.f32.mrb[0].mxu0
        %v2316 = vadd.f32 0.0, %v2315
        %v2317 = vpop.f32.mrb[0].mxu0
        %v2318 = vpop.f32.mrb[0].mxu0
        %v2319 = vadd.f32 0.0, %v2318
        %v2320 = vpop.f32.mrb[0].mxu0
        %2321 = vmatprep.mubr.bf16.mxu0 0
        %2322 = vmatmul.mubr.bf16.gmra.mrb[0].mxu0 %v2183
        %v2323 = vpop.f32.mrb[0].mxu0
        %v2324 = vadd.f32 0.0, %v2323
        %v2325 = vpop.f32.mrb[0].mxu0
        %v2326 = vpop.f32.mrb[0].mxu0
        %v2327 = vadd.f32 0.0, %v2326
        %v2328 = vpop.f32.mrb[0].mxu0
        %2329 = vmatprep.mubr.bf16.mxu0 0
        %2330 = vmatmul.mubr.bf16.gmra.mrb[0].mxu0 %v2186
        %v2331 = vpop.f32.mrb[0].mxu0
        %v2332 = vadd.f32 0.0, %v2331
        %v2333 = vpop.f32.mrb[0].mxu0
        %v2334 = vpop.f32.mrb[0].mxu0
        %v2335 = vadd.f32 0.0, %v2334
        %v2336 = vpop.f32.mrb[0].mxu0
        %2337 = vmatprep.mubr.bf16.mxu0 0
        %2338 = vmatmul.mubr.bf16.gmra.mrb[0].mxu0 %v2189
        %v2339 = vpop.f32.mrb[0].mxu0
        %v2340 = vadd.f32 0.0, %v2339
        %v2341 = vpop.f32.mrb[0].mxu0
        %v2342 = vpop.f32.mrb[0].mxu0
        %v2343 = vadd.f32 0.0, %v2342
        %v2344 = vpop.f32.mrb[0].mxu0
        %2345 = vmatprep.mubr.bf16.mxu0 0
        %2346 = vmatmul.mubr.bf16.gmra.mrb[0].mxu0 %v2192
        %v2347 = vpop.f32.mrb[0].mxu0
        %v2348 = vadd.f32 0.0, %v2347
        %v2349 = vpop.f32.mrb[0].mxu0
        %v2350 = vpop.f32.mrb[0].mxu0
        %v2351 = vadd.f32 0.0, %v2350
        %v2352 = vpop.f32.mrb[0].mxu0
        %2353 = vmatprep.mubr.bf16.mxu0 0
        %2354 = vmatmul.mubr.bf16.gmra.mrb[0].mxu0 %v2195
        %v2355 = vpop.f32.mrb[0].mxu0
        %v2356 = vadd.f32 0.0, %v2355
        %v2357 = vpop.f32.mrb[0].mxu0
        %v2358 = vpop.f32.mrb[0].mxu0
        %v2359 = vadd.f32 0.0, %v2358
        %v2360 = vpop.f32.mrb[0].mxu0
        %2361 = vmatprep.mubr.bf16.mxu0 0
        %2362 = vmatmul.mubr.bf16.gmra.mrb[0].mxu0 %v2198
        %v2363 = vpop.f32.mrb[0].mxu0
        %v2364 = vadd.f32 0.0, %v2363
        %v2365 = vpop.f32.mrb[0].mxu0
        %v2366 = vpop.f32.mrb[0].mxu0
        %v2367 = vadd.f32 0.0, %v2366
        %v2368 = vpop.f32.mrb[0].mxu0
        %2369 = vmatprep.mubr.bf16.mxu0 0
        %2370 = vmatmul.mubr.bf16.gmra.mrb[0].mxu0 %v2201
        %v2371 = vpop.f32.mrb[0].mxu0
        %v2372 = vadd.f32 0.0, %v2371
        %v2373 = vpop.f32.mrb[0].mxu0
        %v2374 = vpop.f32.mrb[0].mxu0
        %v2375 = vadd.f32 0.0, %v2374
        %v2376 = vpop.f32.mrb[0].mxu0
        %2377 = vmatprep.mubr.bf16.mxu0 0
        %2378 = vmatmul.mubr.bf16.gmra.mrb[0].mxu0 %v2204
        %v2379 = vpop.f32.mrb[0].mxu0
        %v2380 = vadd.f32 0.0, %v2379
        %v2381 = vpop.f32.mrb[0].mxu0
        %v2382 = vpop.f32.mrb[0].mxu0
        %v2383 = vadd.f32 0.0, %v2382
        %v2384 = vpop.f32.mrb[0].mxu0
        %2385 = vdwg.mxu0
        %v2386 = vadd.f32 %v2072, %v2244
        %v2387 = vadd.f32 %v2073, %v2247
        %v2388 = vadd.f32 %v2074, %v2252
        %v2389 = vadd.f32 %v2075, %v2255
        %v2390 = vadd.f32 %v2076, %v2260
        %v2391 = vadd.f32 %v2077, %v2263
        %v2392 = vadd.f32 %v2078, %v2268
        %v2393 = vadd.f32 %v2079, %v2271
        %v2394 = vadd.f32 %v2080, %v2276
        %v2395 = vadd.f32 %v2081, %v2279
        %v2396 = vadd.f32 %v2082, %v2284
        %v2397 = vadd.f32 %v2083, %v2287
        %v2398 = vadd.f32 %v2084, %v2292
        %v2399 = vadd.f32 %v2085, %v2295
        %v2400 = vadd.f32 %v2086, %v2300
        %v2401 = vadd.f32 %v2087, %v2303
        %v2402 = vadd.f32 %v2088, %v2308
        %v2403 = vadd.f32 %v2089, %v2311
        %v2404 = vadd.f32 %v2090, %v2316
        %v2405 = vadd.f32 %v2091, %v2319
        %v2406 = vadd.f32 %v2092, %v2324
        %v2407 = vadd.f32 %v2093, %v2327
        %v2408 = vadd.f32 %v2094, %v2332
        %v2409 = vadd.f32 %v2095, %v2335
        %v2410 = vadd.f32 %v2096, %v2340
        %v2411 = vadd.f32 %v2097, %v2343
        %v2412 = vadd.f32 %v2098, %v2348
        %v2413 = vadd.f32 %v2099, %v2351
        %v2414 = vadd.f32 %v2100, %v2356
        %v2415 = vadd.f32 %v2101, %v2359
        %v2416 = vadd.f32 %v2102, %v2364
        %v2417 = vadd.f32 %v2103, %v2367
        %v2418 = vadd.f32 %v2104, %v2372
        %v2419 = vadd.f32 %v2105, %v2375
        %v2420 = vadd.f32 %v2106, %v2380
        %v2421 = vadd.f32 %v2107, %v2383
        %v2422 = vld [vmem:[%s167 + $0x10] sm:$0xc]
        %v2423 = vld [vmem:[%s167 + $0x14] sm:$0xf]
        %v2424 = vld [vmem:[%s167 + $0x18] sm:$0xf]
        %v2425 = vld [vmem:[%s167 + $0x1c] sm:$0xf]
        %v2426 = vld [vmem:[%s167 + $0x20] sm:$0xf]
        %v2427 = vld [vmem:[%s167 + $0x24] sm:$0xf]
        %v2428 = vld [vmem:[%s167 + $0x28] sm:$0xf]
        %v2429 = vld [vmem:[%s167 + $0x2c] sm:$0xf]
        %v2430 = vld [vmem:[%s167 + $0x30] sm:$0xf]
        %v2431 = vld [vmem:[%s167 + $0x34] sm:$0xf]
        %v2432 = vld [vmem:[%s167 + $0x38] sm:$0xf]
        %v2433 = vld [vmem:[%s167 + $0x3c] sm:$0xf]
        %v2434 = vld [vmem:[%s167 + $0x40] sm:$0xf]
        %v2435 = vld [vmem:[%s167 + $0x44] sm:$0xf]
        %v2436 = vld [vmem:[%s167 + $0x48] sm:$0xf]
        %v2437 = vld [vmem:[%s167 + $0x4c] sm:$0xf]
        %v2438 = vld [vmem:[%s167 + $0x50] sm:$0xf]
        %v2439 = vld [vmem:[%s167 + $0x54] sm:$0xf]
        %v2440 = vld [vmem:[%s167 + $0x58] sm:$0xf]
        %v2441 = vld [vmem:[%s167 + $0x5c] sm:$0xf]
        %v2442 = vld [vmem:[%s167 + $0x60] sm:$0xf]
        %v2443 = vld [vmem:[%s167 + $0x64] sm:$0xf]
        %v2444 = vld [vmem:[%s167 + $0x68] sm:$0xf]
        %v2445 = vld [vmem:[%s167 + $0x6c] sm:$0xf]
        %v2446 = vld [vmem:[%s167 + $0x70] sm:$0xf]
        %v2447 = vld [vmem:[%s167 + $0x74] sm:$0xf]
        %v2448 = vld [vmem:[%s167 + $0x78] sm:$0xf]
        %v2449 = vld [vmem:[%s167 + $0x7c] sm:$0xf]
        %v2450 = vld [vmem:[%s167 + $0x80] sm:$0xf]
        %v2451 = vld [vmem:[%s167 + $0x84] sm:$0xf]
        %v2452 = vld [vmem:[%s167 + $0x88] sm:$0xf]
        %v2453 = vld [vmem:[%s167 + $0x8c] sm:$0xf]
        %v2454 = vld [vmem:[%s167 + $0x90] sm:$0xf]
        %v2455 = vld [vmem:[%s167 + $0x94] sm:$0xf]
        %v2456 = vld [vmem:[%s167 + $0x98] sm:$0xf]
        %v2457 = vld [vmem:[%s167 + $0x9c] sm:$0xf]
        %v2458 = vld [vmem:[%s167 + $0xa0] sm:$0x3]
        %s2459 = scalar_lea.vmem %s1, 12
        %v2460 = vld [vmem:[%s2459] sm:$0x3]
        %v2498 = vunpack.c.l.b16 %v2422
        %v2499 = vunpack.c.l.b16 %v2423
        %v2500 = vunpack.c.l.b16 %v2424
        %v2501 = vunpack.c.l.b16 %v2425
        %v2502 = vunpack.c.l.b16 %v2426
        %v2503 = vunpack.c.l.b16 %v2427
        %v2504 = vunpack.c.l.b16 %v2428
        %v2505 = vunpack.c.l.b16 %v2429
        %v2506 = vunpack.c.l.b16 %v2430
        %v2507 = vunpack.c.l.b16 %v2431
        %v2508 = vunpack.c.l.b16 %v2432
        %v2509 = vunpack.c.l.b16 %v2433
        %v2510 = vunpack.c.l.b16 %v2434
        %v2511 = vunpack.c.l.b16 %v2435
        %v2512 = vunpack.c.l.b16 %v2436
        %v2513 = vunpack.c.l.b16 %v2437
        %v2514 = vunpack.c.l.b16 %v2438
        %v2515 = vunpack.c.l.b16 %v2439
        %v2516 = vunpack.c.l.b16 %v2440
        %v2517 = vunpack.c.l.b16 %v2441
        %v2518 = vunpack.c.l.b16 %v2442
        %v2519 = vunpack.c.l.b16 %v2443
        %v2520 = vunpack.c.l.b16 %v2444
        %v2521 = vunpack.c.l.b16 %v2445
        %v2522 = vunpack.c.l.b16 %v2446
        %v2523 = vunpack.c.l.b16 %v2447
        %v2524 = vunpack.c.l.b16 %v2448
        %v2525 = vunpack.c.l.b16 %v2449
        %v2526 = vunpack.c.l.b16 %v2450
        %v2527 = vunpack.c.l.b16 %v2451
        %v2528 = vunpack.c.l.b16 %v2452
        %v2529 = vunpack.c.l.b16 %v2453
        %v2530 = vunpack.c.l.b16 %v2454
        %v2531 = vunpack.c.l.b16 %v2455
        %v2532 = vunpack.c.l.b16 %v2456
        %v2533 = vunpack.c.l.b16 %v2457
        %v2534 = vunpack.c.l.b16 %v2458
        %v2535 = vpack.c.b16 %v2499, %v2498
        %v2536 = vpack.c.b16 %v2501, %v2500
        %v2537 = vpack.c.b16 %v2503, %v2502
        %v2538 = vpack.c.b16 %v2505, %v2504
        %v2539 = vpack.c.b16 %v2507, %v2506
        %v2540 = vpack.c.b16 %v2509, %v2508
        %v2541 = vpack.c.b16 %v2511, %v2510
        %v2542 = vpack.c.b16 %v2513, %v2512
        %v2543 = vpack.c.b16 %v2515, %v2514
        %v2544 = vpack.c.b16 %v2517, %v2516
        %v2545 = vpack.c.b16 %v2519, %v2518
        %v2546 = vpack.c.b16 %v2521, %v2520
        %v2547 = vpack.c.b16 %v2523, %v2522
        %v2548 = vpack.c.b16 %v2525, %v2524
        %v2549 = vpack.c.b16 %v2527, %v2526
        %v2550 = vpack.c.b16 %v2529, %v2528
        %v2551 = vpack.c.b16 %v2531, %v2530
        %v2552 = vpack.c.b16 %v2533, %v2532
        %v2553 = vpack.c.b16 %v2534, %v2534
        %v2554 = vrot.slane %v2535, 2
        %v2555 = vrot.slane %v2536, 2
        %v2556 = vsel %vm2114, %v2554, %v2555
        %v2557 = vrot.slane %v2537, 2
        %v2558 = vsel %vm2114, %v2555, %v2557
        %v2559 = vrot.slane %v2538, 2
        %v2560 = vsel %vm2114, %v2557, %v2559
        %v2561 = vrot.slane %v2539, 2
        %v2562 = vsel %vm2114, %v2559, %v2561
        %v2563 = vrot.slane %v2540, 2
        %v2564 = vsel %vm2114, %v2561, %v2563
        %v2565 = vrot.slane %v2541, 2
        %v2566 = vsel %vm2114, %v2563, %v2565
        %v2567 = vrot.slane %v2542, 2
        %v2568 = vsel %vm2114, %v2565, %v2567
        %v2569 = vrot.slane %v2543, 2
        %v2570 = vsel %vm2114, %v2567, %v2569
        %v2571 = vrot.slane %v2544, 2
        %v2572 = vsel %vm2114, %v2569, %v2571
        %v2573 = vrot.slane %v2545, 2
        %v2574 = vsel %vm2114, %v2571, %v2573
        %v2575 = vrot.slane %v2546, 2
        %v2576 = vsel %vm2114, %v2573, %v2575
        %v2577 = vrot.slane %v2547, 2
        %v2578 = vsel %vm2114, %v2575, %v2577
        %v2579 = vrot.slane %v2548, 2
        %v2580 = vsel %vm2114, %v2577, %v2579
        %v2581 = vrot.slane %v2549, 2
        %v2582 = vsel %vm2114, %v2579, %v2581
        %v2583 = vrot.slane %v2550, 2
        %v2584 = vsel %vm2114, %v2581, %v2583
        %v2585 = vrot.slane %v2551, 2
        %v2586 = vsel %vm2114, %v2583, %v2585
        %v2587 = vrot.slane %v2552, 2
        %v2588 = vsel %vm2114, %v2585, %v2587
        %v2589 = vrot.slane %v2553, 2
        %v2590 = vsel %vm2114, %v2587, %v2589
        %v2592 = vsel %vm456, %v2556, 0
        %v2595 = vsel %vm456, %v2558, 0
        %v2598 = vsel %vm456, %v2560, 0
        %v2601 = vsel %vm456, %v2562, 0
        %v2604 = vsel %vm456, %v2564, 0
        %v2607 = vsel %vm456, %v2566, 0
        %v2610 = vsel %vm456, %v2568, 0
        %v2613 = vsel %vm456, %v2570, 0
        %v2616 = vsel %vm456, %v2572, 0
        %v2619 = vsel %vm456, %v2574, 0
        %v2622 = vsel %vm456, %v2576, 0
        %v2625 = vsel %vm456, %v2578, 0
        %v2628 = vsel %vm456, %v2580, 0
        %v2631 = vsel %vm456, %v2582, 0
        %v2634 = vsel %vm456, %v2584, 0
        %v2637 = vsel %vm456, %v2586, 0
        %v2640 = vsel %vm456, %v2588, 0
        %v2643 = vsel %vm456, %v2590, 0
        %v2646 = vsel %vm511, %v2460, 0
        %2648 = vmatprep.subr.bf16.mxu0 0
        %2649 = vmatpush1.bf16.msra.mxu0 %v2646
        %2650 = vmatprep.subr.bf16.mxu0 0
        %2651 = vmatpush1.bf16.msra.mxu0 0
        %2652 = vmatprep.subr.bf16.mxu0 0
        %2653 = vmatpush1.bf16.msra.mxu0 0
        %2654 = vmatprep.subr.bf16.mxu0 0
        %2655 = vmatpush1.bf16.msra.mxu0 0
        %2656 = vmatprep.subr.bf16.mxu0 0
        %2657 = vmatpush1.bf16.msra.mxu0 0
        %2658 = vmatprep.subr.bf16.mxu0 0
        %2659 = vmatpush1.bf16.msra.mxu0 0
        %2660 = vmatprep.subr.bf16.mxu0 0
        %2661 = vmatpush1.bf16.msra.mxu0 0
        %2662 = vmatprep.subr.bf16.mxu0 0
        %2663 = vmatpush1.bf16.msra.mxu0 0
        %2664 = vmatprep.subr.bf16.mxu0 0
        %2665 = vmatpush1.bf16.msra.mxu0 0
        %2666 = vmatprep.subr.bf16.mxu0 0
        %2667 = vmatpush1.bf16.msra.mxu0 0
        %2668 = vmatprep.subr.bf16.mxu0 0
        %2669 = vmatpush1.bf16.msra.mxu0 0
        %2670 = vmatprep.subr.bf16.mxu0 0
        %2671 = vmatpush1.bf16.msra.mxu0 0
        %2672 = vmatprep.subr.bf16.mxu0 0
        %2673 = vmatpush1.bf16.msra.mxu0 0
        %2674 = vmatprep.subr.bf16.mxu0 0
        %2675 = vmatpush1.bf16.msra.mxu0 0
        %2676 = vmatprep.subr.bf16.mxu0 0
        %2677 = vmatpush1.bf16.msra.mxu0 0
        %2678 = vmatprep.subr.bf16.mxu0 0
        %2679 = vmatpush1.bf16.msra.mxu0 0
        %2680 = vmatprep.mubr.bf16.mxu0 0
        %2681 = vmatmul.mubr.bf16.gmra.mrb[0].mxu0 %v2592
        %v2682 = vpop.f32.mrb[0].mxu0
        %v2683 = vadd.f32 0.0, %v2682
        %v2684 = vpop.f32.mrb[0].mxu0
        %v2685 = vpop.f32.mrb[0].mxu0
        %v2686 = vadd.f32 0.0, %v2685
        %v2687 = vpop.f32.mrb[0].mxu0
        %2688 = vmatprep.mubr.bf16.mxu0 0
        %2689 = vmatmul.mubr.bf16.gmra.mrb[0].mxu0 %v2595
        %v2690 = vpop.f32.mrb[0].mxu0
        %v2691 = vadd.f32 0.0, %v2690
        %v2692 = vpop.f32.mrb[0].mxu0
        %v2693 = vpop.f32.mrb[0].mxu0
        %v2694 = vadd.f32 0.0, %v2693
        %v2695 = vpop.f32.mrb[0].mxu0
        %2696 = vmatprep.mubr.bf16.mxu0 0
        %2697 = vmatmul.mubr.bf16.gmra.mrb[0].mxu0 %v2598
        %v2698 = vpop.f32.mrb[0].mxu0
        %v2699 = vadd.f32 0.0, %v2698
        %v2700 = vpop.f32.mrb[0].mxu0
        %v2701 = vpop.f32.mrb[0].mxu0
        %v2702 = vadd.f32 0.0, %v2701
        %v2703 = vpop.f32.mrb[0].mxu0
        %2704 = vmatprep.mubr.bf16.mxu0 0
        %2705 = vmatmul.mubr.bf16.gmra.mrb[0].mxu0 %v2601
        %v2706 = vpop.f32.mrb[0].mxu0
        %v2707 = vadd.f32 0.0, %v2706
        %v2708 = vpop.f32.mrb[0].mxu0
        %v2709 = vpop.f32.mrb[0].mxu0
        %v2710 = vadd.f32 0.0, %v2709
        %v2711 = vpop.f32.mrb[0].mxu0
        %2712 = vmatprep.mubr.bf16.mxu0 0
        %2713 = vmatmul.mubr.bf16.gmra.mrb[0].mxu0 %v2604
        %v2714 = vpop.f32.mrb[0].mxu0
        %v2715 = vadd.f32 0.0, %v2714
        %v2716 = vpop.f32.mrb[0].mxu0
        %v2717 = vpop.f32.mrb[0].mxu0
        %v2718 = vadd.f32 0.0, %v2717
        %v2719 = vpop.f32.mrb[0].mxu0
        %2720 = vmatprep.mubr.bf16.mxu0 0
        %2721 = vmatmul.mubr.bf16.gmra.mrb[0].mxu0 %v2607
        %v2722 = vpop.f32.mrb[0].mxu0
        %v2723 = vadd.f32 0.0, %v2722
        %v2724 = vpop.f32.mrb[0].mxu0
        %v2725 = vpop.f32.mrb[0].mxu0
        %v2726 = vadd.f32 0.0, %v2725
        %v2727 = vpop.f32.mrb[0].mxu0
        %2728 = vmatprep.mubr.bf16.mxu0 0
        %2729 = vmatmul.mubr.bf16.gmra.mrb[0].mxu0 %v2610
        %v2730 = vpop.f32.mrb[0].mxu0
        %v2731 = vadd.f32 0.0, %v2730
        %v2732 = vpop.f32.mrb[0].mxu0
        %v2733 = vpop.f32.mrb[0].mxu0
        %v2734 = vadd.f32 0.0, %v2733
        %v2735 = vpop.f32.mrb[0].mxu0
        %2736 = vmatprep.mubr.bf16.mxu0 0
        %2737 = vmatmul.mubr.bf16.gmra.mrb[0].mxu0 %v2613
        %v2738 = vpop.f32.mrb[0].mxu0
        %v2739 = vadd.f32 0.0, %v2738
        %v2740 = vpop.f32.mrb[0].mxu0
        %v2741 = vpop.f32.mrb[0].mxu0
        %v2742 = vadd.f32 0.0, %v2741
        %v2743 = vpop.f32.mrb[0].mxu0
        %2744 = vmatprep.mubr.bf16.mxu0 0
        %2745 = vmatmul.mubr.bf16.gmra.mrb[0].mxu0 %v2616
        %v2746 = vpop.f32.mrb[0].mxu0
        %v2747 = vadd.f32 0.0, %v2746
        %v2748 = vpop.f32.mrb[0].mxu0
        %v2749 = vpop.f32.mrb[0].mxu0
        %v2750 = vadd.f32 0.0, %v2749
        %v2751 = vpop.f32.mrb[0].mxu0
        %2752 = vmatprep.mubr.bf16.mxu0 0
        %2753 = vmatmul.mubr.bf16.gmra.mrb[0].mxu0 %v2619
        %v2754 = vpop.f32.mrb[0].mxu0
        %v2755 = vadd.f32 0.0, %v2754
        %v2756 = vpop.f32.mrb[0].mxu0
        %v2757 = vpop.f32.mrb[0].mxu0
        %v2758 = vadd.f32 0.0, %v2757
        %v2759 = vpop.f32.mrb[0].mxu0
        %2760 = vmatprep.mubr.bf16.mxu0 0
        %2761 = vmatmul.mubr.bf16.gmra.mrb[0].mxu0 %v2622
        %v2762 = vpop.f32.mrb[0].mxu0
        %v2763 = vadd.f32 0.0, %v2762
        %v2764 = vpop.f32.mrb[0].mxu0
        %v2765 = vpop.f32.mrb[0].mxu0
        %v2766 = vadd.f32 0.0, %v2765
        %v2767 = vpop.f32.mrb[0].mxu0
        %2768 = vmatprep.mubr.bf16.mxu0 0
        %2769 = vmatmul.mubr.bf16.gmra.mrb[0].mxu0 %v2625
        %v2770 = vpop.f32.mrb[0].mxu0
        %v2771 = vadd.f32 0.0, %v2770
        %v2772 = vpop.f32.mrb[0].mxu0
        %v2773 = vpop.f32.mrb[0].mxu0
        %v2774 = vadd.f32 0.0, %v2773
        %v2775 = vpop.f32.mrb[0].mxu0
        %2776 = vmatprep.mubr.bf16.mxu0 0
        %2777 = vmatmul.mubr.bf16.gmra.mrb[0].mxu0 %v2628
        %v2778 = vpop.f32.mrb[0].mxu0
        %v2779 = vadd.f32 0.0, %v2778
        %v2780 = vpop.f32.mrb[0].mxu0
        %v2781 = vpop.f32.mrb[0].mxu0
        %v2782 = vadd.f32 0.0, %v2781
        %v2783 = vpop.f32.mrb[0].mxu0
        %2784 = vmatprep.mubr.bf16.mxu0 0
        %2785 = vmatmul.mubr.bf16.gmra.mrb[0].mxu0 %v2631
        %v2786 = vpop.f32.mrb[0].mxu0
        %v2787 = vadd.f32 0.0, %v2786
        %v2788 = vpop.f32.mrb[0].mxu0
        %v2789 = vpop.f32.mrb[0].mxu0
        %v2790 = vadd.f32 0.0, %v2789
        %v2791 = vpop.f32.mrb[0].mxu0
        %2792 = vmatprep.mubr.bf16.mxu0 0
        %2793 = vmatmul.mubr.bf16.gmra.mrb[0].mxu0 %v2634
        %v2794 = vpop.f32.mrb[0].mxu0
        %v2795 = vadd.f32 0.0, %v2794
        %v2796 = vpop.f32.mrb[0].mxu0
        %v2797 = vpop.f32.mrb[0].mxu0
        %v2798 = vadd.f32 0.0, %v2797
        %v2799 = vpop.f32.mrb[0].mxu0
        %2800 = vmatprep.mubr.bf16.mxu0 0
        %2801 = vmatmul.mubr.bf16.gmra.mrb[0].mxu0 %v2637
        %v2802 = vpop.f32.mrb[0].mxu0
        %v2803 = vadd.f32 0.0, %v2802
        %v2804 = vpop.f32.mrb[0].mxu0
        %v2805 = vpop.f32.mrb[0].mxu0
        %v2806 = vadd.f32 0.0, %v2805
        %v2807 = vpop.f32.mrb[0].mxu0
        %2808 = vmatprep.mubr.bf16.mxu0 0
        %2809 = vmatmul.mubr.bf16.gmra.mrb[0].mxu0 %v2640
        %v2810 = vpop.f32.mrb[0].mxu0
        %v2811 = vadd.f32 0.0, %v2810
        %v2812 = vpop.f32.mrb[0].mxu0
        %v2813 = vpop.f32.mrb[0].mxu0
        %v2814 = vadd.f32 0.0, %v2813
        %v2815 = vpop.f32.mrb[0].mxu0
        %2816 = vmatprep.mubr.bf16.mxu0 0
        %2817 = vmatmul.mubr.bf16.gmra.mrb[0].mxu0 %v2643
        %v2818 = vpop.f32.mrb[0].mxu0
        %v2819 = vadd.f32 0.0, %v2818
        %v2820 = vpop.f32.mrb[0].mxu0
        %v2821 = vpop.f32.mrb[0].mxu0
        %v2822 = vadd.f32 0.0, %v2821
        %v2823 = vpop.f32.mrb[0].mxu0
        %2824 = vdwg.mxu0
        %v2825 = vadd.f32 %v2386, %v2683
        %v2826 = vadd.f32 %v2387, %v2686
        %v2827 = vadd.f32 %v2388, %v2691
        %v2828 = vadd.f32 %v2389, %v2694
        %v2829 = vadd.f32 %v2390, %v2699
        %v2830 = vadd.f32 %v2391, %v2702
        %v2831 = vadd.f32 %v2392, %v2707
        %v2832 = vadd.f32 %v2393, %v2710
        %v2833 = vadd.f32 %v2394, %v2715
        %v2834 = vadd.f32 %v2395, %v2718
        %v2835 = vadd.f32 %v2396, %v2723
        %v2836 = vadd.f32 %v2397, %v2726
        %v2837 = vadd.f32 %v2398, %v2731
        %v2838 = vadd.f32 %v2399, %v2734
        %v2839 = vadd.f32 %v2400, %v2739
        %v2840 = vadd.f32 %v2401, %v2742
        %v2841 = vadd.f32 %v2402, %v2747
        %v2842 = vadd.f32 %v2403, %v2750
        %v2843 = vadd.f32 %v2404, %v2755
        %v2844 = vadd.f32 %v2405, %v2758
        %v2845 = vadd.f32 %v2406, %v2763
        %v2846 = vadd.f32 %v2407, %v2766
        %v2847 = vadd.f32 %v2408, %v2771
        %v2848 = vadd.f32 %v2409, %v2774
        %v2849 = vadd.f32 %v2410, %v2779
        %v2850 = vadd.f32 %v2411, %v2782
        %v2851 = vadd.f32 %v2412, %v2787
        %v2852 = vadd.f32 %v2413, %v2790
        %v2853 = vadd.f32 %v2414, %v2795
        %v2854 = vadd.f32 %v2415, %v2798
        %v2855 = vadd.f32 %v2416, %v2803
        %v2856 = vadd.f32 %v2417, %v2806
        %v2857 = vadd.f32 %v2418, %v2811
        %v2858 = vadd.f32 %v2419, %v2814
        %v2859 = vadd.f32 %v2420, %v2819
        %v2860 = vadd.f32 %v2421, %v2822
        %v2861 = vld [vmem:[%s167 + $0xa0] sm:$0x7]
        %s2862 = scalar_lea.vmem %s1, 14
        %v2863 = vld [vmem:[%s2862] sm:$0x3]
        %v2865 = vunpack.c.l.b16 %v2861
        %v2866 = vpack.c.b16 %v2865, %v2865
        %vm2867 = vsmask.f32 5376
        %v2869 = vshrl.u32 %v2535, 16
        %v2871 = vrot.slane %v2869, 2
        %v2872 = vshll.u32 %v2535, 16
        %v2874 = vrot.slane %v2872, 3
        %v2875 = vor.u32 %v2871, %v2874
        %v2877 = vshrl.u32 %v2536, 16
        %v2879 = vrot.slane %v2877, 2
        %v2880 = vshll.u32 %v2536, 16
        %v2882 = vrot.slane %v2880, 3
        %v2883 = vor.u32 %v2879, %v2882
        %v2884 = vsel %vm2867, %v2875, %v2883
        %v2886 = vshrl.u32 %v2537, 16
        %v2888 = vrot.slane %v2886, 2
        %v2889 = vshll.u32 %v2537, 16
        %v2891 = vrot.slane %v2889, 3
        %v2892 = vor.u32 %v2888, %v2891
        %v2893 = vsel %vm2867, %v2883, %v2892
        %v2895 = vshrl.u32 %v2538, 16
        %v2897 = vrot.slane %v2895, 2
        %v2898 = vshll.u32 %v2538, 16
        %v2900 = vrot.slane %v2898, 3
        %v2901 = vor.u32 %v2897, %v2900
        %v2902 = vsel %vm2867, %v2892, %v2901
        %v2904 = vshrl.u32 %v2539, 16
        %v2906 = vrot.slane %v2904, 2
        %v2907 = vshll.u32 %v2539, 16
        %v2909 = vrot.slane %v2907, 3
        %v2910 = vor.u32 %v2906, %v2909
        %v2911 = vsel %vm2867, %v2901, %v2910
        %v2913 = vshrl.u32 %v2540, 16
        %v2915 = vrot.slane %v2913, 2
        %v2916 = vshll.u32 %v2540, 16
        %v2918 = vrot.slane %v2916, 3
        %v2919 = vor.u32 %v2915, %v2918
        %v2920 = vsel %vm2867, %v2910, %v2919
        %v2922 = vshrl.u32 %v2541, 16
        %v2924 = vrot.slane %v2922, 2
        %v2925 = vshll.u32 %v2541, 16
        %v2927 = vrot.slane %v2925, 3
        %v2928 = vor.u32 %v2924, %v2927
        %v2929 = vsel %vm2867, %v2919, %v2928
        %v2931 = vshrl.u32 %v2542, 16
        %v2933 = vrot.slane %v2931, 2
        %v2934 = vshll.u32 %v2542, 16
        %v2936 = vrot.slane %v2934, 3
        %v2937 = vor.u32 %v2933, %v2936
        %v2938 = vsel %vm2867, %v2928, %v2937
        %v2940 = vshrl.u32 %v2543, 16
        %v2942 = vrot.slane %v2940, 2
        %v2943 = vshll.u32 %v2543, 16
        %v2945 = vrot.slane %v2943, 3
        %v2946 = vor.u32 %v2942, %v2945
        %v2947 = vsel %vm2867, %v2937, %v2946
        %v2949 = vshrl.u32 %v2544, 16
        %v2951 = vrot.slane %v2949, 2
        %v2952 = vshll.u32 %v2544, 16
        %v2954 = vrot.slane %v2952, 3
        %v2955 = vor.u32 %v2951, %v2954
        %v2956 = vsel %vm2867, %v2946, %v2955
        %v2958 = vshrl.u32 %v2545, 16
        %v2960 = vrot.slane %v2958, 2
        %v2961 = vshll.u32 %v2545, 16
        %v2963 = vrot.slane %v2961, 3
        %v2964 = vor.u32 %v2960, %v2963
        %v2965 = vsel %vm2867, %v2955, %v2964
        %v2967 = vshrl.u32 %v2546, 16
        %v2969 = vrot.slane %v2967, 2
        %v2970 = vshll.u32 %v2546, 16
        %v2972 = vrot.slane %v2970, 3
        %v2973 = vor.u32 %v2969, %v2972
        %v2974 = vsel %vm2867, %v2964, %v2973
        %v2976 = vshrl.u32 %v2547, 16
        %v2978 = vrot.slane %v2976, 2
        %v2979 = vshll.u32 %v2547, 16
        %v2981 = vrot.slane %v2979, 3
        %v2982 = vor.u32 %v2978, %v2981
        %v2983 = vsel %vm2867, %v2973, %v2982
        %v2985 = vshrl.u32 %v2548, 16
        %v2987 = vrot.slane %v2985, 2
        %v2988 = vshll.u32 %v2548, 16
        %v2990 = vrot.slane %v2988, 3
        %v2991 = vor.u32 %v2987, %v2990
        %v2992 = vsel %vm2867, %v2982, %v2991
        %v2994 = vshrl.u32 %v2549, 16
        %v2996 = vrot.slane %v2994, 2
        %v2997 = vshll.u32 %v2549, 16
        %v2999 = vrot.slane %v2997, 3
        %v3000 = vor.u32 %v2996, %v2999
        %v3001 = vsel %vm2867, %v2991, %v3000
        %v3003 = vshrl.u32 %v2550, 16
        %v3005 = vrot.slane %v3003, 2
        %v3006 = vshll.u32 %v2550, 16
        %v3008 = vrot.slane %v3006, 3
        %v3009 = vor.u32 %v3005, %v3008
        %v3010 = vsel %vm2867, %v3000, %v3009
        %v3012 = vshrl.u32 %v2551, 16
        %v3014 = vrot.slane %v3012, 2
        %v3015 = vshll.u32 %v2551, 16
        %v3017 = vrot.slane %v3015, 3
        %v3018 = vor.u32 %v3014, %v3017
        %v3019 = vsel %vm2867, %v3009, %v3018
        %v3021 = vshrl.u32 %v2552, 16
        %v3023 = vrot.slane %v3021, 2
        %v3024 = vshll.u32 %v2552, 16
        %v3026 = vrot.slane %v3024, 3
        %v3027 = vor.u32 %v3023, %v3026
        %v3028 = vsel %vm2867, %v3018, %v3027
        %v3030 = vshrl.u32 %v2866, 16
        %v3032 = vrot.slane %v3030, 2
        %v3033 = vshll.u32 %v2866, 16
        %v3035 = vrot.slane %v3033, 3
        %v3036 = vor.u32 %v3032, %v3035
        %v3037 = vsel %vm2867, %v3027, %v3036
        %v3039 = vsel %vm456, %v2884, 0
        %v3042 = vsel %vm456, %v2893, 0
        %v3045 = vsel %vm456, %v2902, 0
        %v3048 = vsel %vm456, %v2911, 0
        %v3051 = vsel %vm456, %v2920, 0
        %v3054 = vsel %vm456, %v2929, 0
        %v3057 = vsel %vm456, %v2938, 0
        %v3060 = vsel %vm456, %v2947, 0
        %v3063 = vsel %vm456, %v2956, 0
        %v3066 = vsel %vm456, %v2965, 0
        %v3069 = vsel %vm456, %v2974, 0
        %v3072 = vsel %vm456, %v2983, 0
        %v3075 = vsel %vm456, %v2992, 0
        %v3078 = vsel %vm456, %v3001, 0
        %v3081 = vsel %vm456, %v3010, 0
        %v3084 = vsel %vm456, %v3019, 0
        %v3087 = vsel %vm456, %v3028, 0
        %v3090 = vsel %vm456, %v3037, 0
        %v3093 = vsel %vm511, %v2863, 0
        %3095 = vmatprep.subr.bf16.mxu0 0
        %3096 = vmatpush1.bf16.msra.mxu0 %v3093
        %3097 = vmatprep.subr.bf16.mxu0 0
        %3098 = vmatpush1.bf16.msra.mxu0 0
        %3099 = vmatprep.subr.bf16.mxu0 0
        %3100 = vmatpush1.bf16.msra.mxu0 0
        %3101 = vmatprep.subr.bf16.mxu0 0
        %3102 = vmatpush1.bf16.msra.mxu0 0
        %3103 = vmatprep.subr.bf16.mxu0 0
        %3104 = vmatpush1.bf16.msra.mxu0 0
        %3105 = vmatprep.subr.bf16.mxu0 0
        %3106 = vmatpush1.bf16.msra.mxu0 0
        %3107 = vmatprep.subr.bf16.mxu0 0
        %3108 = vmatpush1.bf16.msra.mxu0 0
        %3109 = vmatprep.subr.bf16.mxu0 0
        %3110 = vmatpush1.bf16.msra.mxu0 0
        %3111 = vmatprep.subr.bf16.mxu0 0
        %3112 = vmatpush1.bf16.msra.mxu0 0
        %3113 = vmatprep.subr.bf16.mxu0 0
        %3114 = vmatpush1.bf16.msra.mxu0 0
        %3115 = vmatprep.subr.bf16.mxu0 0
        %3116 = vmatpush1.bf16.msra.mxu0 0
        %3117 = vmatprep.subr.bf16.mxu0 0
        %3118 = vmatpush1.bf16.msra.mxu0 0
        %3119 = vmatprep.subr.bf16.mxu0 0
        %3120 = vmatpush1.bf16.msra.mxu0 0
        %3121 = vmatprep.subr.bf16.mxu0 0
        %3122 = vmatpush1.bf16.msra.mxu0 0
        %3123 = vmatprep.subr.bf16.mxu0 0
        %3124 = vmatpush1.bf16.msra.mxu0 0
        %3125 = vmatprep.subr.bf16.mxu0 0
        %3126 = vmatpush1.bf16.msra.mxu0 0
        %3127 = vmatprep.mubr.bf16.mxu0 0
        %3128 = vmatmul.mubr.bf16.gmra.mrb[0].mxu0 %v3039
        %v3129 = vpop.f32.mrb[0].mxu0
        %v3130 = vadd.f32 0.0, %v3129
        %v3131 = vpop.f32.mrb[0].mxu0
        %v3132 = vpop.f32.mrb[0].mxu0
        %v3133 = vadd.f32 0.0, %v3132
        %v3134 = vpop.f32.mrb[0].mxu0
        %3135 = vmatprep.mubr.bf16.mxu0 0
        %3136 = vmatmul.mubr.bf16.gmra.mrb[0].mxu0 %v3042
        %v3137 = vpop.f32.mrb[0].mxu0
        %v3138 = vadd.f32 0.0, %v3137
        %v3139 = vpop.f32.mrb[0].mxu0
        %v3140 = vpop.f32.mrb[0].mxu0
        %v3141 = vadd.f32 0.0, %v3140
        %v3142 = vpop.f32.mrb[0].mxu0
        %3143 = vmatprep.mubr.bf16.mxu0 0
        %3144 = vmatmul.mubr.bf16.gmra.mrb[0].mxu0 %v3045
        %v3145 = vpop.f32.mrb[0].mxu0
        %v3146 = vadd.f32 0.0, %v3145
        %v3147 = vpop.f32.mrb[0].mxu0
        %v3148 = vpop.f32.mrb[0].mxu0
        %v3149 = vadd.f32 0.0, %v3148
        %v3150 = vpop.f32.mrb[0].mxu0
        %3151 = vmatprep.mubr.bf16.mxu0 0
        %3152 = vmatmul.mubr.bf16.gmra.mrb[0].mxu0 %v3048
        %v3153 = vpop.f32.mrb[0].mxu0
        %v3154 = vadd.f32 0.0, %v3153
        %v3155 = vpop.f32.mrb[0].mxu0
        %v3156 = vpop.f32.mrb[0].mxu0
        %v3157 = vadd.f32 0.0, %v3156
        %v3158 = vpop.f32.mrb[0].mxu0
        %3159 = vmatprep.mubr.bf16.mxu0 0
        %3160 = vmatmul.mubr.bf16.gmra.mrb[0].mxu0 %v3051
        %v3161 = vpop.f32.mrb[0].mxu0
        %v3162 = vadd.f32 0.0, %v3161
        %v3163 = vpop.f32.mrb[0].mxu0
        %v3164 = vpop.f32.mrb[0].mxu0
        %v3165 = vadd.f32 0.0, %v3164
        %v3166 = vpop.f32.mrb[0].mxu0
        %3167 = vmatprep.mubr.bf16.mxu0 0
        %3168 = vmatmul.mubr.bf16.gmra.mrb[0].mxu0 %v3054
        %v3169 = vpop.f32.mrb[0].mxu0
        %v3170 = vadd.f32 0.0, %v3169
        %v3171 = vpop.f32.mrb[0].mxu0
        %v3172 = vpop.f32.mrb[0].mxu0
        %v3173 = vadd.f32 0.0, %v3172
        %v3174 = vpop.f32.mrb[0].mxu0
        %3175 = vmatprep.mubr.bf16.mxu0 0
        %3176 = vmatmul.mubr.bf16.gmra.mrb[0].mxu0 %v3057
        %v3177 = vpop.f32.mrb[0].mxu0
        %v3178 = vadd.f32 0.0, %v3177
        %v3179 = vpop.f32.mrb[0].mxu0
        %v3180 = vpop.f32.mrb[0].mxu0
        %v3181 = vadd.f32 0.0, %v3180
        %v3182 = vpop.f32.mrb[0].mxu0
        %3183 = vmatprep.mubr.bf16.mxu0 0
        %3184 = vmatmul.mubr.bf16.gmra.mrb[0].mxu0 %v3060
        %v3185 = vpop.f32.mrb[0].mxu0
        %v3186 = vadd.f32 0.0, %v3185
        %v3187 = vpop.f32.mrb[0].mxu0
        %v3188 = vpop.f32.mrb[0].mxu0
        %v3189 = vadd.f32 0.0, %v3188
        %v3190 = vpop.f32.mrb[0].mxu0
        %3191 = vmatprep.mubr.bf16.mxu0 0
        %3192 = vmatmul.mubr.bf16.gmra.mrb[0].mxu0 %v3063
        %v3193 = vpop.f32.mrb[0].mxu0
        %v3194 = vadd.f32 0.0, %v3193
        %v3195 = vpop.f32.mrb[0].mxu0
        %v3196 = vpop.f32.mrb[0].mxu0
        %v3197 = vadd.f32 0.0, %v3196
        %v3198 = vpop.f32.mrb[0].mxu0
        %3199 = vmatprep.mubr.bf16.mxu0 0
        %3200 = vmatmul.mubr.bf16.gmra.mrb[0].mxu0 %v3066
        %v3201 = vpop.f32.mrb[0].mxu0
        %v3202 = vadd.f32 0.0, %v3201
        %v3203 = vpop.f32.mrb[0].mxu0
        %v3204 = vpop.f32.mrb[0].mxu0
        %v3205 = vadd.f32 0.0, %v3204
        %v3206 = vpop.f32.mrb[0].mxu0
        %3207 = vmatprep.mubr.bf16.mxu0 0
        %3208 = vmatmul.mubr.bf16.gmra.mrb[0].mxu0 %v3069
        %v3209 = vpop.f32.mrb[0].mxu0
        %v3210 = vadd.f32 0.0, %v3209
        %v3211 = vpop.f32.mrb[0].mxu0
        %v3212 = vpop.f32.mrb[0].mxu0
        %v3213 = vadd.f32 0.0, %v3212
        %v3214 = vpop.f32.mrb[0].mxu0
        %3215 = vmatprep.mubr.bf16.mxu0 0
        %3216 = vmatmul.mubr.bf16.gmra.mrb[0].mxu0 %v3072
        %v3217 = vpop.f32.mrb[0].mxu0
        %v3218 = vadd.f32 0.0, %v3217
        %v3219 = vpop.f32.mrb[0].mxu0
        %v3220 = vpop.f32.mrb[0].mxu0
        %v3221 = vadd.f32 0.0, %v3220
        %v3222 = vpop.f32.mrb[0].mxu0
        %3223 = vmatprep.mubr.bf16.mxu0 0
        %3224 = vmatmul.mubr.bf16.gmra.mrb[0].mxu0 %v3075
        %v3225 = vpop.f32.mrb[0].mxu0
        %v3226 = vadd.f32 0.0, %v3225
        %v3227 = vpop.f32.mrb[0].mxu0
        %v3228 = vpop.f32.mrb[0].mxu0
        %v3229 = vadd.f32 0.0, %v3228
        %v3230 = vpop.f32.mrb[0].mxu0
        %3231 = vmatprep.mubr.bf16.mxu0 0
        %3232 = vmatmul.mubr.bf16.gmra.mrb[0].mxu0 %v3078
        %v3233 = vpop.f32.mrb[0].mxu0
        %v3234 = vadd.f32 0.0, %v3233
        %v3235 = vpop.f32.mrb[0].mxu0
        %v3236 = vpop.f32.mrb[0].mxu0
        %v3237 = vadd.f32 0.0, %v3236
        %v3238 = vpop.f32.mrb[0].mxu0
        %3239 = vmatprep.mubr.bf16.mxu0 0
        %3240 = vmatmul.mubr.bf16.gmra.mrb[0].mxu0 %v3081
        %v3241 = vpop.f32.mrb[0].mxu0
        %v3242 = vadd.f32 0.0, %v3241
        %v3243 = vpop.f32.mrb[0].mxu0
        %v3244 = vpop.f32.mrb[0].mxu0
        %v3245 = vadd.f32 0.0, %v3244
        %v3246 = vpop.f32.mrb[0].mxu0
        %3247 = vmatprep.mubr.bf16.mxu0 0
        %3248 = vmatmul.mubr.bf16.gmra.mrb[0].mxu0 %v3084
        %v3249 = vpop.f32.mrb[0].mxu0
        %v3250 = vadd.f32 0.0, %v3249
        %v3251 = vpop.f32.mrb[0].mxu0
        %v3252 = vpop.f32.mrb[0].mxu0
        %v3253 = vadd.f32 0.0, %v3252
        %v3254 = vpop.f32.mrb[0].mxu0
        %3255 = vmatprep.mubr.bf16.mxu0 0
        %3256 = vmatmul.mubr.bf16.gmra.mrb[0].mxu0 %v3087
        %v3257 = vpop.f32.mrb[0].mxu0
        %v3258 = vadd.f32 0.0, %v3257
        %v3259 = vpop.f32.mrb[0].mxu0
        %v3260 = vpop.f32.mrb[0].mxu0
        %v3261 = vadd.f32 0.0, %v3260
        %v3262 = vpop.f32.mrb[0].mxu0
        %3263 = vmatprep.mubr.bf16.mxu0 0
        %3264 = vmatmul.mubr.bf16.gmra.mrb[0].mxu0 %v3090
        %v3265 = vpop.f32.mrb[0].mxu0
        %v3266 = vadd.f32 0.0, %v3265
        %v3267 = vpop.f32.mrb[0].mxu0
        %v3268 = vpop.f32.mrb[0].mxu0
        %v3269 = vadd.f32 0.0, %v3268
        %v3270 = vpop.f32.mrb[0].mxu0
        %3271 = vdwg.mxu0
        %v3272 = vadd.f32 %v2825, %v3130
        %v3273 = vadd.f32 %v2826, %v3133
        %v3274 = vadd.f32 %v2827, %v3138
        %v3275 = vadd.f32 %v2828, %v3141
        %v3276 = vadd.f32 %v2829, %v3146
        %v3277 = vadd.f32 %v2830, %v3149
        %v3278 = vadd.f32 %v2831, %v3154
        %v3279 = vadd.f32 %v2832, %v3157
        %v3280 = vadd.f32 %v2833, %v3162
        %v3281 = vadd.f32 %v2834, %v3165
        %v3282 = vadd.f32 %v2835, %v3170
        %v3283 = vadd.f32 %v2836, %v3173
        %v3284 = vadd.f32 %v2837, %v3178
        %v3285 = vadd.f32 %v2838, %v3181
        %v3286 = vadd.f32 %v2839, %v3186
        %v3287 = vadd.f32 %v2840, %v3189
        %v3288 = vadd.f32 %v2841, %v3194
        %v3289 = vadd.f32 %v2842, %v3197
        %v3290 = vadd.f32 %v2843, %v3202
        %v3291 = vadd.f32 %v2844, %v3205
        %v3292 = vadd.f32 %v2845, %v3210
        %v3293 = vadd.f32 %v2846, %v3213
        %v3294 = vadd.f32 %v2847, %v3218
        %v3295 = vadd.f32 %v2848, %v3221
        %v3296 = vadd.f32 %v2849, %v3226
        %v3297 = vadd.f32 %v2850, %v3229
        %v3298 = vadd.f32 %v2851, %v3234
        %v3299 = vadd.f32 %v2852, %v3237
        %v3300 = vadd.f32 %v2853, %v3242
        %v3301 = vadd.f32 %v2854, %v3245
        %v3302 = vadd.f32 %v2855, %v3250
        %v3303 = vadd.f32 %v2856, %v3253
        %v3304 = vadd.f32 %v2857, %v3258
        %v3305 = vadd.f32 %v2858, %v3261
        %v3306 = vadd.f32 %v2859, %v3266
        %v3307 = vadd.f32 %v2860, %v3269
        %v3308 = vld [vmem:[%s167 + $0x10] sm:$0x8]
        %s3309 = scalar_lea.vmem %s1, 16
        %v3310 = vld [vmem:[%s3309] sm:$0x3]
        %v3312 = vunpack.c.l.b16 %v3308
        %v3313 = vpack.c.b16 %v2499, %v3312
        %vm3314 = vcmask 1044480
        %v3315 = vrot.slane %v3313, 3
        %v3316 = vrot.slane %v2536, 3
        %v3317 = vsel %vm3314, %v3315, %v3316
        %v3318 = vrot.slane %v2537, 3
        %v3319 = vsel %vm3314, %v3316, %v3318
        %v3320 = vrot.slane %v2538, 3
        %v3321 = vsel %vm3314, %v3318, %v3320
        %v3322 = vrot.slane %v2539, 3
        %v3323 = vsel %vm3314, %v3320, %v3322
        %v3324 = vrot.slane %v2540, 3
        %v3325 = vsel %vm3314, %v3322, %v3324
        %v3326 = vrot.slane %v2541, 3
        %v3327 = vsel %vm3314, %v3324, %v3326
        %v3328 = vrot.slane %v2542, 3
        %v3329 = vsel %vm3314, %v3326, %v3328
        %v3330 = vrot.slane %v2543, 3
        %v3331 = vsel %vm3314, %v3328, %v3330
        %v3332 = vrot.slane %v2544, 3
        %v3333 = vsel %vm3314, %v3330, %v3332
        %v3334 = vrot.slane %v2545, 3
        %v3335 = vsel %vm3314, %v3332, %v3334
        %v3336 = vrot.slane %v2546, 3
        %v3337 = vsel %vm3314, %v3334, %v3336
        %v3338 = vrot.slane %v2547, 3
        %v3339 = vsel %vm3314, %v3336, %v3338
        %v3340 = vrot.slane %v2548, 3
        %v3341 = vsel %vm3314, %v3338, %v3340
        %v3342 = vrot.slane %v2549, 3
        %v3343 = vsel %vm3314, %v3340, %v3342
        %v3344 = vrot.slane %v2550, 3
        %v3345 = vsel %vm3314, %v3342, %v3344
        %v3346 = vrot.slane %v2551, 3
        %v3347 = vsel %vm3314, %v3344, %v3346
        %v3348 = vrot.slane %v2552, 3
        %v3349 = vsel %vm3314, %v3346, %v3348
        %v3350 = vrot.slane %v2866, 3
        %v3351 = vsel %vm3314, %v3348, %v3350
        %v3353 = vsel %vm456, %v3317, 0
        %v3356 = vsel %vm456, %v3319, 0
        %v3359 = vsel %vm456, %v3321, 0
        %v3362 = vsel %vm456, %v3323, 0
        %v3365 = vsel %vm456, %v3325, 0
        %v3368 = vsel %vm456, %v3327, 0
        %v3371 = vsel %vm456, %v3329, 0
        %v3374 = vsel %vm456, %v3331, 0
        %v3377 = vsel %vm456, %v3333, 0
        %v3380 = vsel %vm456, %v3335, 0
        %v3383 = vsel %vm456, %v3337, 0
        %v3386 = vsel %vm456, %v3339, 0
        %v3389 = vsel %vm456, %v3341, 0
        %v3392 = vsel %vm456, %v3343, 0
        %v3395 = vsel %vm456, %v3345, 0
        %v3398 = vsel %vm456, %v3347, 0
        %v3401 = vsel %vm456, %v3349, 0
        %v3404 = vsel %vm456, %v3351, 0
        %v3407 = vsel %vm511, %v3310, 0
        %3409 = vmatprep.subr.bf16.mxu0 0
        %3410 = vmatpush1.bf16.msra.mxu0 %v3407
        %3411 = vmatprep.subr.bf16.mxu0 0
        %3412 = vmatpush1.bf16.msra.mxu0 0
        %3413 = vmatprep.subr.bf16.mxu0 0
        %3414 = vmatpush1.bf16.msra.mxu0 0
        %3415 = vmatprep.subr.bf16.mxu0 0
        %3416 = vmatpush1.bf16.msra.mxu0 0
        %3417 = vmatprep.subr.bf16.mxu0 0
        %3418 = vmatpush1.bf16.msra.mxu0 0
        %3419 = vmatprep.subr.bf16.mxu0 0
        %3420 = vmatpush1.bf16.msra.mxu0 0
        %3421 = vmatprep.subr.bf16.mxu0 0
        %3422 = vmatpush1.bf16.msra.mxu0 0
        %3423 = vmatprep.subr.bf16.mxu0 0
        %3424 = vmatpush1.bf16.msra.mxu0 0
        %3425 = vmatprep.subr.bf16.mxu0 0
        %3426 = vmatpush1.bf16.msra.mxu0 0
        %3427 = vmatprep.subr.bf16.mxu0 0
        %3428 = vmatpush1.bf16.msra.mxu0 0
        %3429 = vmatprep.subr.bf16.mxu0 0
        %3430 = vmatpush1.bf16.msra.mxu0 0
        %3431 = vmatprep.subr.bf16.mxu0 0
        %3432 = vmatpush1.bf16.msra.mxu0 0
        %3433 = vmatprep.subr.bf16.mxu0 0
        %3434 = vmatpush1.bf16.msra.mxu0 0
        %3435 = vmatprep.subr.bf16.mxu0 0
        %3436 = vmatpush1.bf16.msra.mxu0 0
        %3437 = vmatprep.subr.bf16.mxu0 0
        %3438 = vmatpush1.bf16.msra.mxu0 0
        %3439 = vmatprep.subr.bf16.mxu0 0
        %3440 = vmatpush1.bf16.msra.mxu0 0
        %3441 = vmatprep.mubr.bf16.mxu0 0
        %3442 = vmatmul.mubr.bf16.gmra.mrb[0].mxu0 %v3353
        %v3443 = vpop.f32.mrb[0].mxu0
        %v3444 = vadd.f32 0.0, %v3443
        %v3445 = vpop.f32.mrb[0].mxu0
        %v3446 = vpop.f32.mrb[0].mxu0
        %v3447 = vadd.f32 0.0, %v3446
        %v3448 = vpop.f32.mrb[0].mxu0
        %3449 = vmatprep.mubr.bf16.mxu0 0
        %3450 = vmatmul.mubr.bf16.gmra.mrb[0].mxu0 %v3356
        %v3451 = vpop.f32.mrb[0].mxu0
        %v3452 = vadd.f32 0.0, %v3451
        %v3453 = vpop.f32.mrb[0].mxu0
        %v3454 = vpop.f32.mrb[0].mxu0
        %v3455 = vadd.f32 0.0, %v3454
        %v3456 = vpop.f32.mrb[0].mxu0
        %3457 = vmatprep.mubr.bf16.mxu0 0
        %3458 = vmatmul.mubr.bf16.gmra.mrb[0].mxu0 %v3359
        %v3459 = vpop.f32.mrb[0].mxu0
        %v3460 = vadd.f32 0.0, %v3459
        %v3461 = vpop.f32.mrb[0].mxu0
        %v3462 = vpop.f32.mrb[0].mxu0
        %v3463 = vadd.f32 0.0, %v3462
        %v3464 = vpop.f32.mrb[0].mxu0
        %3465 = vmatprep.mubr.bf16.mxu0 0
        %3466 = vmatmul.mubr.bf16.gmra.mrb[0].mxu0 %v3362
        %v3467 = vpop.f32.mrb[0].mxu0
        %v3468 = vadd.f32 0.0, %v3467
        %v3469 = vpop.f32.mrb[0].mxu0
        %v3470 = vpop.f32.mrb[0].mxu0
        %v3471 = vadd.f32 0.0, %v3470
        %v3472 = vpop.f32.mrb[0].mxu0
        %3473 = vmatprep.mubr.bf16.mxu0 0
        %3474 = vmatmul.mubr.bf16.gmra.mrb[0].mxu0 %v3365
        %v3475 = vpop.f32.mrb[0].mxu0
        %v3476 = vadd.f32 0.0, %v3475
        %v3477 = vpop.f32.mrb[0].mxu0
        %v3478 = vpop.f32.mrb[0].mxu0
        %v3479 = vadd.f32 0.0, %v3478
        %v3480 = vpop.f32.mrb[0].mxu0
        %3481 = vmatprep.mubr.bf16.mxu0 0
        %3482 = vmatmul.mubr.bf16.gmra.mrb[0].mxu0 %v3368
        %v3483 = vpop.f32.mrb[0].mxu0
        %v3484 = vadd.f32 0.0, %v3483
        %v3485 = vpop.f32.mrb[0].mxu0
        %v3486 = vpop.f32.mrb[0].mxu0
        %v3487 = vadd.f32 0.0, %v3486
        %v3488 = vpop.f32.mrb[0].mxu0
        %3489 = vmatprep.mubr.bf16.mxu0 0
        %3490 = vmatmul.mubr.bf16.gmra.mrb[0].mxu0 %v3371
        %v3491 = vpop.f32.mrb[0].mxu0
        %v3492 = vadd.f32 0.0, %v3491
        %v3493 = vpop.f32.mrb[0].mxu0
        %v3494 = vpop.f32.mrb[0].mxu0
        %v3495 = vadd.f32 0.0, %v3494
        %v3496 = vpop.f32.mrb[0].mxu0
        %3497 = vmatprep.mubr.bf16.mxu0 0
        %3498 = vmatmul.mubr.bf16.gmra.mrb[0].mxu0 %v3374
        %v3499 = vpop.f32.mrb[0].mxu0
        %v3500 = vadd.f32 0.0, %v3499
        %v3501 = vpop.f32.mrb[0].mxu0
        %v3502 = vpop.f32.mrb[0].mxu0
        %v3503 = vadd.f32 0.0, %v3502
        %v3504 = vpop.f32.mrb[0].mxu0
        %3505 = vmatprep.mubr.bf16.mxu0 0
        %3506 = vmatmul.mubr.bf16.gmra.mrb[0].mxu0 %v3377
        %v3507 = vpop.f32.mrb[0].mxu0
        %v3508 = vadd.f32 0.0, %v3507
        %v3509 = vpop.f32.mrb[0].mxu0
        %v3510 = vpop.f32.mrb[0].mxu0
        %v3511 = vadd.f32 0.0, %v3510
        %v3512 = vpop.f32.mrb[0].mxu0
        %3513 = vmatprep.mubr.bf16.mxu0 0
        %3514 = vmatmul.mubr.bf16.gmra.mrb[0].mxu0 %v3380
        %v3515 = vpop.f32.mrb[0].mxu0
        %v3516 = vadd.f32 0.0, %v3515
        %v3517 = vpop.f32.mrb[0].mxu0
        %v3518 = vpop.f32.mrb[0].mxu0
        %v3519 = vadd.f32 0.0, %v3518
        %v3520 = vpop.f32.mrb[0].mxu0
        %3521 = vmatprep.mubr.bf16.mxu0 0
        %3522 = vmatmul.mubr.bf16.gmra.mrb[0].mxu0 %v3383
        %v3523 = vpop.f32.mrb[0].mxu0
        %v3524 = vadd.f32 0.0, %v3523
        %v3525 = vpop.f32.mrb[0].mxu0
        %v3526 = vpop.f32.mrb[0].mxu0
        %v3527 = vadd.f32 0.0, %v3526
        %v3528 = vpop.f32.mrb[0].mxu0
        %3529 = vmatprep.mubr.bf16.mxu0 0
        %3530 = vmatmul.mubr.bf16.gmra.mrb[0].mxu0 %v3386
        %v3531 = vpop.f32.mrb[0].mxu0
        %v3532 = vadd.f32 0.0, %v3531
        %v3533 = vpop.f32.mrb[0].mxu0
        %v3534 = vpop.f32.mrb[0].mxu0
        %v3535 = vadd.f32 0.0, %v3534
        %v3536 = vpop.f32.mrb[0].mxu0
        %3537 = vmatprep.mubr.bf16.mxu0 0
        %3538 = vmatmul.mubr.bf16.gmra.mrb[0].mxu0 %v3389
        %v3539 = vpop.f32.mrb[0].mxu0
        %v3540 = vadd.f32 0.0, %v3539
        %v3541 = vpop.f32.mrb[0].mxu0
        %v3542 = vpop.f32.mrb[0].mxu0
        %v3543 = vadd.f32 0.0, %v3542
        %v3544 = vpop.f32.mrb[0].mxu0
        %3545 = vmatprep.mubr.bf16.mxu0 0
        %3546 = vmatmul.mubr.bf16.gmra.mrb[0].mxu0 %v3392
        %v3547 = vpop.f32.mrb[0].mxu0
        %v3548 = vadd.f32 0.0, %v3547
        %v3549 = vpop.f32.mrb[0].mxu0
        %v3550 = vpop.f32.mrb[0].mxu0
        %v3551 = vadd.f32 0.0, %v3550
        %v3552 = vpop.f32.mrb[0].mxu0
        %3553 = vmatprep.mubr.bf16.mxu0 0
        %3554 = vmatmul.mubr.bf16.gmra.mrb[0].mxu0 %v3395
        %v3555 = vpop.f32.mrb[0].mxu0
        %v3556 = vadd.f32 0.0, %v3555
        %v3557 = vpop.f32.mrb[0].mxu0
        %v3558 = vpop.f32.mrb[0].mxu0
        %v3559 = vadd.f32 0.0, %v3558
        %v3560 = vpop.f32.mrb[0].mxu0
        %3561 = vmatprep.mubr.bf16.mxu0 0
        %3562 = vmatmul.mubr.bf16.gmra.mrb[0].mxu0 %v3398
        %v3563 = vpop.f32.mrb[0].mxu0
        %v3564 = vadd.f32 0.0, %v3563
        %v3565 = vpop.f32.mrb[0].mxu0
        %v3566 = vpop.f32.mrb[0].mxu0
        %v3567 = vadd.f32 0.0, %v3566
        %v3568 = vpop.f32.mrb[0].mxu0
        %3569 = vmatprep.mubr.bf16.mxu0 0
        %3570 = vmatmul.mubr.bf16.gmra.mrb[0].mxu0 %v3401
        %v3571 = vpop.f32.mrb[0].mxu0
        %v3572 = vadd.f32 0.0, %v3571
        %v3573 = vpop.f32.mrb[0].mxu0
        %v3574 = vpop.f32.mrb[0].mxu0
        %v3575 = vadd.f32 0.0, %v3574
        %v3576 = vpop.f32.mrb[0].mxu0
        %3577 = vmatprep.mubr.bf16.mxu0 0
        %3578 = vmatmul.mubr.bf16.gmra.mrb[0].mxu0 %v3404
        %v3579 = vpop.f32.mrb[0].mxu0
        %v3580 = vadd.f32 0.0, %v3579
        %v3581 = vpop.f32.mrb[0].mxu0
        %v3582 = vpop.f32.mrb[0].mxu0
        %v3583 = vadd.f32 0.0, %v3582
        %v3584 = vpop.f32.mrb[0].mxu0
        %3585 = vdwg.mxu0
        %v3586 = vadd.f32 %v3272, %v3444
        %v3587 = vadd.f32 %v3273, %v3447
        %v3588 = vadd.f32 %v3274, %v3452
        %v3589 = vadd.f32 %v3275, %v3455
        %v3590 = vadd.f32 %v3276, %v3460
        %v3591 = vadd.f32 %v3277, %v3463
        %v3592 = vadd.f32 %v3278, %v3468
        %v3593 = vadd.f32 %v3279, %v3471
        %v3594 = vadd.f32 %v3280, %v3476
        %v3595 = vadd.f32 %v3281, %v3479
        %v3596 = vadd.f32 %v3282, %v3484
        %v3597 = vadd.f32 %v3283, %v3487
        %v3598 = vadd.f32 %v3284, %v3492
        %v3599 = vadd.f32 %v3285, %v3495
        %v3600 = vadd.f32 %v3286, %v3500
        %v3601 = vadd.f32 %v3287, %v3503
        %v3602 = vadd.f32 %v3288, %v3508
        %v3603 = vadd.f32 %v3289, %v3511
        %v3604 = vadd.f32 %v3290, %v3516
        %v3605 = vadd.f32 %v3291, %v3519
        %v3606 = vadd.f32 %v3292, %v3524
        %v3607 = vadd.f32 %v3293, %v3527
        %v3608 = vadd.f32 %v3294, %v3532
        %v3609 = vadd.f32 %v3295, %v3535
        %v3610 = vadd.f32 %v3296, %v3540
        %v3611 = vadd.f32 %v3297, %v3543
        %v3612 = vadd.f32 %v3298, %v3548
        %v3613 = vadd.f32 %v3299, %v3551
        %v3614 = vadd.f32 %v3300, %v3556
        %v3615 = vadd.f32 %v3301, %v3559
        %v3616 = vadd.f32 %v3302, %v3564
        %v3617 = vadd.f32 %v3303, %v3567
        %v3618 = vadd.f32 %v3304, %v3572
        %v3619 = vadd.f32 %v3305, %v3575
        %v3620 = vadd.f32 %v3306, %v3580
        %v3621 = vadd.f32 %v3307, %v3583
        %3622 = vst [vmem:[%s160] sm:$0xff] %v3586
        %3623 = vst [vmem:[%s160 + $0x8] sm:$0xff] %v3587
        %3624 = vst [vmem:[%s160 + $0x10] sm:$0xff] %v3588
        %3625 = vst [vmem:[%s160 + $0x18] sm:$0xff] %v3589
        %3626 = vst [vmem:[%s160 + $0x20] sm:$0xff] %v3590
        %3627 = vst [vmem:[%s160 + $0x28] sm:$0xff] %v3591
        %3628 = vst [vmem:[%s160 + $0x30] sm:$0xff] %v3592
        %3629 = vst [vmem:[%s160 + $0x38] sm:$0xff] %v3593
        %3630 = vst [vmem:[%s160 + $0x40] sm:$0xff] %v3594
        %3631 = vst [vmem:[%s160 + $0x48] sm:$0xff] %v3595
        %3632 = vst [vmem:[%s160 + $0x50] sm:$0xff] %v3596
        %3633 = vst [vmem:[%s160 + $0x58] sm:$0xff] %v3597
        %3634 = vst [vmem:[%s160 + $0x60] sm:$0xff] %v3598
        %3635 = vst [vmem:[%s160 + $0x68] sm:$0xff] %v3599
        %3636 = vst [vmem:[%s160 + $0x70] sm:$0xff] %v3600
        %3637 = vst [vmem:[%s160 + $0x78] sm:$0xff] %v3601
        %3638 = vst [vmem:[%s160 + $0x80] sm:$0xff] %v3602
        %3639 = vst [vmem:[%s160 + $0x88] sm:$0xff] %v3603
        %3640 = vst [vmem:[%s160 + $0x90] sm:$0xff] %v3604
        %3641 = vst [vmem:[%s160 + $0x98] sm:$0xff] %v3605
        %3642 = vst [vmem:[%s160 + $0xa0] sm:$0xff] %v3606
        %3643 = vst [vmem:[%s160 + $0xa8] sm:$0xff] %v3607
        %3644 = vst [vmem:[%s160 + $0xb0] sm:$0xff] %v3608
        %3645 = vst [vmem:[%s160 + $0xb8] sm:$0xff] %v3609
        %3646 = vst [vmem:[%s160 + $0xc0] sm:$0xff] %v3610
        %3647 = vst [vmem:[%s160 + $0xc8] sm:$0xff] %v3611
        %3648 = vst [vmem:[%s160 + $0xd0] sm:$0xff] %v3612
        %3649 = vst [vmem:[%s160 + $0xd8] sm:$0xff] %v3613
        %3650 = vst [vmem:[%s160 + $0xe0] sm:$0xff] %v3614
        %3651 = vst [vmem:[%s160 + $0xe8] sm:$0xff] %v3615
        %3652 = vst [vmem:[%s160 + $0xf0] sm:$0xff] %v3616
        %3653 = vst [vmem:[%s160 + $0xf8] sm:$0xff] %v3617
        %3654 = vst [vmem:[%s160 + $0x100] sm:$0xff] %v3618
        %3655 = vst [vmem:[%s160 + $0x108] sm:$0xff] %v3619
        %3656 = vst [vmem:[%s160 + $0x110] sm:$0xff] %v3620
        %3657 = vst [vmem:[%s160 + $0x118] sm:$0xff] %v3621
        %v3658 = vlaneseq
        %v3659 = vshrl.u32 %v3658, 7
        %v3660 = vadd.s32 %v3659, 8
        %v3661 = vadd.s32 %v3659, 16
        %v3662 = vadd.s32 %v3659, 24
        %v3663 = vadd.s32 %v3659, 32
        %v3664 = vadd.s32 %v3659, 40
        %v3665 = vadd.s32 %v3659, 48
        %v3666 = vadd.s32 %v3659, 56
        %v3667 = vadd.s32 %v3659, 64
        %v3668 = vadd.s32 %v3659, 72
        %v3669 = vadd.s32 %v3659, 80
        %v3670 = vadd.s32 %v3659, 88
        %v3671 = vadd.s32 %v3659, 96
        %v3672 = vadd.s32 %v3659, 104
        %v3673 = vadd.s32 %v3659, 112
        %v3674 = vadd.s32 %v3659, 120
        %v3675 = vadd.s32 %v3659, 128
        %v3676 = vadd.s32 %v3659, 136
        %v3677 = vadd.s32 %v3659, 144
        %v3678 = vadd.s32 %v3659, 152
        %v3679 = vadd.s32 %v3659, 160
        %v3680 = vadd.s32 %v3659, 168
        %v3681 = vadd.s32 %v3659, 176
        %v3682 = vadd.s32 %v3659, 184
        %v3683 = vadd.s32 %v3659, 192
        %v3684 = vadd.s32 %v3659, 200
        %v3685 = vadd.s32 %v3659, 208
        %v3686 = vadd.s32 %v3659, 216
        %v3687 = vadd.s32 %v3659, 224
        %v3688 = vadd.s32 %v3659, 232
        %v3689 = vadd.s32 %v3659, 240
        %v3690 = vadd.s32 %v3659, 248
        %v3691 = vadd.s32 %v3659, 256
        %v3692 = vadd.s32 %v3659, 264
        %v3693 = vadd.s32 %v3659, 272
        %v3694 = vadd.s32 %v3659, 280
        %vm3695 = vcmp.lt.s32.totalorder %v3659, 0
        %v3696 = vsub.s32 0, %v3659
        %v3697 = vsel %vm3695, %v3696, %v3659
        %v3698 = vmul.u32.u64.compose %v3697, 3817748708
        %v3699 = vextract.low.u32 %v3698
        %v3700 = vextract.high.u32 %v3698
        %v3701 = vshrl.u32 %v3700, 4
        %v3702 = vmul.u32 %v3701, 18
        %v3703 = vsub.s32 %v3697, %v3702
        %v3704 = vsub.s32 0, %v3703
        %v3705 = vsel %vm3695, %v3704, %v3703
        %vm3706 = vcmp.lt.s32.totalorder %v3660, 0
        %v3707 = vsub.s32 0, %v3660
        %v3708 = vsel %vm3706, %v3707, %v3660
        %v3709 = vmul.u32.u64.compose %v3708, 3817748708
        %v3710 = vextract.low.u32 %v3709
        %v3711 = vextract.high.u32 %v3709
        %v3712 = vshrl.u32 %v3711, 4
        %v3713 = vmul.u32 %v3712, 18
        %v3714 = vsub.s32 %v3708, %v3713
        %v3715 = vsub.s32 0, %v3714
        %v3716 = vsel %vm3706, %v3715, %v3714
        %vm3717 = vcmp.lt.s32.totalorder %v3661, 0
        %v3718 = vsub.s32 0, %v3661
        %v3719 = vsel %vm3717, %v3718, %v3661
        %v3720 = vmul.u32.u64.compose %v3719, 3817748708
        %v3721 = vextract.low.u32 %v3720
        %v3722 = vextract.high.u32 %v3720
        %v3723 = vshrl.u32 %v3722, 4
        %v3724 = vmul.u32 %v3723, 18
        %v3725 = vsub.s32 %v3719, %v3724
        %v3726 = vsub.s32 0, %v3725
        %v3727 = vsel %vm3717, %v3726, %v3725
        %vm3728 = vcmp.lt.s32.totalorder %v3662, 0
        %v3729 = vsub.s32 0, %v3662
        %v3730 = vsel %vm3728, %v3729, %v3662
        %v3731 = vmul.u32.u64.compose %v3730, 3817748708
        %v3732 = vextract.low.u32 %v3731
        %v3733 = vextract.high.u32 %v3731
        %v3734 = vshrl.u32 %v3733, 4
        %v3735 = vmul.u32 %v3734, 18
        %v3736 = vsub.s32 %v3730, %v3735
        %v3737 = vsub.s32 0, %v3736
        %v3738 = vsel %vm3728, %v3737, %v3736
        %vm3739 = vcmp.lt.s32.totalorder %v3663, 0
        %v3740 = vsub.s32 0, %v3663
        %v3741 = vsel %vm3739, %v3740, %v3663
        %v3742 = vmul.u32.u64.compose %v3741, 3817748708
        %v3743 = vextract.low.u32 %v3742
        %v3744 = vextract.high.u32 %v3742
        %v3745 = vshrl.u32 %v3744, 4
        %v3746 = vmul.u32 %v3745, 18
        %v3747 = vsub.s32 %v3741, %v3746
        %v3748 = vsub.s32 0, %v3747
        %v3749 = vsel %vm3739, %v3748, %v3747
        %vm3750 = vcmp.lt.s32.totalorder %v3664, 0
        %v3751 = vsub.s32 0, %v3664
        %v3752 = vsel %vm3750, %v3751, %v3664
        %v3753 = vmul.u32.u64.compose %v3752, 3817748708
        %v3754 = vextract.low.u32 %v3753
        %v3755 = vextract.high.u32 %v3753
        %v3756 = vshrl.u32 %v3755, 4
        %v3757 = vmul.u32 %v3756, 18
        %v3758 = vsub.s32 %v3752, %v3757
        %v3759 = vsub.s32 0, %v3758
        %v3760 = vsel %vm3750, %v3759, %v3758
        %vm3761 = vcmp.lt.s32.totalorder %v3665, 0
        %v3762 = vsub.s32 0, %v3665
        %v3763 = vsel %vm3761, %v3762, %v3665
        %v3764 = vmul.u32.u64.compose %v3763, 3817748708
        %v3765 = vextract.low.u32 %v3764
        %v3766 = vextract.high.u32 %v3764
        %v3767 = vshrl.u32 %v3766, 4
        %v3768 = vmul.u32 %v3767, 18
        %v3769 = vsub.s32 %v3763, %v3768
        %v3770 = vsub.s32 0, %v3769
        %v3771 = vsel %vm3761, %v3770, %v3769
        %vm3772 = vcmp.lt.s32.totalorder %v3666, 0
        %v3773 = vsub.s32 0, %v3666
        %v3774 = vsel %vm3772, %v3773, %v3666
        %v3775 = vmul.u32.u64.compose %v3774, 3817748708
        %v3776 = vextract.low.u32 %v3775
        %v3777 = vextract.high.u32 %v3775
        %v3778 = vshrl.u32 %v3777, 4
        %v3779 = vmul.u32 %v3778, 18
        %v3780 = vsub.s32 %v3774, %v3779
        %v3781 = vsub.s32 0, %v3780
        %v3782 = vsel %vm3772, %v3781, %v3780
        %vm3783 = vcmp.lt.s32.totalorder %v3667, 0
        %v3784 = vsub.s32 0, %v3667
        %v3785 = vsel %vm3783, %v3784, %v3667
        %v3786 = vmul.u32.u64.compose %v3785, 3817748708
        %v3787 = vextract.low.u32 %v3786
        %v3788 = vextract.high.u32 %v3786
        %v3789 = vshrl.u32 %v3788, 4
        %v3790 = vmul.u32 %v3789, 18
        %v3791 = vsub.s32 %v3785, %v3790
        %v3792 = vsub.s32 0, %v3791
        %v3793 = vsel %vm3783, %v3792, %v3791
        %vm3794 = vcmp.lt.s32.totalorder %v3668, 0
        %v3795 = vsub.s32 0, %v3668
        %v3796 = vsel %vm3794, %v3795, %v3668
        %v3797 = vmul.u32.u64.compose %v3796, 3817748708
        %v3798 = vextract.low.u32 %v3797
        %v3799 = vextract.high.u32 %v3797
        %v3800 = vshrl.u32 %v3799, 4
        %v3801 = vmul.u32 %v3800, 18
        %v3802 = vsub.s32 %v3796, %v3801
        %v3803 = vsub.s32 0, %v3802
        %v3804 = vsel %vm3794, %v3803, %v3802
        %vm3805 = vcmp.lt.s32.totalorder %v3669, 0
        %v3806 = vsub.s32 0, %v3669
        %v3807 = vsel %vm3805, %v3806, %v3669
        %v3808 = vmul.u32.u64.compose %v3807, 3817748708
        %v3809 = vextract.low.u32 %v3808
        %v3810 = vextract.high.u32 %v3808
        %v3811 = vshrl.u32 %v3810, 4
        %v3812 = vmul.u32 %v3811, 18
        %v3813 = vsub.s32 %v3807, %v3812
        %v3814 = vsub.s32 0, %v3813
        %v3815 = vsel %vm3805, %v3814, %v3813
        %vm3816 = vcmp.lt.s32.totalorder %v3670, 0
        %v3817 = vsub.s32 0, %v3670
        %v3818 = vsel %vm3816, %v3817, %v3670
        %v3819 = vmul.u32.u64.compose %v3818, 3817748708
        %v3820 = vextract.low.u32 %v3819
        %v3821 = vextract.high.u32 %v3819
        %v3822 = vshrl.u32 %v3821, 4
        %v3823 = vmul.u32 %v3822, 18
        %v3824 = vsub.s32 %v3818, %v3823
        %v3825 = vsub.s32 0, %v3824
        %v3826 = vsel %vm3816, %v3825, %v3824
        %vm3827 = vcmp.lt.s32.totalorder %v3671, 0
        %v3828 = vsub.s32 0, %v3671
        %v3829 = vsel %vm3827, %v3828, %v3671
        %v3830 = vmul.u32.u64.compose %v3829, 3817748708
        %v3831 = vextract.low.u32 %v3830
        %v3832 = vextract.high.u32 %v3830
        %v3833 = vshrl.u32 %v3832, 4
        %v3834 = vmul.u32 %v3833, 18
        %v3835 = vsub.s32 %v3829, %v3834
        %v3836 = vsub.s32 0, %v3835
        %v3837 = vsel %vm3827, %v3836, %v3835
        %vm3838 = vcmp.lt.s32.totalorder %v3672, 0
        %v3839 = vsub.s32 0, %v3672
        %v3840 = vsel %vm3838, %v3839, %v3672
        %v3841 = vmul.u32.u64.compose %v3840, 3817748708
        %v3842 = vextract.low.u32 %v3841
        %v3843 = vextract.high.u32 %v3841
        %v3844 = vshrl.u32 %v3843, 4
        %v3845 = vmul.u32 %v3844, 18
        %v3846 = vsub.s32 %v3840, %v3845
        %v3847 = vsub.s32 0, %v3846
        %v3848 = vsel %vm3838, %v3847, %v3846
        %vm3849 = vcmp.lt.s32.totalorder %v3673, 0
        %v3850 = vsub.s32 0, %v3673
        %v3851 = vsel %vm3849, %v3850, %v3673
        %v3852 = vmul.u32.u64.compose %v3851, 3817748708
        %v3853 = vextract.low.u32 %v3852
        %v3854 = vextract.high.u32 %v3852
        %v3855 = vshrl.u32 %v3854, 4
        %v3856 = vmul.u32 %v3855, 18
        %v3857 = vsub.s32 %v3851, %v3856
        %v3858 = vsub.s32 0, %v3857
        %v3859 = vsel %vm3849, %v3858, %v3857
        %vm3860 = vcmp.lt.s32.totalorder %v3674, 0
        %v3861 = vsub.s32 0, %v3674
        %v3862 = vsel %vm3860, %v3861, %v3674
        %v3863 = vmul.u32.u64.compose %v3862, 3817748708
        %v3864 = vextract.low.u32 %v3863
        %v3865 = vextract.high.u32 %v3863
        %v3866 = vshrl.u32 %v3865, 4
        %v3867 = vmul.u32 %v3866, 18
        %v3868 = vsub.s32 %v3862, %v3867
        %v3869 = vsub.s32 0, %v3868
        %v3870 = vsel %vm3860, %v3869, %v3868
        %vm3871 = vcmp.lt.s32.totalorder %v3675, 0
        %v3872 = vsub.s32 0, %v3675
        %v3873 = vsel %vm3871, %v3872, %v3675
        %v3874 = vmul.u32.u64.compose %v3873, 3817748708
        %v3875 = vextract.low.u32 %v3874
        %v3876 = vextract.high.u32 %v3874
        %v3877 = vshrl.u32 %v3876, 4
        %v3878 = vmul.u32 %v3877, 18
        %v3879 = vsub.s32 %v3873, %v3878
        %v3880 = vsub.s32 0, %v3879
        %v3881 = vsel %vm3871, %v3880, %v3879
        %vm3882 = vcmp.lt.s32.totalorder %v3676, 0
        %v3883 = vsub.s32 0, %v3676
        %v3884 = vsel %vm3882, %v3883, %v3676
        %v3885 = vmul.u32.u64.compose %v3884, 3817748708
        %v3886 = vextract.low.u32 %v3885
        %v3887 = vextract.high.u32 %v3885
        %v3888 = vshrl.u32 %v3887, 4
        %v3889 = vmul.u32 %v3888, 18
        %v3890 = vsub.s32 %v3884, %v3889
        %v3891 = vsub.s32 0, %v3890
        %v3892 = vsel %vm3882, %v3891, %v3890
        %vm3893 = vcmp.lt.s32.totalorder %v3677, 0
        %v3894 = vsub.s32 0, %v3677
        %v3895 = vsel %vm3893, %v3894, %v3677
        %v3896 = vmul.u32.u64.compose %v3895, 3817748708
        %v3897 = vextract.low.u32 %v3896
        %v3898 = vextract.high.u32 %v3896
        %v3899 = vshrl.u32 %v3898, 4
        %v3900 = vmul.u32 %v3899, 18
        %v3901 = vsub.s32 %v3895, %v3900
        %v3902 = vsub.s32 0, %v3901
        %v3903 = vsel %vm3893, %v3902, %v3901
        %vm3904 = vcmp.lt.s32.totalorder %v3678, 0
        %v3905 = vsub.s32 0, %v3678
        %v3906 = vsel %vm3904, %v3905, %v3678
        %v3907 = vmul.u32.u64.compose %v3906, 3817748708
        %v3908 = vextract.low.u32 %v3907
        %v3909 = vextract.high.u32 %v3907
        %v3910 = vshrl.u32 %v3909, 4
        %v3911 = vmul.u32 %v3910, 18
        %v3912 = vsub.s32 %v3906, %v3911
        %v3913 = vsub.s32 0, %v3912
        %v3914 = vsel %vm3904, %v3913, %v3912
        %vm3915 = vcmp.lt.s32.totalorder %v3679, 0
        %v3916 = vsub.s32 0, %v3679
        %v3917 = vsel %vm3915, %v3916, %v3679
        %v3918 = vmul.u32.u64.compose %v3917, 3817748708
        %v3919 = vextract.low.u32 %v3918
        %v3920 = vextract.high.u32 %v3918
        %v3921 = vshrl.u32 %v3920, 4
        %v3922 = vmul.u32 %v3921, 18
        %v3923 = vsub.s32 %v3917, %v3922
        %v3924 = vsub.s32 0, %v3923
        %v3925 = vsel %vm3915, %v3924, %v3923
        %vm3926 = vcmp.lt.s32.totalorder %v3680, 0
        %v3927 = vsub.s32 0, %v3680
        %v3928 = vsel %vm3926, %v3927, %v3680
        %v3929 = vmul.u32.u64.compose %v3928, 3817748708
        %v3930 = vextract.low.u32 %v3929
        %v3931 = vextract.high.u32 %v3929
        %v3932 = vshrl.u32 %v3931, 4
        %v3933 = vmul.u32 %v3932, 18
        %v3934 = vsub.s32 %v3928, %v3933
        %v3935 = vsub.s32 0, %v3934
        %v3936 = vsel %vm3926, %v3935, %v3934
        %vm3937 = vcmp.lt.s32.totalorder %v3681, 0
        %v3938 = vsub.s32 0, %v3681
        %v3939 = vsel %vm3937, %v3938, %v3681
        %v3940 = vmul.u32.u64.compose %v3939, 3817748708
        %v3941 = vextract.low.u32 %v3940
        %v3942 = vextract.high.u32 %v3940
        %v3943 = vshrl.u32 %v3942, 4
        %v3944 = vmul.u32 %v3943, 18
        %v3945 = vsub.s32 %v3939, %v3944
        %v3946 = vsub.s32 0, %v3945
        %v3947 = vsel %vm3937, %v3946, %v3945
        %vm3948 = vcmp.lt.s32.totalorder %v3682, 0
        %v3949 = vsub.s32 0, %v3682
        %v3950 = vsel %vm3948, %v3949, %v3682
        %v3951 = vmul.u32.u64.compose %v3950, 3817748708
        %v3952 = vextract.low.u32 %v3951
        %v3953 = vextract.high.u32 %v3951
        %v3954 = vshrl.u32 %v3953, 4
        %v3955 = vmul.u32 %v3954, 18
        %v3956 = vsub.s32 %v3950, %v3955
        %v3957 = vsub.s32 0, %v3956
        %v3958 = vsel %vm3948, %v3957, %v3956
        %vm3959 = vcmp.lt.s32.totalorder %v3683, 0
        %v3960 = vsub.s32 0, %v3683
        %v3961 = vsel %vm3959, %v3960, %v3683
        %v3962 = vmul.u32.u64.compose %v3961, 3817748708
        %v3963 = vextract.low.u32 %v3962
        %v3964 = vextract.high.u32 %v3962
        %v3965 = vshrl.u32 %v3964, 4
        %v3966 = vmul.u32 %v3965, 18
        %v3967 = vsub.s32 %v3961, %v3966
        %v3968 = vsub.s32 0, %v3967
        %v3969 = vsel %vm3959, %v3968, %v3967
        %vm3970 = vcmp.lt.s32.totalorder %v3684, 0
        %v3971 = vsub.s32 0, %v3684
        %v3972 = vsel %vm3970, %v3971, %v3684
        %v3973 = vmul.u32.u64.compose %v3972, 3817748708
        %v3974 = vextract.low.u32 %v3973
        %v3975 = vextract.high.u32 %v3973
        %v3976 = vshrl.u32 %v3975, 4
        %v3977 = vmul.u32 %v3976, 18
        %v3978 = vsub.s32 %v3972, %v3977
        %v3979 = vsub.s32 0, %v3978
        %v3980 = vsel %vm3970, %v3979, %v3978
        %vm3981 = vcmp.lt.s32.totalorder %v3685, 0
        %v3982 = vsub.s32 0, %v3685
        %v3983 = vsel %vm3981, %v3982, %v3685
        %v3984 = vmul.u32.u64.compose %v3983, 3817748708
        %v3985 = vextract.low.u32 %v3984
        %v3986 = vextract.high.u32 %v3984
        %v3987 = vshrl.u32 %v3986, 4
        %v3988 = vmul.u32 %v3987, 18
        %v3989 = vsub.s32 %v3983, %v3988
        %v3990 = vsub.s32 0, %v3989
        %v3991 = vsel %vm3981, %v3990, %v3989
        %vm3992 = vcmp.lt.s32.totalorder %v3686, 0
        %v3993 = vsub.s32 0, %v3686
        %v3994 = vsel %vm3992, %v3993, %v3686
        %v3995 = vmul.u32.u64.compose %v3994, 3817748708
        %v3996 = vextract.low.u32 %v3995
        %v3997 = vextract.high.u32 %v3995
        %v3998 = vshrl.u32 %v3997, 4
        %v3999 = vmul.u32 %v3998, 18
        %v4000 = vsub.s32 %v3994, %v3999
        %v4001 = vsub.s32 0, %v4000
        %v4002 = vsel %vm3992, %v4001, %v4000
        %vm4003 = vcmp.lt.s32.totalorder %v3687, 0
        %v4004 = vsub.s32 0, %v3687
        %v4005 = vsel %vm4003, %v4004, %v3687
        %v4006 = vmul.u32.u64.compose %v4005, 3817748708
        %v4007 = vextract.low.u32 %v4006
        %v4008 = vextract.high.u32 %v4006
        %v4009 = vshrl.u32 %v4008, 4
        %v4010 = vmul.u32 %v4009, 18
        %v4011 = vsub.s32 %v4005, %v4010
        %v4012 = vsub.s32 0, %v4011
        %v4013 = vsel %vm4003, %v4012, %v4011
        %vm4014 = vcmp.lt.s32.totalorder %v3688, 0
        %v4015 = vsub.s32 0, %v3688
        %v4016 = vsel %vm4014, %v4015, %v3688
        %v4017 = vmul.u32.u64.compose %v4016, 3817748708
        %v4018 = vextract.low.u32 %v4017
        %v4019 = vextract.high.u32 %v4017
        %v4020 = vshrl.u32 %v4019, 4
        %v4021 = vmul.u32 %v4020, 18
        %v4022 = vsub.s32 %v4016, %v4021
        %v4023 = vsub.s32 0, %v4022
        %v4024 = vsel %vm4014, %v4023, %v4022
        %vm4025 = vcmp.lt.s32.totalorder %v3689, 0
        %v4026 = vsub.s32 0, %v3689
        %v4027 = vsel %vm4025, %v4026, %v3689
        %v4028 = vmul.u32.u64.compose %v4027, 3817748708
        %v4029 = vextract.low.u32 %v4028
        %v4030 = vextract.high.u32 %v4028
        %v4031 = vshrl.u32 %v4030, 4
        %v4032 = vmul.u32 %v4031, 18
        %v4033 = vsub.s32 %v4027, %v4032
        %v4034 = vsub.s32 0, %v4033
        %v4035 = vsel %vm4025, %v4034, %v4033
        %vm4036 = vcmp.lt.s32.totalorder %v3690, 0
        %v4037 = vsub.s32 0, %v3690
        %v4038 = vsel %vm4036, %v4037, %v3690
        %v4039 = vmul.u32.u64.compose %v4038, 3817748708
        %v4040 = vextract.low.u32 %v4039
        %v4041 = vextract.high.u32 %v4039
        %v4042 = vshrl.u32 %v4041, 4
        %v4043 = vmul.u32 %v4042, 18
        %v4044 = vsub.s32 %v4038, %v4043
        %v4045 = vsub.s32 0, %v4044
        %v4046 = vsel %vm4036, %v4045, %v4044
        %vm4047 = vcmp.lt.s32.totalorder %v3691, 0
        %v4048 = vsub.s32 0, %v3691
        %v4049 = vsel %vm4047, %v4048, %v3691
        %v4050 = vmul.u32.u64.compose %v4049, 3817748708
        %v4051 = vextract.low.u32 %v4050
        %v4052 = vextract.high.u32 %v4050
        %v4053 = vshrl.u32 %v4052, 4
        %v4054 = vmul.u32 %v4053, 18
        %v4055 = vsub.s32 %v4049, %v4054
        %v4056 = vsub.s32 0, %v4055
        %v4057 = vsel %vm4047, %v4056, %v4055
        %vm4058 = vcmp.lt.s32.totalorder %v3692, 0
        %v4059 = vsub.s32 0, %v3692
        %v4060 = vsel %vm4058, %v4059, %v3692
        %v4061 = vmul.u32.u64.compose %v4060, 3817748708
        %v4062 = vextract.low.u32 %v4061
        %v4063 = vextract.high.u32 %v4061
        %v4064 = vshrl.u32 %v4063, 4
        %v4065 = vmul.u32 %v4064, 18
        %v4066 = vsub.s32 %v4060, %v4065
        %v4067 = vsub.s32 0, %v4066
        %v4068 = vsel %vm4058, %v4067, %v4066
        %vm4069 = vcmp.lt.s32.totalorder %v3693, 0
        %v4070 = vsub.s32 0, %v3693
        %v4071 = vsel %vm4069, %v4070, %v3693
        %v4072 = vmul.u32.u64.compose %v4071, 3817748708
        %v4073 = vextract.low.u32 %v4072
        %v4074 = vextract.high.u32 %v4072
        %v4075 = vshrl.u32 %v4074, 4
        %v4076 = vmul.u32 %v4075, 18
        %v4077 = vsub.s32 %v4071, %v4076
        %v4078 = vsub.s32 0, %v4077
        %v4079 = vsel %vm4069, %v4078, %v4077
        %vm4080 = vcmp.lt.s32.totalorder %v3694, 0
        %v4081 = vsub.s32 0, %v3694
        %v4082 = vsel %vm4080, %v4081, %v3694
        %v4083 = vmul.u32.u64.compose %v4082, 3817748708
        %v4084 = vextract.low.u32 %v4083
        %v4085 = vextract.high.u32 %v4083
        %v4086 = vshrl.u32 %v4085, 4
        %v4087 = vmul.u32 %v4086, 18
        %v4088 = vsub.s32 %v4082, %v4087
        %v4089 = vsub.s32 0, %v4088
        %v4090 = vsel %vm4080, %v4089, %v4088
        %vm4091 = vcmp.ne.s32.totalorder %v3705, 0
        %vm4092 = vcmp.ne.s32.totalorder %v3716, 0
        %vm4093 = vcmp.ne.s32.totalorder %v3727, 0
        %vm4094 = vcmp.ne.s32.totalorder %v3738, 0
        %vm4095 = vcmp.ne.s32.totalorder %v3749, 0
        %vm4096 = vcmp.ne.s32.totalorder %v3760, 0
        %vm4097 = vcmp.ne.s32.totalorder %v3771, 0
        %vm4098 = vcmp.ne.s32.totalorder %v3782, 0
        %vm4099 = vcmp.ne.s32.totalorder %v3793, 0
        %vm4100 = vcmp.ne.s32.totalorder %v3804, 0
        %vm4101 = vcmp.ne.s32.totalorder %v3815, 0
        %vm4102 = vcmp.ne.s32.totalorder %v3826, 0
        %vm4103 = vcmp.ne.s32.totalorder %v3837, 0
        %vm4104 = vcmp.ne.s32.totalorder %v3848, 0
        %vm4105 = vcmp.ne.s32.totalorder %v3859, 0
        %vm4106 = vcmp.ne.s32.totalorder %v3870, 0
        %vm4107 = vcmp.ne.s32.totalorder %v3881, 0
        %vm4108 = vcmp.ne.s32.totalorder %v3892, 0
        %vm4109 = vcmp.ne.s32.totalorder %v3903, 0
        %vm4110 = vcmp.ne.s32.totalorder %v3914, 0
        %vm4111 = vcmp.ne.s32.totalorder %v3925, 0
        %vm4112 = vcmp.ne.s32.totalorder %v3936, 0
        %vm4113 = vcmp.ne.s32.totalorder %v3947, 0
        %vm4114 = vcmp.ne.s32.totalorder %v3958, 0
        %vm4115 = vcmp.ne.s32.totalorder %v3969, 0
        %vm4116 = vcmp.ne.s32.totalorder %v3980, 0
        %vm4117 = vcmp.ne.s32.totalorder %v3991, 0
        %vm4118 = vcmp.ne.s32.totalorder %v4002, 0
        %vm4119 = vcmp.ne.s32.totalorder %v4013, 0
        %vm4120 = vcmp.ne.s32.totalorder %v4024, 0
        %vm4121 = vcmp.ne.s32.totalorder %v4035, 0
        %vm4122 = vcmp.ne.s32.totalorder %v4046, 0
        %vm4123 = vcmp.ne.s32.totalorder %v4057, 0
        %vm4124 = vcmp.ne.s32.totalorder %v4068, 0
        %vm4125 = vcmp.ne.s32.totalorder %v4079, 0
        %vm4126 = vcmp.ne.s32.totalorder %v4090, 0
        %vm4127 = vcmp.lt.s32.totalorder %v3705, 0
        %vm4128 = vcmp.lt.s32.totalorder %v3716, 0
        %vm4129 = vcmp.lt.s32.totalorder %v3727, 0
        %vm4130 = vcmp.lt.s32.totalorder %v3738, 0
        %vm4131 = vcmp.lt.s32.totalorder %v3749, 0
        %vm4132 = vcmp.lt.s32.totalorder %v3760, 0
        %vm4133 = vcmp.lt.s32.totalorder %v3771, 0
        %vm4134 = vcmp.lt.s32.totalorder %v3782, 0
        %vm4135 = vcmp.lt.s32.totalorder %v3793, 0
        %vm4136 = vcmp.lt.s32.totalorder %v3804, 0
        %vm4137 = vcmp.lt.s32.totalorder %v3815, 0
        %vm4138 = vcmp.lt.s32.totalorder %v3826, 0
        %vm4139 = vcmp.lt.s32.totalorder %v3837, 0
        %vm4140 = vcmp.lt.s32.totalorder %v3848, 0
        %vm4141 = vcmp.lt.s32.totalorder %v3859, 0
        %vm4142 = vcmp.lt.s32.totalorder %v3870, 0
        %vm4143 = vcmp.lt.s32.totalorder %v3881, 0
        %vm4144 = vcmp.lt.s32.totalorder %v3892, 0
        %vm4145 = vcmp.lt.s32.totalorder %v3903, 0
        %vm4146 = vcmp.lt.s32.totalorder %v3914, 0
        %vm4147 = vcmp.lt.s32.totalorder %v3925, 0
        %vm4148 = vcmp.lt.s32.totalorder %v3936, 0
        %vm4149 = vcmp.lt.s32.totalorder %v3947, 0
        %vm4150 = vcmp.lt.s32.totalorder %v3958, 0
        %vm4151 = vcmp.lt.s32.totalorder %v3969, 0
        %vm4152 = vcmp.lt.s32.totalorder %v3980, 0
        %vm4153 = vcmp.lt.s32.totalorder %v3991, 0
        %vm4154 = vcmp.lt.s32.totalorder %v4002, 0
        %vm4155 = vcmp.lt.s32.totalorder %v4013, 0
        %vm4156 = vcmp.lt.s32.totalorder %v4024, 0
        %vm4157 = vcmp.lt.s32.totalorder %v4035, 0
        %vm4158 = vcmp.lt.s32.totalorder %v4046, 0
        %vm4159 = vcmp.lt.s32.totalorder %v4057, 0
        %vm4160 = vcmp.lt.s32.totalorder %v4068, 0
        %vm4161 = vcmp.lt.s32.totalorder %v4079, 0
        %vm4162 = vcmp.lt.s32.totalorder %v4090, 0
        %vm4163 = vmand %vm4127, %vm4091
        %vm4164 = vmand %vm4128, %vm4092
        %vm4165 = vmand %vm4129, %vm4093
        %vm4166 = vmand %vm4130, %vm4094
        %vm4167 = vmand %vm4131, %vm4095
        %vm4168 = vmand %vm4132, %vm4096
        %vm4169 = vmand %vm4133, %vm4097
        %vm4170 = vmand %vm4134, %vm4098
        %vm4171 = vmand %vm4135, %vm4099
        %vm4172 = vmand %vm4136, %vm4100
        %vm4173 = vmand %vm4137, %vm4101
        %vm4174 = vmand %vm4138, %vm4102
        %vm4175 = vmand %vm4139, %vm4103
        %vm4176 = vmand %vm4140, %vm4104
        %vm4177 = vmand %vm4141, %vm4105
        %vm4178 = vmand %vm4142, %vm4106
        %vm4179 = vmand %vm4143, %vm4107
        %vm4180 = vmand %vm4144, %vm4108
        %vm4181 = vmand %vm4145, %vm4109
        %vm4182 = vmand %vm4146, %vm4110
        %vm4183 = vmand %vm4147, %vm4111
        %vm4184 = vmand %vm4148, %vm4112
        %vm4185 = vmand %vm4149, %vm4113
        %vm4186 = vmand %vm4150, %vm4114
        %vm4187 = vmand %vm4151, %vm4115
        %vm4188 = vmand %vm4152, %vm4116
        %vm4189 = vmand %vm4153, %vm4117
        %vm4190 = vmand %vm4154, %vm4118
        %vm4191 = vmand %vm4155, %vm4119
        %vm4192 = vmand %vm4156, %vm4120
        %vm4193 = vmand %vm4157, %vm4121
        %vm4194 = vmand %vm4158, %vm4122
        %vm4195 = vmand %vm4159, %vm4123
        %vm4196 = vmand %vm4160, %vm4124
        %vm4197 = vmand %vm4161, %vm4125
        %vm4198 = vmand %vm4162, %vm4126
        %v4199 = vadd.s32 %v3705, 18
        %v4200 = vadd.s32 %v3716, 18
        %v4201 = vadd.s32 %v3727, 18
        %v4202 = vadd.s32 %v3738, 18
        %v4203 = vadd.s32 %v3749, 18
        %v4204 = vadd.s32 %v3760, 18
        %v4205 = vadd.s32 %v3771, 18
        %v4206 = vadd.s32 %v3782, 18
        %v4207 = vadd.s32 %v3793, 18
        %v4208 = vadd.s32 %v3804, 18
        %v4209 = vadd.s32 %v3815, 18
        %v4210 = vadd.s32 %v3826, 18
        %v4211 = vadd.s32 %v3837, 18
        %v4212 = vadd.s32 %v3848, 18
        %v4213 = vadd.s32 %v3859, 18
        %v4214 = vadd.s32 %v3870, 18
        %v4215 = vadd.s32 %v3881, 18
        %v4216 = vadd.s32 %v3892, 18
        %v4217 = vadd.s32 %v3903, 18
        %v4218 = vadd.s32 %v3914, 18
        %v4219 = vadd.s32 %v3925, 18
        %v4220 = vadd.s32 %v3936, 18
        %v4221 = vadd.s32 %v3947, 18
        %v4222 = vadd.s32 %v3958, 18
        %v4223 = vadd.s32 %v3969, 18
        %v4224 = vadd.s32 %v3980, 18
        %v4225 = vadd.s32 %v3991, 18
        %v4226 = vadd.s32 %v4002, 18
        %v4227 = vadd.s32 %v4013, 18
        %v4228 = vadd.s32 %v4024, 18
        %v4229 = vadd.s32 %v4035, 18
        %v4230 = vadd.s32 %v4046, 18
        %v4231 = vadd.s32 %v4057, 18
        %v4232 = vadd.s32 %v4068, 18
        %v4233 = vadd.s32 %v4079, 18
        %v4234 = vadd.s32 %v4090, 18
        %v4235 = vsel %vm4163, %v4199, %v3705
        %v4236 = vsel %vm4164, %v4200, %v3716
        %v4237 = vsel %vm4165, %v4201, %v3727
        %v4238 = vsel %vm4166, %v4202, %v3738
        %v4239 = vsel %vm4167, %v4203, %v3749
        %v4240 = vsel %vm4168, %v4204, %v3760
        %v4241 = vsel %vm4169, %v4205, %v3771
        %v4242 = vsel %vm4170, %v4206, %v3782
        %v4243 = vsel %vm4171, %v4207, %v3793
        %v4244 = vsel %vm4172, %v4208, %v3804
        %v4245 = vsel %vm4173, %v4209, %v3815
        %v4246 = vsel %vm4174, %v4210, %v3826
        %v4247 = vsel %vm4175, %v4211, %v3837
        %v4248 = vsel %vm4176, %v4212, %v3848
        %v4249 = vsel %vm4177, %v4213, %v3859
        %v4250 = vsel %vm4178, %v4214, %v3870
        %v4251 = vsel %vm4179, %v4215, %v3881
        %v4252 = vsel %vm4180, %v4216, %v3892
        %v4253 = vsel %vm4181, %v4217, %v3903
        %v4254 = vsel %vm4182, %v4218, %v3914
        %v4255 = vsel %vm4183, %v4219, %v3925
        %v4256 = vsel %vm4184, %v4220, %v3936
        %v4257 = vsel %vm4185, %v4221, %v3947
        %v4258 = vsel %vm4186, %v4222, %v3958
        %v4259 = vsel %vm4187, %v4223, %v3969
        %v4260 = vsel %vm4188, %v4224, %v3980
        %v4261 = vsel %vm4189, %v4225, %v3991
        %v4262 = vsel %vm4190, %v4226, %v4002
        %v4263 = vsel %vm4191, %v4227, %v4013
        %v4264 = vsel %vm4192, %v4228, %v4024
        %v4265 = vsel %vm4193, %v4229, %v4035
        %v4266 = vsel %vm4194, %v4230, %v4046
        %v4267 = vsel %vm4195, %v4231, %v4057
        %v4268 = vsel %vm4196, %v4232, %v4068
        %v4269 = vsel %vm4197, %v4233, %v4079
        %v4270 = vsel %vm4198, %v4234, %v4090
        %vm4271 = vcmp.lt.s32.totalorder %v4235, 16
        %vm4272 = vcmp.lt.s32.totalorder %v4236, 16
        %vm4273 = vcmp.lt.s32.totalorder %v4237, 16
        %vm4274 = vcmp.lt.s32.totalorder %v4238, 16
        %vm4275 = vcmp.lt.s32.totalorder %v4239, 16
        %vm4276 = vcmp.lt.s32.totalorder %v4240, 16
        %vm4277 = vcmp.lt.s32.totalorder %v4241, 16
        %vm4278 = vcmp.lt.s32.totalorder %v4242, 16
        %vm4279 = vcmp.lt.s32.totalorder %v4243, 16
        %vm4280 = vcmp.lt.s32.totalorder %v4244, 16
        %vm4281 = vcmp.lt.s32.totalorder %v4245, 16
        %vm4282 = vcmp.lt.s32.totalorder %v4246, 16
        %vm4283 = vcmp.lt.s32.totalorder %v4247, 16
        %vm4284 = vcmp.lt.s32.totalorder %v4248, 16
        %vm4285 = vcmp.lt.s32.totalorder %v4249, 16
        %vm4286 = vcmp.lt.s32.totalorder %v4250, 16
        %vm4287 = vcmp.lt.s32.totalorder %v4251, 16
        %vm4288 = vcmp.lt.s32.totalorder %v4252, 16
        %vm4289 = vcmp.lt.s32.totalorder %v4253, 16
        %vm4290 = vcmp.lt.s32.totalorder %v4254, 16
        %vm4291 = vcmp.lt.s32.totalorder %v4255, 16
        %vm4292 = vcmp.lt.s32.totalorder %v4256, 16
        %vm4293 = vcmp.lt.s32.totalorder %v4257, 16
        %vm4294 = vcmp.lt.s32.totalorder %v4258, 16
        %vm4295 = vcmp.lt.s32.totalorder %v4259, 16
        %vm4296 = vcmp.lt.s32.totalorder %v4260, 16
        %vm4297 = vcmp.lt.s32.totalorder %v4261, 16
        %vm4298 = vcmp.lt.s32.totalorder %v4262, 16
        %vm4299 = vcmp.lt.s32.totalorder %v4263, 16
        %vm4300 = vcmp.lt.s32.totalorder %v4264, 16
        %vm4301 = vcmp.lt.s32.totalorder %v4265, 16
        %vm4302 = vcmp.lt.s32.totalorder %v4266, 16
        %vm4303 = vcmp.lt.s32.totalorder %v4267, 16
        %vm4304 = vcmp.lt.s32.totalorder %v4268, 16
        %vm4305 = vcmp.lt.s32.totalorder %v4269, 16
        %vm4306 = vcmp.lt.s32.totalorder %v4270, 16
        %v4307 = vsel %vm4271, %v3586, 0.0
        %v4308 = vsel %vm4272, %v3587, 0.0
        %v4309 = vsel %vm4273, %v3588, 0.0
        %v4310 = vsel %vm4274, %v3589, 0.0
        %v4311 = vsel %vm4275, %v3590, 0.0
        %v4312 = vsel %vm4276, %v3591, 0.0
        %v4313 = vsel %vm4277, %v3592, 0.0
        %v4314 = vsel %vm4278, %v3593, 0.0
        %v4315 = vsel %vm4279, %v3594, 0.0
        %v4316 = vsel %vm4280, %v3595, 0.0
        %v4317 = vsel %vm4281, %v3596, 0.0
        %v4318 = vsel %vm4282, %v3597, 0.0
        %v4319 = vsel %vm4283, %v3598, 0.0
        %v4320 = vsel %vm4284, %v3599, 0.0
        %v4321 = vsel %vm4285, %v3600, 0.0
        %v4322 = vsel %vm4286, %v3601, 0.0
        %v4323 = vsel %vm4287, %v3602, 0.0
        %v4324 = vsel %vm4288, %v3603, 0.0
        %v4325 = vsel %vm4289, %v3604, 0.0
        %v4326 = vsel %vm4290, %v3605, 0.0
        %v4327 = vsel %vm4291, %v3606, 0.0
        %v4328 = vsel %vm4292, %v3607, 0.0
        %v4329 = vsel %vm4293, %v3608, 0.0
        %v4330 = vsel %vm4294, %v3609, 0.0
        %v4331 = vsel %vm4295, %v3610, 0.0
        %v4332 = vsel %vm4296, %v3611, 0.0
        %v4333 = vsel %vm4297, %v3612, 0.0
        %v4334 = vsel %vm4298, %v3613, 0.0
        %v4335 = vsel %vm4299, %v3614, 0.0
        %v4336 = vsel %vm4300, %v3615, 0.0
        %v4337 = vsel %vm4301, %v3616, 0.0
        %v4338 = vsel %vm4302, %v3617, 0.0
        %v4339 = vsel %vm4303, %v3618, 0.0
        %v4340 = vsel %vm4304, %v3619, 0.0
        %v4341 = vsel %vm4305, %v3620, 0.0
        %v4342 = vsel %vm4306, %v3621, 0.0
        %v4343 = vld [vmem:[#allocation4] sm:$0x1]
        %v4344 = vadd.f32 %v4307, %v4308
        %v4345 = vadd.f32 %v4344, %v4309
        %v4346 = vadd.f32 %v4345, %v4310
        %v4347 = vadd.f32 %v4346, %v4311
        %v4348 = vadd.f32 %v4347, %v4312
        %v4349 = vadd.f32 %v4348, %v4313
        %v4350 = vadd.f32 %v4349, %v4314
        %v4351 = vadd.f32 %v4350, %v4315
        %v4352 = vadd.f32 %v4351, %v4316
        %v4353 = vadd.f32 %v4352, %v4317
        %v4354 = vadd.f32 %v4353, %v4318
        %v4355 = vadd.f32 %v4354, %v4319
        %v4356 = vadd.f32 %v4355, %v4320
        %v4357 = vadd.f32 %v4356, %v4321
        %v4358 = vadd.f32 %v4357, %v4322
        %v4359 = vadd.f32 %v4358, %v4323
        %v4360 = vadd.f32 %v4359, %v4324
        %v4361 = vadd.f32 %v4360, %v4325
        %v4362 = vadd.f32 %v4361, %v4326
        %v4363 = vadd.f32 %v4362, %v4327
        %v4364 = vadd.f32 %v4363, %v4328
        %v4365 = vadd.f32 %v4364, %v4329
        %v4366 = vadd.f32 %v4365, %v4330
        %v4367 = vadd.f32 %v4366, %v4331
        %v4368 = vadd.f32 %v4367, %v4332
        %v4369 = vadd.f32 %v4368, %v4333
        %v4370 = vadd.f32 %v4369, %v4334
        %v4371 = vadd.f32 %v4370, %v4335
        %v4372 = vadd.f32 %v4371, %v4336
        %v4373 = vadd.f32 %v4372, %v4337
        %v4374 = vadd.f32 %v4373, %v4338
        %v4375 = vadd.f32 %v4374, %v4339
        %v4376 = vadd.f32 %v4375, %v4340
        %v4377 = vadd.f32 %v4376, %v4341
        %v4378 = vadd.f32 %v4377, %v4342
        %v4379 = vrot.slane %v4378, 4
        %v4380 = vadd.f32 %v4378, %v4379
        %v4381 = vrot.slane %v4380, 2
        %v4382 = vadd.f32 %v4380, %v4381
        %v4383 = vrot.slane %v4382, 1
        %v4384 = vadd.f32 %v4382, %v4383
        %v4385 = vadd.f32 %v4343, %v4384
        %4386 = vst [vmem:[#allocation4] sm:$0x1] %v4385
        %v4387 = vld [vmem:[#allocation4 + $0x1] sm:$0x1]
        %v4388 = vmul.f32 %v4307, %v4307
        %v4389 = vmul.f32 %v4308, %v4308
        %v4390 = vmul.f32 %v4309, %v4309
        %v4391 = vmul.f32 %v4310, %v4310
        %v4392 = vmul.f32 %v4311, %v4311
        %v4393 = vmul.f32 %v4312, %v4312
        %v4394 = vmul.f32 %v4313, %v4313
        %v4395 = vmul.f32 %v4314, %v4314
        %v4396 = vmul.f32 %v4315, %v4315
        %v4397 = vmul.f32 %v4316, %v4316
        %v4398 = vmul.f32 %v4317, %v4317
        %v4399 = vmul.f32 %v4318, %v4318
        %v4400 = vmul.f32 %v4319, %v4319
        %v4401 = vmul.f32 %v4320, %v4320
        %v4402 = vmul.f32 %v4321, %v4321
        %v4403 = vmul.f32 %v4322, %v4322
        %v4404 = vmul.f32 %v4323, %v4323
        %v4405 = vmul.f32 %v4324, %v4324
        %v4406 = vmul.f32 %v4325, %v4325
        %v4407 = vmul.f32 %v4326, %v4326
        %v4408 = vmul.f32 %v4327, %v4327
        %v4409 = vmul.f32 %v4328, %v4328
        %v4410 = vmul.f32 %v4329, %v4329
        %v4411 = vmul.f32 %v4330, %v4330
        %v4412 = vmul.f32 %v4331, %v4331
        %v4413 = vmul.f32 %v4332, %v4332
        %v4414 = vmul.f32 %v4333, %v4333
        %v4415 = vmul.f32 %v4334, %v4334
        %v4416 = vmul.f32 %v4335, %v4335
        %v4417 = vmul.f32 %v4336, %v4336
        %v4418 = vmul.f32 %v4337, %v4337
        %v4419 = vmul.f32 %v4338, %v4338
        %v4420 = vmul.f32 %v4339, %v4339
        %v4421 = vmul.f32 %v4340, %v4340
        %v4422 = vmul.f32 %v4341, %v4341
        %v4423 = vmul.f32 %v4342, %v4342
        %v4424 = vadd.f32 %v4388, %v4389
        %v4425 = vadd.f32 %v4424, %v4390
        %v4426 = vadd.f32 %v4425, %v4391
        %v4427 = vadd.f32 %v4426, %v4392
        %v4428 = vadd.f32 %v4427, %v4393
        %v4429 = vadd.f32 %v4428, %v4394
        %v4430 = vadd.f32 %v4429, %v4395
        %v4431 = vadd.f32 %v4430, %v4396
        %v4432 = vadd.f32 %v4431, %v4397
        %v4433 = vadd.f32 %v4432, %v4398
        %v4434 = vadd.f32 %v4433, %v4399
        %v4435 = vadd.f32 %v4434, %v4400
        %v4436 = vadd.f32 %v4435, %v4401
        %v4437 = vadd.f32 %v4436, %v4402
        %v4438 = vadd.f32 %v4437, %v4403
        %v4439 = vadd.f32 %v4438, %v4404
        %v4440 = vadd.f32 %v4439, %v4405
        %v4441 = vadd.f32 %v4440, %v4406
        %v4442 = vadd.f32 %v4441, %v4407
        %v4443 = vadd.f32 %v4442, %v4408
        %v4444 = vadd.f32 %v4443, %v4409
        %v4445 = vadd.f32 %v4444, %v4410
        %v4446 = vadd.f32 %v4445, %v4411
        %v4447 = vadd.f32 %v4446, %v4412
        %v4448 = vadd.f32 %v4447, %v4413
        %v4449 = vadd.f32 %v4448, %v4414
        %v4450 = vadd.f32 %v4449, %v4415
        %v4451 = vadd.f32 %v4450, %v4416
        %v4452 = vadd.f32 %v4451, %v4417
        %v4453 = vadd.f32 %v4452, %v4418
        %v4454 = vadd.f32 %v4453, %v4419
        %v4455 = vadd.f32 %v4454, %v4420
        %v4456 = vadd.f32 %v4455, %v4421
        %v4457 = vadd.f32 %v4456, %v4422
        %v4458 = vadd.f32 %v4457, %v4423
        %v4459 = vrot.slane %v4458, 4
        %v4460 = vadd.f32 %v4458, %v4459
        %v4461 = vrot.slane %v4460, 2
        %v4462 = vadd.f32 %v4460, %v4461
        %v4463 = vrot.slane %v4462, 1
        %v4464 = vadd.f32 %v4462, %v4463
        %v4465 = vadd.f32 %v4387, %v4464
        %4466 = vst [vmem:[#allocation4 + $0x1] sm:$0x1] %v4465
        %s4467 = sand.u32 %s74, 1
        %s4468 = scalar_lea.sflag [#allocation3], %s4467
        %s4469 = sand.u32 %s74, 1
        %s4470 = smul.addr %s4469, 288
        %s4471 = scalar_lea.vmem [#allocation2], %s4470
        // Predicated region
        $region33: #{tpu_custom_call.1} parent=27 // pred_check
          %p4472 = pneg %p84
        $region34: #{tpu_custom_call.1} parent=27 // pred_check_branch
          %4474 = sbr.rel (%p4472) target = $region36
        $region35: #{tpu_custom_call.1} parent=27 // pred_region
          %s4476 = ssub.s32 4608, 4608
          %4477 = vsyncadd %s4468, %s4476
          %s4478 = smul.addr %s19, 36
          %s4479 = smul.addr %s4478, 128
          %s4480 = scalar_lea.hbm %s2, %s4479
          %s4481 = sshll.u32 %s4471, 4
          %s4482 = int_to_ptr.vmem [resolvable:$true] %s4481
          %4487 = dma.vmem_to_hbm [thread:$0]  %s4482, 4608, %s4480, %s4468, 128, 128, 8
        $region36: #{tpu_custom_call.1} parent=27 // pred_fallthru
          _
        // Predicated region
        $region37: #{tpu_custom_call.1} parent=27 // pred_check
          %p4488 = pneg %p105
        $region38: #{tpu_custom_call.1} parent=27 // pred_check_branch
          %4490 = sbr.rel (%p4488) target = $region40
        $region39: #{tpu_custom_call.1} parent=27 // pred_region
          %s4492 = ssub.s32 128, 128
          %4493 = vsyncadd [#allocation5], %s4492
          %s4495 = sshll.u32 [#allocation4], 4
          %s4496 = int_to_ptr.vmem [resolvable:$true] %s4495
          %4498 = dma.vmem_to_hbm [thread:$0]  %s4496, 128, %s3, [#allocation5]
        $region40: #{tpu_custom_call.1} parent=27 // pred_fallthru
          _
        // Predicated region
        $region41: #{tpu_custom_call.1} parent=27 // pred_check
          %p4499 = pneg %p105
        $region42: #{tpu_custom_call.1} parent=27 // pred_check_branch
          %4501 = sbr.rel (%p4499) target = $region44
        $region43: #{tpu_custom_call.1} parent=27 // pred_region
          %4502 = dma.done [#allocation5], 128
        $region44: #{tpu_custom_call.1} parent=27 // pred_fallthru
          _
      $region28: #{tpu_custom_call.1} parent=5 // pred_fallthru
        _
      %p4503 = scmp.le.s32.totalorder 2, %s14
      // Predicated region
      $region45: #{tpu_custom_call.1} parent=5 // pred_check
        %p4504 = pneg %p4503
      $region46: #{tpu_custom_call.1} parent=5 // pred_check_branch
        %4506 = sbr.rel (%p4504) target = $region48
      $region47: #{tpu_custom_call.1} parent=5 // pred_region
        %s4507 = ssub.s32 %s14, 2
        // Predicated region
        $region49: #{tpu_custom_call.1} parent=47 // pred_check
          %p4508 = pneg %p90
        $region50: #{tpu_custom_call.1} parent=47 // pred_check_branch
          %4510 = sbr.rel (%p4508) target = $region52
        $region51: #{tpu_custom_call.1} parent=47 // pred_region
          %s4511 = sand.u32 %s75, 1
          %s4512 = scalar_lea.sflag [#allocation3], %s4511
          %s4513 = sand.u32 %s75, 1
          %s4514 = smul.addr %s4513, 288
          %s4515 = scalar_lea.vmem [#allocation2], %s4514
          %4516 = dma.done %s4512, 4608
        $region52: #{tpu_custom_call.1} parent=47 // pred_fallthru
          _
      $region48: #{tpu_custom_call.1} parent=5 // pred_fallthru
        _
    $region6: #{tpu_custom_call.1} parent=1 // loop_footer
      %s18 = sadd.s32 1, %s14
    $region7: #{tpu_custom_call.1} parent=1 // loop_footer_branch
      %13 = sbr.rel target = $region3
    $region8: #{tpu_custom_call.1} parent=1 // loop_exit
      _
    %4517 = vsyncpa [#allocation3], 1
    %s4518 = scalar_lea.sflag [#allocation3], 1
    %4519 = vsyncpa %s4518, 1
    %4520 = vsyncpa [#allocation5], 1

</llo_original>
